<compile_context>
chip_gen: v7x
topology: tpu7x:2x2x1
jax: 0.10.0
libtpu: 0.0.40
codegen_flags: <defaults>
</compile_context>

<pallas_src>
import math
import functools

import jax
import jax.numpy as jnp
from jax import lax
from jax.experimental import pallas as pl
from jax.experimental.pallas import tpu as pltpu

MXU_DTYPE = jnp.bfloat16          # MXU operand dtype (accumulation is always f32)
LN_EPS = 1e-5
MASK_VALUE = -1.0e9


# --------------------------- chip-aware tiling knobs ---------------------------

def _vmem_capacity_bytes():
    try:
        info = pltpu.get_tpu_info()
        cap = getattr(info, "vmem_capacity_bytes", None)
        if cap:
            return int(cap)
    except Exception:
        pass
    return 64 * 1024 * 1024        # conservative default (v7x-sized)


_VMEM_CAP = _vmem_capacity_bytes()
_BIG_VMEM = _VMEM_CAP >= 100 * 1024 * 1024      # v5e / v6e: 128 MiB, v7x: 64 MiB

TQ_TARGET = 256 if _BIG_VMEM else 128           # attention query-row tile
FFN_TM_TARGET = 256                             # FFN row tile
FFN_TF_TARGET = 2048 if _BIG_VMEM else 1024     # FFN hidden-dim tile
LIN_TM_TARGET = 512 if _BIG_VMEM else 256       # vocab-projection row tile
LIN_TN_TARGET = 2048 if _BIG_VMEM else 512      # vocab-projection column tile

# Scoped-VMEM requests: floor above v5e's 16 MiB default, cap below v7x's 64 MiB.
_VMEM_LIMIT_FLOOR = 32 * 1024 * 1024
_VMEM_LIMIT_CAP = min(56 * 1024 * 1024, max(_VMEM_CAP - 8 * 1024 * 1024, 24 * 1024 * 1024))


def _vmem_limit(estimate_bytes):
    want = int(1.5 * estimate_bytes)
    return int(min(max(want, _VMEM_LIMIT_FLOOR), _VMEM_LIMIT_CAP))


@functools.lru_cache(maxsize=None)
def _buffered_supported():
    """Runtime probe: does this jax/libtpu support pl.Buffered(1) (single-buffering)?"""
    try:
        def _probe_kernel(x_ref, o_ref):
            o_ref[...] = x_ref[...] + 1.0

        x = jnp.arange(8 * 128, dtype=jnp.float32).reshape(8, 128)
        y = pl.pallas_call(
            _probe_kernel,
            out_shape=jax.ShapeDtypeStruct((8, 128), jnp.float32),
            grid=(2,),
            in_specs=[pl.BlockSpec((8, 128), lambda i: (0, 0),
                                   pipeline_mode=pl.Buffered(1))],
            out_specs=pl.BlockSpec((8, 128), lambda i: (0, 0)),
        )(x)
        jax.block_until_ready(y)
        return bool(jnp.allclose(y, x + 1.0))
    except Exception:
        return False


def _const_spec(shape, index_map):
    """BlockSpec for operands with a constant index map (weights/biases): they are
    DMA'd once, so single-buffering halves their VMEM residency when supported."""
    if _buffered_supported():
        return pl.BlockSpec(shape, index_map, pipeline_mode=pl.Buffered(1))
    return pl.BlockSpec(shape, index_map)


# ----------------------------- tiling helpers -----------------------------

def _row_tile(M, target):
    """Largest multiple-of-8 divisor of M that is <= target (or M itself)."""
    if M <= target:
        return M
    t = (target // 8) * 8
    while t >= 8:
        if M % t == 0:
            return t
        t -= 8
    return M


def _col_tile(N, target):
    """Largest multiple-of-128 divisor of N that is <= target (or N itself)."""
    if N <= target:
        return N
    t = (target // 128) * 128
    while t >= 128:
        if N % t == 0:
            return t
        t -= 128
    return N


# ----------------------------- Pallas kernels -----------------------------

def linear_kernel(x_ref, w_ref, b_ref, o_ref):
    # out = x @ w + b   (x cast to bf16, w already bf16, f32 accumulation)
    x = x_ref[...].astype(MXU_DTYPE)
    o_ref[...] = (
        jnp.dot(x, w_ref[...], preferred_element_type=jnp.float32) + b_ref[...]
    )


def linear_tiled(x, w_bf16, b_row, *, tm_target=LIN_TM_TARGET, tn_target=LIN_TN_TARGET):
    """Row/column-tiled linear (used for the final vocab projection)."""
    M, D = x.shape
    N = w_bf16.shape[1]
    tm = _row_tile(M, tm_target)
    tn = _col_tile(N, tn_target)
    est = (D * tn * 2) * 2 + tm * D * 4 * 2 + tm * tn * 4 * 2 + tn * 4 * 2
    return pl.pallas_call(
        linear_kernel,
        out_shape=jax.ShapeDtypeStruct((M, N), jnp.float32),
        grid=(M // tm, N // tn),
        in_specs=[
            pl.BlockSpec((tm, D), lambda i, j: (i, 0)),
            pl.BlockSpec((D, tn), lambda i, j: (0, j)),
            pl.BlockSpec((1, tn), lambda i, j: (0, j)),
        ],
        out_specs=pl.BlockSpec((tm, tn), lambda i, j: (i, j)),
        compiler_params=pltpu.CompilerParams(
            dimension_semantics=("parallel", "parallel"),
            vmem_limit_bytes=_vmem_limit(est)),
    )(x, w_bf16, b_row)


def ffn_ln_kernel(x_ref, w1_ref, b1_ref, w2_ref, b2_ref, g_ref, beta_ref, o_ref, acc_ref):
    # LayerNorm(x + fc2(relu(fc1(x)))) with the d_ff axis tiled as a reduction.
    f = pl.program_id(1)

    @pl.when(f == 0)
    def _():
        acc_ref[...] = jnp.zeros_like(acc_ref)

    x = x_ref[...]                                                     # (tm, D) f32
    h = jnp.dot(x.astype(MXU_DTYPE), w1_ref[...],
                preferred_element_type=jnp.float32) + b1_ref[...]      # (tm, tf)
    h = jnp.maximum(h, 0.0)                                            # ReLU (elementwise in F)
    acc_ref[...] += jnp.dot(h.astype(MXU_DTYPE), w2_ref[...],
                            preferred_element_type=jnp.float32)        # (tm, D)

    @pl.when(f == pl.num_programs(1) - 1)
    def _():
        y = x + acc_ref[...] + b2_ref[...]                             # residual + fc2 bias
        mean = jnp.mean(y, axis=-1, keepdims=True)
        var = jnp.mean((y - mean) * (y - mean), axis=-1, keepdims=True)
        o_ref[...] = (y - mean) * lax.rsqrt(var + LN_EPS) * g_ref[...] + beta_ref[...]


def fused_ffn_ln(x, fp):
    B, S, D = x.shape
    M = B * S
    F = fp["w1"].shape[1]
    tm = _row_tile(M, FFN_TM_TARGET)
    tf = _col_tile(F, FFN_TF_TARGET)
    est = ((D * tf + tf * D) * 2) * 2 + tm * D * 4 * 4 + tm * D * 4 + tm * tf * 4
    out = pl.pallas_call(
        ffn_ln_kernel,
        out_shape=jax.ShapeDtypeStruct((M, D), jnp.float32),
        grid=(M // tm, F // tf),
        in_specs=[
            pl.BlockSpec((tm, D), lambda i, f: (i, 0)),
            pl.BlockSpec((D, tf), lambda i, f: (0, f)),      # fc1 column tile
            pl.BlockSpec((1, tf), lambda i, f: (0, f)),      # fc1 bias tile
            pl.BlockSpec((tf, D), lambda i, f: (f, 0)),      # fc2 row tile
            _const_spec((1, D), lambda i, f: (0, 0)),        # fc2 bias
            _const_spec((1, D), lambda i, f: (0, 0)),        # LN gamma
            _const_spec((1, D), lambda i, f: (0, 0)),        # LN beta
        ],
        out_specs=pl.BlockSpec((tm, D), lambda i, f: (i, 0)),
        scratch_shapes=[pltpu.VMEM((tm, D), jnp.float32)],   # fc2 accumulator
        compiler_params=pltpu.CompilerParams(
            dimension_semantics=("parallel", "arbitrary"),
            vmem_limit_bytes=_vmem_limit(est)),
    )(x.reshape(M, D), fp["w1"], fp["b1"], fp["w2"], fp["b2"], fp["g"], fp["b"])
    return out.reshape(B, S, D)


def mha_ln_kernel(xq_ref, xkv_ref, valid_ref,
                  wq_ref, bq_ref, wkv_ref, bkv_ref, wo_ref, bo_ref,
                  g_ref, beta_ref, o_ref, kv_sc, ctx_sc,
                  *, num_heads, causal):
    # One (batch, query-tile) cell:
    #   LayerNorm(x_q + W_o(Attention(W_q x_q, W_k x_kv, W_v x_kv, mask)))
    qi = pl.program_id(1)
    x = xq_ref[0]                                           # (tq, D)  f32
    tq, D = x.shape
    Skv = kv_sc.shape[0]
    dk = D // num_heads
    scale = 1.0 / math.sqrt(dk)

    # K/V projection cached in VMEM across query tiles of the same batch element;
    # recomputed whenever the batch index changes (the query-tile axis restarts at 0).
    @pl.when(qi == 0)
    def _():
        kv = jnp.dot(xkv_ref[0].astype(MXU_DTYPE), wkv_ref[...],
                     preferred_element_type=jnp.float32) + bkv_ref[...]   # (Skv, 2D)
        kv_sc[...] = kv.astype(MXU_DTYPE)

    # Q projection for this query tile (1/sqrt(dk) folded in before the bf16 cast).
    q = (jnp.dot(x.astype(MXU_DTYPE), wq_ref[...],
                 preferred_element_type=jnp.float32) + bq_ref[...]) * scale

    # pad / causal mask reconstructed in-kernel from the tiny per-batch validity vector
    valid = valid_ref[0]                                    # (tq,1) query-side or (1,Skv) key-side
    keep = valid != 0.0
    if causal:
        row = lax.broadcasted_iota(jnp.int32, (tq, Skv), 0) + qi * tq
        col = lax.broadcasted_iota(jnp.int32, (tq, Skv), 1)
        keep = jnp.logical_and(keep, col <= row)

    # Per-head attention.  Head outputs land in a lane-dense (tq, D) context slab;
    # ONE full-contraction ctx @ Wo matmul follows the head loop.
    # TODO(synk): for dk < 128 the per-head lane slices are sub-128; head-batched
    # dot_general would avoid the masked loads but needs a head-major relayout.
    for h in range(num_heads):
        lo = h * dk
        qh = q[:, lo:lo + dk].astype(MXU_DTYPE)
        kh = kv_sc[:, lo:lo + dk]                           # bf16
        vh = kv_sc[:, D + lo:D + lo + dk]                   # bf16
        s = lax.dot_general(qh, kh, (((1,), (1,)), ((), ())),
                            preferred_element_type=jnp.float32)          # (tq, Skv)
        s = jnp.where(keep, s, MASK_VALUE)
        smax = jnp.max(s, axis=-1, keepdims=True)
        e = jnp.exp(s - smax)
        l = jnp.sum(e, axis=-1, keepdims=True)              # >= 1 (max term is exp(0))
        ah = jnp.dot(e.astype(MXU_DTYPE), vh, preferred_element_type=jnp.float32)
        # deferred softmax normalization: one reciprocal per row, on the EUP slot
        ah = ah * pl.reciprocal(l, approx=True)
        ctx_sc[:, lo:lo + dk] = ah.astype(MXU_DTYPE)

    out = jnp.dot(ctx_sc[...], wo_ref[...], preferred_element_type=jnp.float32)

    # residual + output bias + LayerNorm (f32 statistics)
    y = x + out + bo_ref[...]
    mean = jnp.mean(y, axis=-1, keepdims=True)
    var = jnp.mean((y - mean) * (y - mean), axis=-1, keepdims=True)
    o_ref[0] = (y - mean) * lax.rsqrt(var + LN_EPS) * g_ref[...] + beta_ref[...]


def fused_mha_ln(ap, ln_g, ln_b, x_q, x_kv, valid, *, num_heads, causal, key_side_mask):
    """valid: (B, 1, Skv) for key-side masks (encoder / cross-attn src_mask),
              (B, Sq, 1) for query-side masks (decoder self-attn tgt_mask, + causal)."""
    B, Sq, D = x_q.shape
    Skv = x_kv.shape[1]
    tq = _row_tile(Sq, TQ_TARGET)

    if key_side_mask:
        vblock = (1, 1, Skv)
        v_index = lambda bb, qq: (bb, 0, 0)
    else:
        vblock = (1, tq, 1)
        v_index = lambda bb, qq: (bb, qq, 0)

    est = (4 * D * D) * 2 \
        + (tq * D + Skv * D + tq * D) * 4 * 2 \
        + Skv * 2 * D * 2 + tq * D * 2 \
        + tq * Skv * 4 * 3 + tq * D * 4 * 2

    kernel = functools.partial(mha_ln_kernel, num_heads=num_heads, causal=causal)
    return pl.pallas_call(
        kernel,
        out_shape=jax.ShapeDtypeStruct((B, Sq, D), jnp.float32),
        grid=(B, Sq // tq),
        in_specs=[
            pl.BlockSpec((1, tq, D), lambda bb, qq: (bb, qq, 0)),
            pl.BlockSpec((1, Skv, D), lambda bb, qq: (bb, 0, 0)),
            pl.BlockSpec(vblock, v_index),
            _const_spec((D, D), lambda bb, qq: (0, 0)),        # Wq
            _const_spec((1, D), lambda bb, qq: (0, 0)),        # bq
            _const_spec((D, 2 * D), lambda bb, qq: (0, 0)),    # [Wk|Wv]
            _const_spec((1, 2 * D), lambda bb, qq: (0, 0)),    # [bk|bv]
            _const_spec((D, D), lambda bb, qq: (0, 0)),        # Wo
            _const_spec((1, D), lambda bb, qq: (0, 0)),        # bo
            _const_spec((1, D), lambda bb, qq: (0, 0)),        # LN gamma
            _const_spec((1, D), lambda bb, qq: (0, 0)),        # LN beta
        ],
        out_specs=pl.BlockSpec((1, tq, D), lambda bb, qq: (bb, qq, 0)),
        scratch_shapes=[pltpu.VMEM((Skv, 2 * D), MXU_DTYPE),   # cached K/V projection
                        pltpu.VMEM((tq, D), MXU_DTYPE)],       # per-head context slab
        compiler_params=pltpu.CompilerParams(
            # query-tile axis is 'arbitrary': the K/V scratch cache is filled at qi==0
            # and reused by the following query tiles (sequential dependence); the
            # batch axis remains 'parallel' for megacore sharding.
            dimension_semantics=("parallel", "arbitrary"),
            vmem_limit_bytes=_vmem_limit(est)),
    )(x_q, x_kv, valid,
      ap["wq"], ap["bq"], ap["wkv"], ap["bkv"], ap["wo"], ap["bo"], ln_g, ln_b)


# --------------------------- model (JAX glue) ---------------------------

def encoder_layer(lp, x, src_valid_kv, num_heads):
    x = fused_mha_ln(lp["self_attn"], lp["ln1_g"], lp["ln1_b"], x, x, src_valid_kv,
                     num_heads=num_heads, causal=False, key_side_mask=True)
    x = fused_ffn_ln(x, lp["ffn"])
    return x


def decoder_layer(lp, x, enc_out, src_valid_kv, tgt_valid_q, num_heads):
    x = fused_mha_ln(lp["self_attn"], lp["ln1_g"], lp["ln1_b"], x, x, tgt_valid_q,
                     num_heads=num_heads, causal=True, key_side_mask=False)
    x = fused_mha_ln(lp["cross_attn"], lp["ln2_g"], lp["ln2_b"], x, enc_out, src_valid_kv,
                     num_heads=num_heads, causal=False, key_side_mask=True)
    x = fused_ffn_ln(x, lp["ffn"])
    return x


def positional_encoding_table(max_seq_length, d_model):
    position = jnp.arange(max_seq_length, dtype=jnp.float32)[:, None]
    div_term = jnp.exp(
        jnp.arange(0, d_model, 2, dtype=jnp.float32) * (-math.log(10000.0) / d_model)
    )
    pe = jnp.zeros((max_seq_length, d_model), dtype=jnp.float32)
    pe = pe.at[:, 0::2].set(jnp.sin(position * div_term))
    pe = pe.at[:, 1::2].set(jnp.cos(position * div_term))
    return pe


def transformer_forward(ip, src, tgt, num_heads):
    # mask "seeds": the module's (B,1,1,Ss) / (B,1,St,St) masks are reconstructed
    # inside the attention kernels from these tiny validity vectors.  Matches
    # generate_mask() exactly: src mask is key-side, tgt mask is query-side + causal.
    src_valid_kv = (src != 0).astype(jnp.float32)[:, None, :]   # (B, 1, Ss)
    tgt_valid_q = (tgt != 0).astype(jnp.float32)[:, :, None]    # (B, St, 1)
    pe = ip["pe"]

    # TODO(synk): embedding gather + positional add stay in XLA (small data-dependent
    # gather); dropout layers are identity (inference semantics).
    src_emb = jnp.take(ip["enc_emb"], src, axis=0) + pe[None, : src.shape[1]]
    tgt_emb = jnp.take(ip["dec_emb"], tgt, axis=0) + pe[None, : tgt.shape[1]]

    enc_out = src_emb
    for lp in ip["enc_layers"]:
        enc_out = encoder_layer(lp, enc_out, src_valid_kv, num_heads)

    dec_out = tgt_emb
    for lp in ip["dec_layers"]:
        dec_out = decoder_layer(lp, dec_out, enc_out, src_valid_kv, tgt_valid_q, num_heads)

    B, St, D = dec_out.shape
    V = ip["fc_w"].shape[1]
    logits = linear_tiled(dec_out.reshape(B * St, D), ip["fc_w"], ip["fc_b"])
    return logits.reshape(B, St, V)


# ----------------------------- parameters -----------------------------

def init_params(key, src_vocab, tgt_vocab, d_model, num_layers, d_ff):
    def dense(k, din, dout):
        kw, kb = jax.random.split(k)
        lim = 1.0 / math.sqrt(din)
        w = jax.random.uniform(kw, (din, dout), jnp.float32, -lim, lim)
        b = jax.random.uniform(kb, (dout,), jnp.float32, -lim, lim)
        return w, b

    def mha_params(k):
        ks = jax.random.split(k, 4)
        wq, bq = dense(ks[0], d_model, d_model)
        wk, bk = dense(ks[1], d_model, d_model)
        wv, bv = dense(ks[2], d_model, d_model)
        wo, bo = dense(ks[3], d_model, d_model)
        return dict(wq=wq, bq=bq, wk=wk, bk=bk, wv=wv, bv=bv, wo=wo, bo=bo)

    def enc_layer_params(k):
        ks = jax.random.split(k, 3)
        w1, b1 = dense(ks[1], d_model, d_ff)
        w2, b2 = dense(ks[2], d_ff, d_model)
        return dict(
            self_attn=mha_params(ks[0]),
            ff_w1=w1, ff_b1=b1, ff_w2=w2, ff_b2=b2,
            ln1_g=jnp.ones(d_model), ln1_b=jnp.zeros(d_model),
            ln2_g=jnp.ones(d_model), ln2_b=jnp.zeros(d_model),
        )

    def dec_layer_params(k):
        ks = jax.random.split(k, 4)
        w1, b1 = dense(ks[2], d_model, d_ff)
        w2, b2 = dense(ks[3], d_ff, d_model)
        return dict(
            self_attn=mha_params(ks[0]),
            cross_attn=mha_params(ks[1]),
            ff_w1=w1, ff_b1=b1, ff_w2=w2, ff_b2=b2,
            ln1_g=jnp.ones(d_model), ln1_b=jnp.zeros(d_model),
            ln2_g=jnp.ones(d_model), ln2_b=jnp.zeros(d_model),
            ln3_g=jnp.ones(d_model), ln3_b=jnp.zeros(d_model),
        )

    keys = jax.random.split(key, 4 + 2 * num_layers)
    params = dict(
        enc_emb=0.02 * jax.random.normal(keys[0], (src_vocab, d_model), jnp.float32),
        dec_emb=0.02 * jax.random.normal(keys[1], (tgt_vocab, d_model), jnp.float32),
        enc_layers=[enc_layer_params(keys[4 + i]) for i in range(num_layers)],
        dec_layers=[dec_layer_params(keys[4 + num_layers + i]) for i in range(num_layers)],
    )
    fc_w, fc_b = dense(keys[2], d_model, tgt_vocab)
    params["fc_w"], params["fc_b"] = fc_w, fc_b
    return params


def prepare_params(params):
    """One-time conversion of f32 master weights into the kernels' inference layout:
    bf16 MXU operands, concatenated [Wk|Wv] slabs, row-vector biases.  Done ONCE,
    outside the per-step forward, so no per-call casts/concats touch HBM."""
    def attn(a):
        return dict(
            wq=a["wq"].astype(MXU_DTYPE),
            bq=a["bq"].reshape(1, -1),
            wkv=jnp.concatenate([a["wk"], a["wv"]], axis=1).astype(MXU_DTYPE),
            bkv=jnp.concatenate([a["bk"], a["bv"]]).reshape(1, -1),
            wo=a["wo"].astype(MXU_DTYPE),
            bo=a["bo"].reshape(1, -1),
        )

    def ffn(w1, b1, w2, b2, g, b):
        return dict(w1=w1.astype(MXU_DTYPE), b1=b1.reshape(1, -1),
                    w2=w2.astype(MXU_DTYPE), b2=b2.reshape(1, -1),
                    g=g.reshape(1, -1), b=b.reshape(1, -1))

    enc_layers = []
    for lp in params["enc_layers"]:
        enc_layers.append(dict(
            self_attn=attn(lp["self_attn"]),
            ln1_g=lp["ln1_g"].reshape(1, -1), ln1_b=lp["ln1_b"].reshape(1, -1),
            ffn=ffn(lp["ff_w1"], lp["ff_b1"], lp["ff_w2"], lp["ff_b2"],
                    lp["ln2_g"], lp["ln2_b"]),
        ))

    dec_layers = []
    for lp in params["dec_layers"]:
        dec_layers.append(dict(
            self_attn=attn(lp["self_attn"]),
            ln1_g=lp["ln1_g"].reshape(1, -1), ln1_b=lp["ln1_b"].reshape(1, -1),
            cross_attn=attn(lp["cross_attn"]),
            ln2_g=lp["ln2_g"].reshape(1, -1), ln2_b=lp["ln2_b"].reshape(1, -1),
            ffn=ffn(lp["ff_w1"], lp["ff_b1"], lp["ff_w2"], lp["ff_b2"],
                    lp["ln3_g"], lp["ln3_b"]),
        ))

    return dict(
        enc_emb=params["enc_emb"], dec_emb=params["dec_emb"], pe=params["pe"],
        enc_layers=enc_layers, dec_layers=dec_layers,
        fc_w=params["fc_w"].astype(MXU_DTYPE),
        fc_b=params["fc_b"].reshape(1, -1),
    )


# --------------------------------- main ---------------------------------

if __name__ == "__main__":
    # small config consistent with the module's slider ranges
    B = 2
    S_SRC = 16
    S_TGT = 16
    D_MODEL = 128          # slider minimum (>= one vreg lane width)
    NUM_HEADS = 4          # d_k = 32
    D_FF = 512             # slider minimum
    NUM_LAYERS = 2
    SRC_VOCAB = 1024
    TGT_VOCAB = 1024
    MAX_SEQ = 50

    # probe pl.Buffered(1) support once, eagerly (outside any jit trace)
    _ = _buffered_supported()

    key = jax.random.PRNGKey(0)
    kp, ks, kt = jax.random.split(key, 3)

    params = init_params(kp, SRC_VOCAB, TGT_VOCAB, D_MODEL, NUM_LAYERS, D_FF)
    params["pe"] = positional_encoding_table(MAX_SEQ, D_MODEL)

    src = jax.random.randint(ks, (B, S_SRC), 1, SRC_VOCAB, dtype=jnp.int32)
    tgt = jax.random.randint(kt, (B, S_TGT), 1, TGT_VOCAB, dtype=jnp.int32)
    # trailing pad tokens (id 0) on one batch element to exercise the padding masks
    src = src.at[1, -3:].set(0)
    tgt = tgt.at[1, -4:].set(0)

    iparams = prepare_params(params)   # one-time bf16 cast + [Wk|Wv] concat

    fwd = jax.jit(functools.partial(transformer_forward, num_heads=NUM_HEADS))
    logits = fwd(iparams, src, tgt)
    jax.block_until_ready(logits)

    assert logits.shape == (B, S_TGT, TGT_VOCAB)
    assert bool(jnp.all(jnp.isfinite(logits)))
    print("KERNEL_OK")
</pallas_src>

<mosaic_0001>
module attributes {stable_mosaic.version = 11 : i64} {
  func.func @_probe_kernel(%arg0: i32, %arg1: memref<8x128xf32, #tpu.memory_space<vmem>>, %arg2: memref<8x128xf32, #tpu.memory_space<vmem>>) attributes {dimension_semantics = [#tpu.dimension_semantics<arbitrary>], iteration_bounds = array<i64: 2>, scalar_prefetch = 0 : i64, scratch_operands = 0 : i64, tpu.core_type = #tpu.core_type<tc>, window_params = [{pipeline_mode = #tpu.pipeline_mode<synchronous>, transform_indices = @transform_0, window_bounds = array<i64: 8, 128>}, {pipeline_mode = #tpu.pipeline_mode<synchronous>, transform_indices = @transform_1, window_bounds = array<i64: 8, 128>}]} {
    %c0 = arith.constant 0 : index
    %c0_0 = arith.constant 0 : index
    %0 = vector.load %arg1[%c0, %c0_0] : memref<8x128xf32, #tpu.memory_space<vmem>>, vector<8x128xf32>
    %cst = arith.constant 1.000000e+00 : f32
    %1 = vector.broadcast %cst : f32 to vector<8x128xf32>
    %2 = arith.addf %0, %1 : vector<8x128xf32>
    %c0_1 = arith.constant 0 : index
    %c0_2 = arith.constant 0 : index
    %3 = vector.load %arg2[%c0_1, %c0_2] : memref<8x128xf32, #tpu.memory_space<vmem>>, vector<8x128xf32>
    tpu.vector_store %arg2[%c0_1, %c0_2], %2 {strides = array<i32>} : memref<8x128xf32, #tpu.memory_space<vmem>>, vector<8x128xf32>,
    return
  }
  func.func @transform_0(%arg0: i32) -> (i32, i32) {
    %c0_i32 = arith.constant 0 : i32
    %c0_i32_0 = arith.constant 0 : i32
    %c0_i32_1 = arith.constant 0 : i32
    return %c0_i32, %c0_i32_0 : i32, i32
  }
  func.func @transform_1(%arg0: i32) -> (i32, i32) {
    %c0_i32 = arith.constant 0 : i32
    %c0_i32_0 = arith.constant 0 : i32
    %c0_i32_1 = arith.constant 0 : i32
    return %c0_i32, %c0_i32_0 : i32, i32
  }
}

module attributes {stable_mosaic.version = 11 : i64} {
  func.func @linear_kernel(%arg0: i32, %arg1: i32, %arg2: memref<32x128xf32, #tpu.memory_space<vmem>>, %arg3: memref<128x512xbf16, #tpu.memory_space<vmem>>, %arg4: memref<1x512xf32, #tpu.memory_space<vmem>>, %arg5: memref<32x512xf32, #tpu.memory_space<vmem>>) attributes {dimension_semantics = [#tpu.dimension_semantics<parallel>, #tpu.dimension_semantics<parallel>], iteration_bounds = array<i64: 1, 2>, scalar_prefetch = 0 : i64, scratch_operands = 0 : i64, tpu.core_type = #tpu.core_type<tc>, window_params = [{transform_indices = @transform_0, window_bounds = array<i64: 32, 128>}, {transform_indices = @transform_1, window_bounds = array<i64: 128, 512>}, {transform_indices = @transform_2, window_bounds = array<i64: 1, 512>}, {transform_indices = @transform_3, window_bounds = array<i64: 32, 512>}]} {
    %c0 = arith.constant 0 : index
    %c0_0 = arith.constant 0 : index
    %0 = vector.load %arg2[%c0, %c0_0] : memref<32x128xf32, #tpu.memory_space<vmem>>, vector<32x128xf32>
    %1 = arith.truncf %0 : vector<32x128xf32> to vector<32x128xbf16>
    %c0_1 = arith.constant 0 : index
    %c0_2 = arith.constant 0 : index
    %2 = vector.load %arg3[%c0_1, %c0_2] : memref<128x512xbf16, #tpu.memory_space<vmem>>, vector<128x512xbf16>
    %cst = arith.constant dense<0.000000e+00> : vector<32x512xf32>
    %3 = tpu.matmul %1, %2, %cst {dimension_numbers = #tpu.dot_dimension_numbers<[1], [0], [0], [1], [0, 0, 1, 1], [], []>} : vector<32x128xbf16>, vector<128x512xbf16>, vector<32x512xf32> -> vector<32x512xf32>
    %c0_3 = arith.constant 0 : index
    %c0_4 = arith.constant 0 : index
    %4 = vector.load %arg4[%c0_3, %c0_4] : memref<1x512xf32, #tpu.memory_space<vmem>>, vector<1x512xf32>
    %5 = vector.broadcast %4 : vector<1x512xf32> to vector<32x512xf32>
    %6 = arith.addf %3, %5 : vector<32x512xf32>
    %c0_5 = arith.constant 0 : index
    %c0_6 = arith.constant 0 : index
    %7 = vector.load %arg5[%c0_5, %c0_6] : memref<32x512xf32, #tpu.memory_space<vmem>>, vector<32x512xf32>
    tpu.vector_store %arg5[%c0_5, %c0_6], %6 {strides = array<i32>} : memref<32x512xf32, #tpu.memory_space<vmem>>, vector<32x512xf32>,
    return
  }
  func.func @transform_0(%arg0: i32, %arg1: i32) -> (i32, i32) {
    %c0_i32 = arith.constant 0 : i32
    %c0_i32_0 = arith.constant 0 : i32
    return %arg0, %c0_i32 : i32, i32
  }
  func.func @transform_1(%arg0: i32, %arg1: i32) -> (i32, i32) {
    %c0_i32 = arith.constant 0 : i32
    %c0_i32_0 = arith.constant 0 : i32
    return %c0_i32, %arg1 : i32, i32
  }
  func.func @transform_2(%arg0: i32, %arg1: i32) -> (i32, i32) {
    %c0_i32 = arith.constant 0 : i32
    %c0_i32_0 = arith.constant 0 : i32
    return %c0_i32, %arg1 : i32, i32
  }
  func.func @transform_3(%arg0: i32, %arg1: i32) -> (i32, i32) {
    %c0_i32 = arith.constant 0 : i32
    return %arg0, %arg1 : i32, i32
  }
}

module attributes {stable_mosaic.version = 11 : i64} {
  func.func @mha_ln_kernel(%arg0: i32, %arg1: i32, %arg2: memref<1x16x128xf32, #tpu.memory_space<vmem>>, %arg3: memref<1x16x128xf32, #tpu.memory_space<vmem>>, %arg4: memref<1x1x16xf32, #tpu.memory_space<vmem>>, %arg5: memref<128x128xbf16, #tpu.memory_space<vmem>>, %arg6: memref<1x128xf32, #tpu.memory_space<vmem>>, %arg7: memref<128x256xbf16, #tpu.memory_space<vmem>>, %arg8: memref<1x256xf32, #tpu.memory_space<vmem>>, %arg9: memref<128x128xbf16, #tpu.memory_space<vmem>>, %arg10: memref<1x128xf32, #tpu.memory_space<vmem>>, %arg11: memref<1x128xf32, #tpu.memory_space<vmem>>, %arg12: memref<1x128xf32, #tpu.memory_space<vmem>>, %arg13: memref<1x16x128xf32, #tpu.memory_space<vmem>>, %arg14: memref<16x256xbf16, #tpu.memory_space<vmem>>, %arg15: memref<16x128xbf16, #tpu.memory_space<vmem>>) attributes {dimension_semantics = [#tpu.dimension_semantics<parallel>, #tpu.dimension_semantics<arbitrary>], iteration_bounds = array<i64: 2, 1>, scalar_prefetch = 0 : i64, scratch_operands = 2 : i64, tpu.core_type = #tpu.core_type<tc>, window_params = [{transform_indices = @transform_0, window_bounds = array<i64: 1, 16, 128>}, {transform_indices = @transform_1, window_bounds = array<i64: 1, 16, 128>}, {transform_indices = @transform_2, window_bounds = array<i64: 1, 1, 16>}, {pipeline_mode = #tpu.pipeline_mode<synchronous>, transform_indices = @transform_3, window_bounds = array<i64: 128, 128>}, {pipeline_mode = #tpu.pipeline_mode<synchronous>, transform_indices = @transform_4, window_bounds = array<i64: 1, 128>}, {pipeline_mode = #tpu.pipeline_mode<synchronous>, transform_indices = @transform_5, window_bounds = array<i64: 128, 256>}, {pipeline_mode = #tpu.pipeline_mode<synchronous>, transform_indices = @transform_6, window_bounds = array<i64: 1, 256>}, {pipeline_mode = #tpu.pipeline_mode<synchronous>, transform_indices = @transform_7, window_bounds = array<i64: 128, 128>}, {pipeline_mode = #tpu.pipeline_mode<synchronous>, transform_indices = @transform_8, window_bounds = array<i64: 1, 128>}, {pipeline_mode = #tpu.pipeline_mode<synchronous>, transform_indices = @transform_9, window_bounds = array<i64: 1, 128>}, {pipeline_mode = #tpu.pipeline_mode<synchronous>, transform_indices = @transform_10, window_bounds = array<i64: 1, 128>}, {transform_indices = @transform_11, window_bounds = array<i64: 1, 16, 128>}]} {
    %c0 = arith.constant 0 : index
    %c0_0 = arith.constant 0 : index
    %c0_1 = arith.constant 0 : index
    %0 = vector.load %arg2[%c0, %c0_0, %c0_1] : memref<1x16x128xf32, #tpu.memory_space<vmem>>, vector<1x16x128xf32>
    %1 = vector.shape_cast %0 : vector<1x16x128xf32> to vector<16x128xf32>
    %c0_i32 = arith.constant 0 : i32
    %2 = arith.cmpi eq, %arg1, %c0_i32 : i32
    %3 = arith.extui %2 : i1 to i32
    %c0_i32_2 = arith.constant 0 : i32
    %4 = arith.cmpi ne, %3, %c0_i32_2 : i32
    scf.if %4 {
      %c0_68 = arith.constant 0 : index
      %c0_69 = arith.constant 0 : index
      %c0_70 = arith.constant 0 : index
      %145 = vector.load %arg3[%c0_68, %c0_69, %c0_70] : memref<1x16x128xf32, #tpu.memory_space<vmem>>, vector<1x16x128xf32>
      %146 = vector.shape_cast %145 : vector<1x16x128xf32> to vector<16x128xf32>
      %147 = arith.truncf %146 : vector<16x128xf32> to vector<16x128xbf16>
      %c0_71 = arith.constant 0 : index
      %c0_72 = arith.constant 0 : index
      %148 = vector.load %arg7[%c0_71, %c0_72] : memref<128x256xbf16, #tpu.memory_space<vmem>>, vector<128x256xbf16>
      %cst_73 = arith.constant dense<0.000000e+00> : vector<16x256xf32>
      %149 = tpu.matmul %147, %148, %cst_73 {dimension_numbers = #tpu.dot_dimension_numbers<[1], [0], [0], [1], [0, 0, 1, 1], [], []>} : vector<16x128xbf16>, vector<128x256xbf16>, vector<16x256xf32> -> vector<16x256xf32>
      %c0_74 = arith.constant 0 : index
      %c0_75 = arith.constant 0 : index
      %150 = vector.load %arg8[%c0_74, %c0_75] : memref<1x256xf32, #tpu.memory_space<vmem>>, vector<1x256xf32>
      %151 = vector.broadcast %150 : vector<1x256xf32> to vector<16x256xf32>
      %152 = arith.addf %149, %151 : vector<16x256xf32>
      %153 = arith.truncf %152 : vector<16x256xf32> to vector<16x256xbf16>
      %c0_76 = arith.constant 0 : index
      %c0_77 = arith.constant 0 : index
      %154 = vector.load %arg14[%c0_76, %c0_77] : memref<16x256xbf16, #tpu.memory_space<vmem>>, vector<16x256xbf16>
      tpu.vector_store %arg14[%c0_76, %c0_77], %153 {strides = array<i32>} : memref<16x256xbf16, #tpu.memory_space<vmem>>, vector<16x256xbf16>,
    } else {
    }
    %5 = arith.truncf %1 : vector<16x128xf32> to vector<16x128xbf16>
    %c0_3 = arith.constant 0 : index
    %c0_4 = arith.constant 0 : index
    %6 = vector.load %arg5[%c0_3, %c0_4] : memref<128x128xbf16, #tpu.memory_space<vmem>>, vector<128x128xbf16>
    %cst = arith.constant dense<0.000000e+00> : vector<16x128xf32>
    %7 = tpu.matmul %5, %6, %cst {dimension_numbers = #tpu.dot_dimension_numbers<[1], [0], [0], [1], [0, 0, 1, 1], [], []>} : vector<16x128xbf16>, vector<128x128xbf16>, vector<16x128xf32> -> vector<16x128xf32>
    %c0_5 = arith.constant 0 : index
    %c0_6 = arith.constant 0 : index
    %8 = vector.load %arg6[%c0_5, %c0_6] : memref<1x128xf32, #tpu.memory_space<vmem>>, vector<1x128xf32>
    %9 = vector.broadcast %8 : vector<1x128xf32> to vector<16x128xf32>
    %10 = arith.addf %7, %9 : vector<16x128xf32>
    %cst_7 = arith.constant 0.176776692 : f32
    %11 = vector.broadcast %cst_7 : f32 to vector<16x128xf32>
    %12 = arith.mulf %10, %11 : vector<16x128xf32>
    %c0_8 = arith.constant 0 : index
    %c0_9 = arith.constant 0 : index
    %c0_10 = arith.constant 0 : index
    %13 = vector.load %arg4[%c0_8, %c0_9, %c0_10] : memref<1x1x16xf32, #tpu.memory_space<vmem>>, vector<1x1x16xf32>
    %14 = vector.shape_cast %13 : vector<1x1x16xf32> to vector<1x16xf32>
    %cst_11 = arith.constant 0.000000e+00 : f32
    %15 = vector.broadcast %cst_11 : f32 to vector<1x16xf32>
    %16 = arith.cmpf one, %14, %15 : vector<1x16xf32>
    %17 = vector.extract_strided_slice %12 {offsets = [0, 0], sizes = [16, 32], strides = [1, 1]} : vector<16x128xf32> to vector<16x32xf32>
    %18 = arith.truncf %17 : vector<16x32xf32> to vector<16x32xbf16>
    %c0_12 = arith.constant 0 : index
    %c0_13 = arith.constant 0 : index
    %19 = vector.load %arg14[%c0_12, %c0_13] : memref<16x256xbf16, #tpu.memory_space<vmem>>, vector<16x32xbf16>
    %c0_14 = arith.constant 0 : index
    %c128 = arith.constant 128 : index
    %20 = vector.load %arg14[%c0_14, %c128] : memref<16x256xbf16, #tpu.memory_space<vmem>>, vector<16x32xbf16>
    %cst_15 = arith.constant dense<0.000000e+00> : vector<16x16xf32>
    %21 = tpu.matmul %18, %19, %cst_15 {dimension_numbers = #tpu.dot_dimension_numbers<[1], [1], [0], [0], [0, 0, 1, 0], [], []>} : vector<16x32xbf16>, vector<16x32xbf16>, vector<16x16xf32> -> vector<16x16xf32>
    %cst_16 = arith.constant -1.000000e+09 : f32
    %22 = vector.shape_cast %16 : vector<1x16xi1> to vector<1x16xi1>
    %23 = vector.broadcast %22 : vector<1x16xi1> to vector<16x16xi1>
    %24 = vector.broadcast %cst_16 : f32 to vector<16x16xf32>
    %25 = arith.select %23, %21, %24 : vector<16x16xi1>, vector<16x16xf32>
    %cst_17 = arith.constant dense<0xFF800000> : vector<16xf32>
    %26 = vector.multi_reduction <maximumf>, %25, %cst_17 [1] : vector<16x16xf32> to vector<16xf32>
    %27 = vector.shape_cast %26 : vector<16xf32> to vector<16x1xf32>
    %28 = vector.broadcast %27 : vector<16x1xf32> to vector<16x16xf32>
    %29 = arith.subf %25, %28 : vector<16x16xf32>
    %30 = math.exp %29 : vector<16x16xf32>
    %cst_18 = arith.constant dense<0.000000e+00> : vector<16xf32>
    %31 = vector.multi_reduction <add>, %30, %cst_18 [1] : vector<16x16xf32> to vector<16xf32>
    %32 = vector.shape_cast %31 : vector<16xf32> to vector<16x1xf32>
    %33 = arith.truncf %30 : vector<16x16xf32> to vector<16x16xbf16>
    %cst_19 = arith.constant dense<0.000000e+00> : vector<16x32xf32>
    %34 = tpu.matmul %33, %20, %cst_19 {dimension_numbers = #tpu.dot_dimension_numbers<[1], [0], [0], [1], [0, 0, 1, 1], [], []>} : vector<16x16xbf16>, vector<16x32xbf16>, vector<16x32xf32> -> vector<16x32xf32>
    %35 = tpu.reciprocal %32 {approx = true} : vector<16x1xf32> -> vector<16x1xf32>
    %36 = vector.broadcast %35 : vector<16x1xf32> to vector<16x32xf32>
    %37 = arith.mulf %34, %36 : vector<16x32xf32>
    %38 = arith.truncf %37 : vector<16x32xf32> to vector<16x32xbf16>
    %c0_20 = arith.constant 0 : index
    %c0_21 = arith.constant 0 : index
    %39 = vector.load %arg15[%c0_20, %c0_21] : memref<16x128xbf16, #tpu.memory_space<vmem>>, vector<16x32xbf16>
    tpu.vector_store %arg15[%c0_20, %c0_21], %38 {strides = array<i32>} : memref<16x128xbf16, #tpu.memory_space<vmem>>, vector<16x32xbf16>,
    %40 = vector.extract_strided_slice %12 {offsets = [0, 32], sizes = [16, 32], strides = [1, 1]} : vector<16x128xf32> to vector<16x32xf32>
    %41 = arith.truncf %40 : vector<16x32xf32> to vector<16x32xbf16>
    %c0_22 = arith.constant 0 : index
    %c32 = arith.constant 32 : index
    %42 = vector.load %arg14[%c0_22, %c32] : memref<16x256xbf16, #tpu.memory_space<vmem>>, vector<16x32xbf16>
    %c0_23 = arith.constant 0 : index
    %c160 = arith.constant 160 : index
    %43 = vector.load %arg14[%c0_23, %c160] : memref<16x256xbf16, #tpu.memory_space<vmem>>, vector<16x32xbf16>
    %cst_24 = arith.constant dense<0.000000e+00> : vector<16x16xf32>
    %44 = tpu.matmul %41, %42, %cst_24 {dimension_numbers = #tpu.dot_dimension_numbers<[1], [1], [0], [0], [0, 0, 1, 0], [], []>} : vector<16x32xbf16>, vector<16x32xbf16>, vector<16x16xf32> -> vector<16x16xf32>
    %cst_25 = arith.constant -1.000000e+09 : f32
    %45 = vector.shape_cast %16 : vector<1x16xi1> to vector<1x16xi1>
    %46 = vector.broadcast %45 : vector<1x16xi1> to vector<16x16xi1>
    %47 = vector.broadcast %cst_25 : f32 to vector<16x16xf32>
    %48 = arith.select %46, %44, %47 : vector<16x16xi1>, vector<16x16xf32>
    %cst_26 = arith.constant dense<0xFF800000> : vector<16xf32>
    %49 = vector.multi_reduction <maximumf>, %48, %cst_26 [1] : vector<16x16xf32> to vector<16xf32>
    %50 = vector.shape_cast %49 : vector<16xf32> to vector<16x1xf32>
    %51 = vector.broadcast %50 : vector<16x1xf32> to vector<16x16xf32>
    %52 = arith.subf %48, %51 : vector<16x16xf32>
    %53 = math.exp %52 : vector<16x16xf32>
    %cst_27 = arith.constant dense<0.000000e+00> : vector<16xf32>
    %54 = vector.multi_reduction <add>, %53, %cst_27 [1] : vector<16x16xf32> to vector<16xf32>
    %55 = vector.shape_cast %54 : vector<16xf32> to vector<16x1xf32>
    %56 = arith.truncf %53 : vector<16x16xf32> to vector<16x16xbf16>
    %cst_28 = arith.constant dense<0.000000e+00> : vector<16x32xf32>
    %57 = tpu.matmul %56, %43, %cst_28 {dimension_numbers = #tpu.dot_dimension_numbers<[1], [0], [0], [1], [0, 0, 1, 1], [], []>} : vector<16x16xbf16>, vector<16x32xbf16>, vector<16x32xf32> -> vector<16x32xf32>
    %58 = tpu.reciprocal %55 {approx = true} : vector<16x1xf32> -> vector<16x1xf32>
    %59 = vector.broadcast %58 : vector<16x1xf32> to vector<16x32xf32>
    %60 = arith.mulf %57, %59 : vector<16x32xf32>
    %61 = arith.truncf %60 : vector<16x32xf32> to vector<16x32xbf16>
    %c0_29 = arith.constant 0 : index
    %c32_30 = arith.constant 32 : index
    %62 = vector.load %arg15[%c0_29, %c32_30] : memref<16x128xbf16, #tpu.memory_space<vmem>>, vector<16x32xbf16>
    tpu.vector_store %arg15[%c0_29, %c32_30], %61 {strides = array<i32>} : memref<16x128xbf16, #tpu.memory_space<vmem>>, vector<16x32xbf16>,
    %63 = vector.extract_strided_slice %12 {offsets = [0, 64], sizes = [16, 32], strides = [1, 1]} : vector<16x128xf32> to vector<16x32xf32>
    %64 = arith.truncf %63 : vector<16x32xf32> to vector<16x32xbf16>
    %c0_31 = arith.constant 0 : index
    %c64 = arith.constant 64 : index
    %65 = vector.load %arg14[%c0_31, %c64] : memref<16x256xbf16, #tpu.memory_space<vmem>>, vector<16x32xbf16>
    %c0_32 = arith.constant 0 : index
    %c192 = arith.constant 192 : index
    %66 = vector.load %arg14[%c0_32, %c192] : memref<16x256xbf16, #tpu.memory_space<vmem>>, vector<16x32xbf16>
    %cst_33 = arith.constant dense<0.000000e+00> : vector<16x16xf32>
    %67 = tpu.matmul %64, %65, %cst_33 {dimension_numbers = #tpu.dot_dimension_numbers<[1], [1], [0], [0], [0, 0, 1, 0], [], []>} : vector<16x32xbf16>, vector<16x32xbf16>, vector<16x16xf32> -> vector<16x16xf32>
    %cst_34 = arith.constant -1.000000e+09 : f32
    %68 = vector.shape_cast %16 : vector<1x16xi1> to vector<1x16xi1>
    %69 = vector.broadcast %68 : vector<1x16xi1> to vector<16x16xi1>
    %70 = vector.broadcast %cst_34 : f32 to vector<16x16xf32>
    %71 = arith.select %69, %67, %70 : vector<16x16xi1>, vector<16x16xf32>
    %cst_35 = arith.constant dense<0xFF800000> : vector<16xf32>
    %72 = vector.multi_reduction <maximumf>, %71, %cst_35 [1] : vector<16x16xf32> to vector<16xf32>
    %73 = vector.shape_cast %72 : vector<16xf32> to vector<16x1xf32>
    %74 = vector.broadcast %73 : vector<16x1xf32> to vector<16x16xf32>
    %75 = arith.subf %71, %74 : vector<16x16xf32>
    %76 = math.exp %75 : vector<16x16xf32>
    %cst_36 = arith.constant dense<0.000000e+00> : vector<16xf32>
    %77 = vector.multi_reduction <add>, %76, %cst_36 [1] : vector<16x16xf32> to vector<16xf32>
    %78 = vector.shape_cast %77 : vector<16xf32> to vector<16x1xf32>
    %79 = arith.truncf %76 : vector<16x16xf32> to vector<16x16xbf16>
    %cst_37 = arith.constant dense<0.000000e+00> : vector<16x32xf32>
    %80 = tpu.matmul %79, %66, %cst_37 {dimension_numbers = #tpu.dot_dimension_numbers<[1], [0], [0], [1], [0, 0, 1, 1], [], []>} : vector<16x16xbf16>, vector<16x32xbf16>, vector<16x32xf32> -> vector<16x32xf32>
    %81 = tpu.reciprocal %78 {approx = true} : vector<16x1xf32> -> vector<16x1xf32>
    %82 = vector.broadcast %81 : vector<16x1xf32> to vector<16x32xf32>
    %83 = arith.mulf %80, %82 : vector<16x32xf32>
    %84 = arith.truncf %83 : vector<16x32xf32> to vector<16x32xbf16>
    %c0_38 = arith.constant 0 : index
    %c64_39 = arith.constant 64 : index
    %85 = vector.load %arg15[%c0_38, %c64_39] : memref<16x128xbf16, #tpu.memory_space<vmem>>, vector<16x32xbf16>
    tpu.vector_store %arg15[%c0_38, %c64_39], %84 {strides = array<i32>} : memref<16x128xbf16, #tpu.memory_space<vmem>>, vector<16x32xbf16>,
    %86 = vector.extract_strided_slice %12 {offsets = [0, 96], sizes = [16, 32], strides = [1, 1]} : vector<16x128xf32> to vector<16x32xf32>
    %87 = arith.truncf %86 : vector<16x32xf32> to vector<16x32xbf16>
    %c0_40 = arith.constant 0 : index
    %c96 = arith.constant 96 : index
    %88 = vector.load %arg14[%c0_40, %c96] : memref<16x256xbf16, #tpu.memory_space<vmem>>, vector<16x32xbf16>
    %c0_41 = arith.constant 0 : index
    %c224 = arith.constant 224 : index
    %89 = vector.load %arg14[%c0_41, %c224] : memref<16x256xbf16, #tpu.memory_space<vmem>>, vector<16x32xbf16>
    %cst_42 = arith.constant dense<0.000000e+00> : vector<16x16xf32>
    %90 = tpu.matmul %87, %88, %cst_42 {dimension_numbers = #tpu.dot_dimension_numbers<[1], [1], [0], [0], [0, 0, 1, 0], [], []>} : vector<16x32xbf16>, vector<16x32xbf16>, vector<16x16xf32> -> vector<16x16xf32>
    %cst_43 = arith.constant -1.000000e+09 : f32
    %91 = vector.shape_cast %16 : vector<1x16xi1> to vector<1x16xi1>
    %92 = vector.broadcast %91 : vector<1x16xi1> to vector<16x16xi1>
    %93 = vector.broadcast %cst_43 : f32 to vector<16x16xf32>
    %94 = arith.select %92, %90, %93 : vector<16x16xi1>, vector<16x16xf32>
    %cst_44 = arith.constant dense<0xFF800000> : vector<16xf32>
    %95 = vector.multi_reduction <maximumf>, %94, %cst_44 [1] : vector<16x16xf32> to vector<16xf32>
    %96 = vector.shape_cast %95 : vector<16xf32> to vector<16x1xf32>
    %97 = vector.broadcast %96 : vector<16x1xf32> to vector<16x16xf32>
    %98 = arith.subf %94, %97 : vector<16x16xf32>
    %99 = math.exp %98 : vector<16x16xf32>
    %cst_45 = arith.constant dense<0.000000e+00> : vector<16xf32>
    %100 = vector.multi_reduction <add>, %99, %cst_45 [1] : vector<16x16xf32> to vector<16xf32>
    %101 = vector.shape_cast %100 : vector<16xf32> to vector<16x1xf32>
    %102 = arith.truncf %99 : vector<16x16xf32> to vector<16x16xbf16>
    %cst_46 = arith.constant dense<0.000000e+00> : vector<16x32xf32>
    %103 = tpu.matmul %102, %89, %cst_46 {dimension_numbers = #tpu.dot_dimension_numbers<[1], [0], [0], [1], [0, 0, 1, 1], [], []>} : vector<16x16xbf16>, vector<16x32xbf16>, vector<16x32xf32> -> vector<16x32xf32>
    %104 = tpu.reciprocal %101 {approx = true} : vector<16x1xf32> -> vector<16x1xf32>
    %105 = vector.broadcast %104 : vector<16x1xf32> to vector<16x32xf32>
    %106 = arith.mulf %103, %105 : vector<16x32xf32>
    %107 = arith.truncf %106 : vector<16x32xf32> to vector<16x32xbf16>
    %c0_47 = arith.constant 0 : index
    %c96_48 = arith.constant 96 : index
    %108 = vector.load %arg15[%c0_47, %c96_48] : memref<16x128xbf16, #tpu.memory_space<vmem>>, vector<16x32xbf16>
    tpu.vector_store %arg15[%c0_47, %c96_48], %107 {strides = array<i32>} : memref<16x128xbf16, #tpu.memory_space<vmem>>, vector<16x32xbf16>,
    %c0_49 = arith.constant 0 : index
    %c0_50 = arith.constant 0 : index
    %109 = vector.load %arg15[%c0_49, %c0_50] : memref<16x128xbf16, #tpu.memory_space<vmem>>, vector<16x128xbf16>
    %c0_51 = arith.constant 0 : index
    %c0_52 = arith.constant 0 : index
    %110 = vector.load %arg9[%c0_51, %c0_52] : memref<128x128xbf16, #tpu.memory_space<vmem>>, vector<128x128xbf16>
    %cst_53 = arith.constant dense<0.000000e+00> : vector<16x128xf32>
    %111 = tpu.matmul %109, %110, %cst_53 {dimension_numbers = #tpu.dot_dimension_numbers<[1], [0], [0], [1], [0, 0, 1, 1], [], []>} : vector<16x128xbf16>, vector<128x128xbf16>, vector<16x128xf32> -> vector<16x128xf32>
    %112 = arith.addf %1, %111 : vector<16x128xf32>
    %c0_54 = arith.constant 0 : index
    %c0_55 = arith.constant 0 : index
    %113 = vector.load %arg10[%c0_54, %c0_55] : memref<1x128xf32, #tpu.memory_space<vmem>>, vector<1x128xf32>
    %114 = vector.broadcast %113 : vector<1x128xf32> to vector<16x128xf32>
    %115 = arith.addf %112, %114 : vector<16x128xf32>
    %cst_56 = arith.constant dense<0.000000e+00> : vector<16xf32>
    %116 = vector.multi_reduction <add>, %115, %cst_56 [1] : vector<16x128xf32> to vector<16xf32>
    %117 = vector.shape_cast %116 : vector<16xf32> to vector<16x1xf32>
    %cst_57 = arith.constant 1.280000e+02 : f32
    %118 = vector.broadcast %cst_57 : f32 to vector<16x1xf32>
    %119 = arith.divf %117, %118 : vector<16x1xf32>
    %120 = vector.broadcast %119 : vector<16x1xf32> to vector<16x128xf32>
    %121 = arith.subf %115, %120 : vector<16x128xf32>
    %122 = vector.broadcast %119 : vector<16x1xf32> to vector<16x128xf32>
    %123 = arith.subf %115, %122 : vector<16x128xf32>
    %124 = arith.mulf %121, %123 : vector<16x128xf32>
    %cst_58 = arith.constant dense<0.000000e+00> : vector<16xf32>
    %125 = vector.multi_reduction <add>, %124, %cst_58 [1] : vector<16x128xf32> to vector<16xf32>
    %126 = vector.shape_cast %125 : vector<16xf32> to vector<16x1xf32>
    %cst_59 = arith.constant 1.280000e+02 : f32
    %127 = vector.broadcast %cst_59 : f32 to vector<16x1xf32>
    %128 = arith.divf %126, %127 : vector<16x1xf32>
    %129 = vector.broadcast %119 : vector<16x1xf32> to vector<16x128xf32>
    %130 = arith.subf %115, %129 : vector<16x128xf32>
    %cst_60 = arith.constant 9.99999974E-6 : f32
    %131 = vector.broadcast %cst_60 : f32 to vector<16x1xf32>
    %132 = arith.addf %128, %131 : vector<16x1xf32>
    %133 = math.rsqrt %132 : vector<16x1xf32>
    %134 = vector.broadcast %133 : vector<16x1xf32> to vector<16x128xf32>
    %135 = arith.mulf %130, %134 : vector<16x128xf32>
    %c0_61 = arith.constant 0 : index
    %c0_62 = arith.constant 0 : index
    %136 = vector.load %arg11[%c0_61, %c0_62] : memref<1x128xf32, #tpu.memory_space<vmem>>, vector<1x128xf32>
    %137 = vector.broadcast %136 : vector<1x128xf32> to vector<16x128xf32>
    %138 = arith.mulf %135, %137 : vector<16x128xf32>
    %c0_63 = arith.constant 0 : index
    %c0_64 = arith.constant 0 : index
    %139 = vector.load %arg12[%c0_63, %c0_64] : memref<1x128xf32, #tpu.memory_space<vmem>>, vector<1x128xf32>
    %140 = vector.broadcast %139 : vector<1x128xf32> to vector<16x128xf32>
    %141 = arith.addf %138, %140 : vector<16x128xf32>
    %c0_65 = arith.constant 0 : index
    %c0_66 = arith.constant 0 : index
    %c0_67 = arith.constant 0 : index
    %142 = vector.load %arg13[%c0_65, %c0_66, %c0_67] : memref<1x16x128xf32, #tpu.memory_space<vmem>>, vector<1x16x128xf32>
    %143 = vector.shape_cast %142 : vector<1x16x128xf32> to vector<16x128xf32>
    %144 = vector.shape_cast %141 : vector<16x128xf32> to vector<1x16x128xf32>
    tpu.vector_store %arg13[%c0_65, %c0_66, %c0_67], %144 {strides = array<i32>} : memref<1x16x128xf32, #tpu.memory_space<vmem>>, vector<1x16x128xf32>,
    return
  }
  func.func @transform_0(%arg0: i32, %arg1: i32) -> (i32, i32, i32) {
    %c0_i32 = arith.constant 0 : i32
    %c0_i32_0 = arith.constant 0 : i32
    return %arg0, %arg1, %c0_i32 : i32, i32, i32
  }
  func.func @transform_1(%arg0: i32, %arg1: i32) -> (i32, i32, i32) {
    %c0_i32 = arith.constant 0 : i32
    %c0_i32_0 = arith.constant 0 : i32
    %c0_i32_1 = arith.constant 0 : i32
    return %arg0, %c0_i32, %c0_i32_0 : i32, i32, i32
  }
  func.func @transform_2(%arg0: i32, %arg1: i32) -> (i32, i32, i32) {
    %c0_i32 = arith.constant 0 : i32
    %c0_i32_0 = arith.constant 0 : i32
    %c0_i32_1 = arith.constant 0 : i32
    return %arg0, %c0_i32, %c0_i32_0 : i32, i32, i32
  }
  func.func @transform_3(%arg0: i32, %arg1: i32) -> (i32, i32) {
    %c0_i32 = arith.constant 0 : i32
    %c0_i32_0 = arith.constant 0 : i32
    %c0_i32_1 = arith.constant 0 : i32
    return %c0_i32, %c0_i32_0 : i32, i32
  }
  func.func @transform_4(%arg0: i32, %arg1: i32) -> (i32, i32) {
    %c0_i32 = arith.constant 0 : i32
    %c0_i32_0 = arith.constant 0 : i32
    %c0_i32_1 = arith.constant 0 : i32
    return %c0_i32, %c0_i32_0 : i32, i32
  }
  func.func @transform_5(%arg0: i32, %arg1: i32) -> (i32, i32) {
    %c0_i32 = arith.constant 0 : i32
    %c0_i32_0 = arith.constant 0 : i32
    %c0_i32_1 = arith.constant 0 : i32
    return %c0_i32, %c0_i32_0 : i32, i32
  }
  func.func @transform_6(%arg0: i32, %arg1: i32) -> (i32, i32) {
    %c0_i32 = arith.constant 0 : i32
    %c0_i32_0 = arith.constant 0 : i32
    %c0_i32_1 = arith.constant 0 : i32
    return %c0_i32, %c0_i32_0 : i32, i32
  }
  func.func @transform_7(%arg0: i32, %arg1: i32) -> (i32, i32) {
    %c0_i32 = arith.constant 0 : i32
    %c0_i32_0 = arith.constant 0 : i32
    %c0_i32_1 = arith.constant 0 : i32
    return %c0_i32, %c0_i32_0 : i32, i32
  }
  func.func @transform_8(%arg0: i32, %arg1: i32) -> (i32, i32) {
    %c0_i32 = arith.constant 0 : i32
    %c0_i32_0 = arith.constant 0 : i32
    %c0_i32_1 = arith.constant 0 : i32
    return %c0_i32, %c0_i32_0 : i32, i32
  }
  func.func @transform_9(%arg0: i32, %arg1: i32) -> (i32, i32) {
    %c0_i32 = arith.constant 0 : i32
    %c0_i32_0 = arith.constant 0 : i32
    %c0_i32_1 = arith.constant 0 : i32
    return %c0_i32, %c0_i32_0 : i32, i32
  }
  func.func @transform_10(%arg0: i32, %arg1: i32) -> (i32, i32) {
    %c0_i32 = arith.constant 0 : i32
    %c0_i32_0 = arith.constant 0 : i32
    %c0_i32_1 = arith.constant 0 : i32
    return %c0_i32, %c0_i32_0 : i32, i32
  }
  func.func @transform_11(%arg0: i32, %arg1: i32) -> (i32, i32, i32) {
    %c0_i32 = arith.constant 0 : i32
    %c0_i32_0 = arith.constant 0 : i32
    return %arg0, %arg1, %c0_i32 : i32, i32, i32
  }
}

module attributes {stable_mosaic.version = 11 : i64} {
  func.func @ffn_ln_kernel(%arg0: i32, %arg1: i32, %arg2: memref<32x128xf32, #tpu.memory_space<vmem>>, %arg3: memref<128x512xbf16, #tpu.memory_space<vmem>>, %arg4: memref<1x512xf32, #tpu.memory_space<vmem>>, %arg5: memref<512x128xbf16, #tpu.memory_space<vmem>>, %arg6: memref<1x128xf32, #tpu.memory_space<vmem>>, %arg7: memref<1x128xf32, #tpu.memory_space<vmem>>, %arg8: memref<1x128xf32, #tpu.memory_space<vmem>>, %arg9: memref<32x128xf32, #tpu.memory_space<vmem>>, %arg10: memref<32x128xf32, #tpu.memory_space<vmem>>) attributes {dimension_semantics = [#tpu.dimension_semantics<parallel>, #tpu.dimension_semantics<arbitrary>], iteration_bounds = array<i64: 1, 1>, scalar_prefetch = 0 : i64, scratch_operands = 1 : i64, tpu.core_type = #tpu.core_type<tc>, window_params = [{transform_indices = @transform_0, window_bounds = array<i64: 32, 128>}, {transform_indices = @transform_1, window_bounds = array<i64: 128, 512>}, {transform_indices = @transform_2, window_bounds = array<i64: 1, 512>}, {transform_indices = @transform_3, window_bounds = array<i64: 512, 128>}, {pipeline_mode = #tpu.pipeline_mode<synchronous>, transform_indices = @transform_4, window_bounds = array<i64: 1, 128>}, {pipeline_mode = #tpu.pipeline_mode<synchronous>, transform_indices = @transform_5, window_bounds = array<i64: 1, 128>}, {pipeline_mode = #tpu.pipeline_mode<synchronous>, transform_indices = @transform_6, window_bounds = array<i64: 1, 128>}, {transform_indices = @transform_7, window_bounds = array<i64: 32, 128>}]} {
    %c0_i32 = arith.constant 0 : i32
    %0 = arith.cmpi eq, %arg1, %c0_i32 : i32
    %1 = arith.extui %0 : i1 to i32
    %c0_i32_0 = arith.constant 0 : i32
    %2 = arith.cmpi ne, %1, %c0_i32_0 : i32
    scf.if %2 {
      %cst_16 = arith.constant 0.000000e+00 : f32
      %21 = vector.broadcast %cst_16 : f32 to vector<32x128xf32>
      %c0_17 = arith.constant 0 : index
      %c0_18 = arith.constant 0 : index
      %22 = vector.load %arg10[%c0_17, %c0_18] : memref<32x128xf32, #tpu.memory_space<vmem>>, vector<32x128xf32>
      tpu.vector_store %arg10[%c0_17, %c0_18], %21 {strides = array<i32>} : memref<32x128xf32, #tpu.memory_space<vmem>>, vector<32x128xf32>,
    } else {
    }
    %c0 = arith.constant 0 : index
    %c0_1 = arith.constant 0 : index
    %3 = vector.load %arg2[%c0, %c0_1] : memref<32x128xf32, #tpu.memory_space<vmem>>, vector<32x128xf32>
    %4 = arith.truncf %3 : vector<32x128xf32> to vector<32x128xbf16>
    %c0_2 = arith.constant 0 : index
    %c0_3 = arith.constant 0 : index
    %5 = vector.load %arg3[%c0_2, %c0_3] : memref<128x512xbf16, #tpu.memory_space<vmem>>, vector<128x512xbf16>
    %cst = arith.constant dense<0.000000e+00> : vector<32x512xf32>
    %6 = tpu.matmul %4, %5, %cst {dimension_numbers = #tpu.dot_dimension_numbers<[1], [0], [0], [1], [0, 0, 1, 1], [], []>} : vector<32x128xbf16>, vector<128x512xbf16>, vector<32x512xf32> -> vector<32x512xf32>
    %c0_4 = arith.constant 0 : index
    %c0_5 = arith.constant 0 : index
    %7 = vector.load %arg4[%c0_4, %c0_5] : memref<1x512xf32, #tpu.memory_space<vmem>>, vector<1x512xf32>
    %8 = vector.broadcast %7 : vector<1x512xf32> to vector<32x512xf32>
    %9 = arith.addf %6, %8 : vector<32x512xf32>
    %cst_6 = arith.constant 0.000000e+00 : f32
    %10 = vector.broadcast %cst_6 : f32 to vector<32x512xf32>
    %11 = arith.maximumf %9, %10 : vector<32x512xf32>
    %c0_7 = arith.constant 0 : index
    %c0_8 = arith.constant 0 : index
    %12 = vector.load %arg10[%c0_7, %c0_8] : memref<32x128xf32, #tpu.memory_space<vmem>>, vector<32x128xf32>
    %13 = arith.truncf %11 : vector<32x512xf32> to vector<32x512xbf16>
    %c0_9 = arith.constant 0 : index
    %c0_10 = arith.constant 0 : index
    %14 = vector.load %arg5[%c0_9, %c0_10] : memref<512x128xbf16, #tpu.memory_space<vmem>>, vector<512x128xbf16>
    %cst_11 = arith.constant dense<0.000000e+00> : vector<32x128xf32>
    %15 = tpu.matmul %13, %14, %cst_11 {dimension_numbers = #tpu.dot_dimension_numbers<[1], [0], [0], [1], [0, 0, 1, 1], [], []>} : vector<32x512xbf16>, vector<512x128xbf16>, vector<32x128xf32> -> vector<32x128xf32>
    %16 = arith.addf %12, %15 : vector<32x128xf32>
    %c0_12 = arith.constant 0 : index
    %c0_13 = arith.constant 0 : index
    %17 = vector.load %arg10[%c0_12, %c0_13] : memref<32x128xf32, #tpu.memory_space<vmem>>, vector<32x128xf32>
    tpu.vector_store %arg10[%c0_12, %c0_13], %16 {strides = array<i32>} : memref<32x128xf32, #tpu.memory_space<vmem>>, vector<32x128xf32>,
    %c0_i32_14 = arith.constant 0 : i32
    %18 = arith.cmpi eq, %arg1, %c0_i32_14 : i32
    %19 = arith.extui %18 : i1 to i32
    %c0_i32_15 = arith.constant 0 : i32
    %20 = arith.cmpi ne, %19, %c0_i32_15 : i32
    scf.if %20 {
      %c0_16 = arith.constant 0 : index
      %c0_17 = arith.constant 0 : index
      %21 = vector.load %arg10[%c0_16, %c0_17] : memref<32x128xf32, #tpu.memory_space<vmem>>, vector<32x128xf32>
      %22 = arith.addf %3, %21 : vector<32x128xf32>
      %c0_18 = arith.constant 0 : index
      %c0_19 = arith.constant 0 : index
      %23 = vector.load %arg6[%c0_18, %c0_19] : memref<1x128xf32, #tpu.memory_space<vmem>>, vector<1x128xf32>
      %24 = vector.broadcast %23 : vector<1x128xf32> to vector<32x128xf32>
      %25 = arith.addf %22, %24 : vector<32x128xf32>
      %cst_20 = arith.constant dense<0.000000e+00> : vector<32xf32>
      %26 = vector.multi_reduction <add>, %25, %cst_20 [1] : vector<32x128xf32> to vector<32xf32>
      %27 = vector.shape_cast %26 : vector<32xf32> to vector<32x1xf32>
      %cst_21 = arith.constant 1.280000e+02 : f32
      %28 = vector.broadcast %cst_21 : f32 to vector<32x1xf32>
      %29 = arith.divf %27, %28 : vector<32x1xf32>
      %30 = vector.broadcast %29 : vector<32x1xf32> to vector<32x128xf32>
      %31 = arith.subf %25, %30 : vector<32x128xf32>
      %32 = vector.broadcast %29 : vector<32x1xf32> to vector<32x128xf32>
      %33 = arith.subf %25, %32 : vector<32x128xf32>
      %34 = arith.mulf %31, %33 : vector<32x128xf32>
      %cst_22 = arith.constant dense<0.000000e+00> : vector<32xf32>
      %35 = vector.multi_reduction <add>, %34, %cst_22 [1] : vector<32x128xf32> to vector<32xf32>
      %36 = vector.shape_cast %35 : vector<32xf32> to vector<32x1xf32>
      %cst_23 = arith.constant 1.280000e+02 : f32
      %37 = vector.broadcast %cst_23 : f32 to vector<32x1xf32>
      %38 = arith.divf %36, %37 : vector<32x1xf32>
      %39 = vector.broadcast %29 : vector<32x1xf32> to vector<32x128xf32>
      %40 = arith.subf %25, %39 : vector<32x128xf32>
      %cst_24 = arith.constant 9.99999974E-6 : f32
      %41 = vector.broadcast %cst_24 : f32 to vector<32x1xf32>
      %42 = arith.addf %38, %41 : vector<32x1xf32>
      %43 = math.rsqrt %42 : vector<32x1xf32>
      %44 = vector.broadcast %43 : vector<32x1xf32> to vector<32x128xf32>
      %45 = arith.mulf %40, %44 : vector<32x128xf32>
      %c0_25 = arith.constant 0 : index
      %c0_26 = arith.constant 0 : index
      %46 = vector.load %arg7[%c0_25, %c0_26] : memref<1x128xf32, #tpu.memory_space<vmem>>, vector<1x128xf32>
      %47 = vector.broadcast %46 : vector<1x128xf32> to vector<32x128xf32>
      %48 = arith.mulf %45, %47 : vector<32x128xf32>
      %c0_27 = arith.constant 0 : index
      %c0_28 = arith.constant 0 : index
      %49 = vector.load %arg8[%c0_27, %c0_28] : memref<1x128xf32, #tpu.memory_space<vmem>>, vector<1x128xf32>
      %50 = vector.broadcast %49 : vector<1x128xf32> to vector<32x128xf32>
      %51 = arith.addf %48, %50 : vector<32x128xf32>
      %c0_29 = arith.constant 0 : index
      %c0_30 = arith.constant 0 : index
      %52 = vector.load %arg9[%c0_29, %c0_30] : memref<32x128xf32, #tpu.memory_space<vmem>>, vector<32x128xf32>
      tpu.vector_store %arg9[%c0_29, %c0_30], %51 {strides = array<i32>} : memref<32x128xf32, #tpu.memory_space<vmem>>, vector<32x128xf32>,
    } else {
    }
    return
  }
  func.func @transform_0(%arg0: i32, %arg1: i32) -> (i32, i32) {
    %c0_i32 = arith.constant 0 : i32
    %c0_i32_0 = arith.constant 0 : i32
    return %arg0, %c0_i32 : i32, i32
  }
  func.func @transform_1(%arg0: i32, %arg1: i32) -> (i32, i32) {
    %c0_i32 = arith.constant 0 : i32
    %c0_i32_0 = arith.constant 0 : i32
    return %c0_i32, %arg1 : i32, i32
  }
  func.func @transform_2(%arg0: i32, %arg1: i32) -> (i32, i32) {
    %c0_i32 = arith.constant 0 : i32
    %c0_i32_0 = arith.constant 0 : i32
    return %c0_i32, %arg1 : i32, i32
  }
  func.func @transform_3(%arg0: i32, %arg1: i32) -> (i32, i32) {
    %c0_i32 = arith.constant 0 : i32
    %c0_i32_0 = arith.constant 0 : i32
    return %arg1, %c0_i32 : i32, i32
  }
  func.func @transform_4(%arg0: i32, %arg1: i32) -> (i32, i32) {
    %c0_i32 = arith.constant 0 : i32
    %c0_i32_0 = arith.constant 0 : i32
    %c0_i32_1 = arith.constant 0 : i32
    return %c0_i32, %c0_i32_0 : i32, i32
  }
  func.func @transform_5(%arg0: i32, %arg1: i32) -> (i32, i32) {
    %c0_i32 = arith.constant 0 : i32
    %c0_i32_0 = arith.constant 0 : i32
    %c0_i32_1 = arith.constant 0 : i32
    return %c0_i32, %c0_i32_0 : i32, i32
  }
  func.func @transform_6(%arg0: i32, %arg1: i32) -> (i32, i32) {
    %c0_i32 = arith.constant 0 : i32
    %c0_i32_0 = arith.constant 0 : i32
    %c0_i32_1 = arith.constant 0 : i32
    return %c0_i32, %c0_i32_0 : i32, i32
  }
  func.func @transform_7(%arg0: i32, %arg1: i32) -> (i32, i32) {
    %c0_i32 = arith.constant 0 : i32
    %c0_i32_0 = arith.constant 0 : i32
    return %arg0, %c0_i32 : i32, i32
  }
}

module attributes {stable_mosaic.version = 11 : i64} {
  func.func @mha_ln_kernel(%arg0: i32, %arg1: i32, %arg2: memref<1x16x128xf32, #tpu.memory_space<vmem>>, %arg3: memref<1x16x128xf32, #tpu.memory_space<vmem>>, %arg4: memref<1x16x1xf32, #tpu.memory_space<vmem>>, %arg5: memref<128x128xbf16, #tpu.memory_space<vmem>>, %arg6: memref<1x128xf32, #tpu.memory_space<vmem>>, %arg7: memref<128x256xbf16, #tpu.memory_space<vmem>>, %arg8: memref<1x256xf32, #tpu.memory_space<vmem>>, %arg9: memref<128x128xbf16, #tpu.memory_space<vmem>>, %arg10: memref<1x128xf32, #tpu.memory_space<vmem>>, %arg11: memref<1x128xf32, #tpu.memory_space<vmem>>, %arg12: memref<1x128xf32, #tpu.memory_space<vmem>>, %arg13: memref<1x16x128xf32, #tpu.memory_space<vmem>>, %arg14: memref<16x256xbf16, #tpu.memory_space<vmem>>, %arg15: memref<16x128xbf16, #tpu.memory_space<vmem>>) attributes {dimension_semantics = [#tpu.dimension_semantics<parallel>, #tpu.dimension_semantics<arbitrary>], iteration_bounds = array<i64: 2, 1>, scalar_prefetch = 0 : i64, scratch_operands = 2 : i64, tpu.core_type = #tpu.core_type<tc>, window_params = [{transform_indices = @transform_0, window_bounds = array<i64: 1, 16, 128>}, {transform_indices = @transform_1, window_bounds = array<i64: 1, 16, 128>}, {transform_indices = @transform_2, window_bounds = array<i64: 1, 16, 1>}, {pipeline_mode = #tpu.pipeline_mode<synchronous>, transform_indices = @transform_3, window_bounds = array<i64: 128, 128>}, {pipeline_mode = #tpu.pipeline_mode<synchronous>, transform_indices = @transform_4, window_bounds = array<i64: 1, 128>}, {pipeline_mode = #tpu.pipeline_mode<synchronous>, transform_indices = @transform_5, window_bounds = array<i64: 128, 256>}, {pipeline_mode = #tpu.pipeline_mode<synchronous>, transform_indices = @transform_6, window_bounds = array<i64: 1, 256>}, {pipeline_mode = #tpu.pipeline_mode<synchronous>, transform_indices = @transform_7, window_bounds = array<i64: 128, 128>}, {pipeline_mode = #tpu.pipeline_mode<synchronous>, transform_indices = @transform_8, window_bounds = array<i64: 1, 128>}, {pipeline_mode = #tpu.pipeline_mode<synchronous>, transform_indices = @transform_9, window_bounds = array<i64: 1, 128>}, {pipeline_mode = #tpu.pipeline_mode<synchronous>, transform_indices = @transform_10, window_bounds = array<i64: 1, 128>}, {transform_indices = @transform_11, window_bounds = array<i64: 1, 16, 128>}]} {
    %c0 = arith.constant 0 : index
    %c0_0 = arith.constant 0 : index
    %c0_1 = arith.constant 0 : index
    %0 = vector.load %arg2[%c0, %c0_0, %c0_1] : memref<1x16x128xf32, #tpu.memory_space<vmem>>, vector<1x16x128xf32>
    %1 = vector.shape_cast %0 : vector<1x16x128xf32> to vector<16x128xf32>
    %c0_i32 = arith.constant 0 : i32
    %2 = arith.cmpi eq, %arg1, %c0_i32 : i32
    %3 = arith.extui %2 : i1 to i32
    %c0_i32_2 = arith.constant 0 : i32
    %4 = arith.cmpi ne, %3, %c0_i32_2 : i32
    scf.if %4 {
      %c0_68 = arith.constant 0 : index
      %c0_69 = arith.constant 0 : index
      %c0_70 = arith.constant 0 : index
      %145 = vector.load %arg3[%c0_68, %c0_69, %c0_70] : memref<1x16x128xf32, #tpu.memory_space<vmem>>, vector<1x16x128xf32>
      %146 = vector.shape_cast %145 : vector<1x16x128xf32> to vector<16x128xf32>
      %147 = arith.truncf %146 : vector<16x128xf32> to vector<16x128xbf16>
      %c0_71 = arith.constant 0 : index
      %c0_72 = arith.constant 0 : index
      %148 = vector.load %arg7[%c0_71, %c0_72] : memref<128x256xbf16, #tpu.memory_space<vmem>>, vector<128x256xbf16>
      %cst_73 = arith.constant dense<0.000000e+00> : vector<16x256xf32>
      %149 = tpu.matmul %147, %148, %cst_73 {dimension_numbers = #tpu.dot_dimension_numbers<[1], [0], [0], [1], [0, 0, 1, 1], [], []>} : vector<16x128xbf16>, vector<128x256xbf16>, vector<16x256xf32> -> vector<16x256xf32>
      %c0_74 = arith.constant 0 : index
      %c0_75 = arith.constant 0 : index
      %150 = vector.load %arg8[%c0_74, %c0_75] : memref<1x256xf32, #tpu.memory_space<vmem>>, vector<1x256xf32>
      %151 = vector.broadcast %150 : vector<1x256xf32> to vector<16x256xf32>
      %152 = arith.addf %149, %151 : vector<16x256xf32>
      %153 = arith.truncf %152 : vector<16x256xf32> to vector<16x256xbf16>
      %c0_76 = arith.constant 0 : index
      %c0_77 = arith.constant 0 : index
      %154 = vector.load %arg14[%c0_76, %c0_77] : memref<16x256xbf16, #tpu.memory_space<vmem>>, vector<16x256xbf16>
      tpu.vector_store %arg14[%c0_76, %c0_77], %153 {strides = array<i32>} : memref<16x256xbf16, #tpu.memory_space<vmem>>, vector<16x256xbf16>,
    } else {
    }
    %5 = arith.truncf %1 : vector<16x128xf32> to vector<16x128xbf16>
    %c0_3 = arith.constant 0 : index
    %c0_4 = arith.constant 0 : index
    %6 = vector.load %arg5[%c0_3, %c0_4] : memref<128x128xbf16, #tpu.memory_space<vmem>>, vector<128x128xbf16>
    %cst = arith.constant dense<0.000000e+00> : vector<16x128xf32>
    %7 = tpu.matmul %5, %6, %cst {dimension_numbers = #tpu.dot_dimension_numbers<[1], [0], [0], [1], [0, 0, 1, 1], [], []>} : vector<16x128xbf16>, vector<128x128xbf16>, vector<16x128xf32> -> vector<16x128xf32>
    %c0_5 = arith.constant 0 : index
    %c0_6 = arith.constant 0 : index
    %8 = vector.load %arg6[%c0_5, %c0_6] : memref<1x128xf32, #tpu.memory_space<vmem>>, vector<1x128xf32>
    %9 = vector.broadcast %8 : vector<1x128xf32> to vector<16x128xf32>
    %10 = arith.addf %7, %9 : vector<16x128xf32>
    %cst_7 = arith.constant 0.176776692 : f32
    %11 = vector.broadcast %cst_7 : f32 to vector<16x128xf32>
    %12 = arith.mulf %10, %11 : vector<16x128xf32>
    %c0_8 = arith.constant 0 : index
    %c0_9 = arith.constant 0 : index
    %c0_10 = arith.constant 0 : index
    %13 = vector.load %arg4[%c0_8, %c0_9, %c0_10] : memref<1x16x1xf32, #tpu.memory_space<vmem>>, vector<1x16x1xf32>
    %14 = vector.shape_cast %13 : vector<1x16x1xf32> to vector<16x1xf32>
    %cst_11 = arith.constant 0.000000e+00 : f32
    %15 = vector.broadcast %cst_11 : f32 to vector<16x1xf32>
    %16 = arith.cmpf one, %14, %15 : vector<16x1xf32>
    %17 = tpu.iota {dimensions = array<i32: 0>} : vector<16x16xi32>
    %c16_i32 = arith.constant 16 : i32
    %18 = arith.muli %arg1, %c16_i32 : i32
    %19 = vector.broadcast %18 : i32 to vector<16x16xi32>
    %20 = arith.addi %17, %19 : vector<16x16xi32>
    %21 = tpu.iota {dimensions = array<i32: 1>} : vector<16x16xi32>
    %22 = arith.cmpi sle, %21, %20 : vector<16x16xi32>
    %23 = vector.broadcast %16 : vector<16x1xi1> to vector<16x16xi1>
    %24 = arith.andi %23, %22 : vector<16x16xi1>
    %25 = vector.extract_strided_slice %12 {offsets = [0, 0], sizes = [16, 32], strides = [1, 1]} : vector<16x128xf32> to vector<16x32xf32>
    %26 = arith.truncf %25 : vector<16x32xf32> to vector<16x32xbf16>
    %c0_12 = arith.constant 0 : index
    %c0_13 = arith.constant 0 : index
    %27 = vector.load %arg14[%c0_12, %c0_13] : memref<16x256xbf16, #tpu.memory_space<vmem>>, vector<16x32xbf16>
    %c0_14 = arith.constant 0 : index
    %c128 = arith.constant 128 : index
    %28 = vector.load %arg14[%c0_14, %c128] : memref<16x256xbf16, #tpu.memory_space<vmem>>, vector<16x32xbf16>
    %cst_15 = arith.constant dense<0.000000e+00> : vector<16x16xf32>
    %29 = tpu.matmul %26, %27, %cst_15 {dimension_numbers = #tpu.dot_dimension_numbers<[1], [1], [0], [0], [0, 0, 1, 0], [], []>} : vector<16x32xbf16>, vector<16x32xbf16>, vector<16x16xf32> -> vector<16x16xf32>
    %cst_16 = arith.constant -1.000000e+09 : f32
    %30 = vector.broadcast %cst_16 : f32 to vector<16x16xf32>
    %31 = arith.select %24, %29, %30 : vector<16x16xi1>, vector<16x16xf32>
    %cst_17 = arith.constant dense<0xFF800000> : vector<16xf32>
    %32 = vector.multi_reduction <maximumf>, %31, %cst_17 [1] : vector<16x16xf32> to vector<16xf32>
    %33 = vector.shape_cast %32 : vector<16xf32> to vector<16x1xf32>
    %34 = vector.broadcast %33 : vector<16x1xf32> to vector<16x16xf32>
    %35 = arith.subf %31, %34 : vector<16x16xf32>
    %36 = math.exp %35 : vector<16x16xf32>
    %cst_18 = arith.constant dense<0.000000e+00> : vector<16xf32>
    %37 = vector.multi_reduction <add>, %36, %cst_18 [1] : vector<16x16xf32> to vector<16xf32>
    %38 = vector.shape_cast %37 : vector<16xf32> to vector<16x1xf32>
    %39 = arith.truncf %36 : vector<16x16xf32> to vector<16x16xbf16>
    %cst_19 = arith.constant dense<0.000000e+00> : vector<16x32xf32>
    %40 = tpu.matmul %39, %28, %cst_19 {dimension_numbers = #tpu.dot_dimension_numbers<[1], [0], [0], [1], [0, 0, 1, 1], [], []>} : vector<16x16xbf16>, vector<16x32xbf16>, vector<16x32xf32> -> vector<16x32xf32>
    %41 = tpu.reciprocal %38 {approx = true} : vector<16x1xf32> -> vector<16x1xf32>
    %42 = vector.broadcast %41 : vector<16x1xf32> to vector<16x32xf32>
    %43 = arith.mulf %40, %42 : vector<16x32xf32>
    %44 = arith.truncf %43 : vector<16x32xf32> to vector<16x32xbf16>
    %c0_20 = arith.constant 0 : index
    %c0_21 = arith.constant 0 : index
    %45 = vector.load %arg15[%c0_20, %c0_21] : memref<16x128xbf16, #tpu.memory_space<vmem>>, vector<16x32xbf16>
    tpu.vector_store %arg15[%c0_20, %c0_21], %44 {strides = array<i32>} : memref<16x128xbf16, #tpu.memory_space<vmem>>, vector<16x32xbf16>,
    %46 = vector.extract_strided_slice %12 {offsets = [0, 32], sizes = [16, 32], strides = [1, 1]} : vector<16x128xf32> to vector<16x32xf32>
    %47 = arith.truncf %46 : vector<16x32xf32> to vector<16x32xbf16>
    %c0_22 = arith.constant 0 : index
    %c32 = arith.constant 32 : index
    %48 = vector.load %arg14[%c0_22, %c32] : memref<16x256xbf16, #tpu.memory_space<vmem>>, vector<16x32xbf16>
    %c0_23 = arith.constant 0 : index
    %c160 = arith.constant 160 : index
    %49 = vector.load %arg14[%c0_23, %c160] : memref<16x256xbf16, #tpu.memory_space<vmem>>, vector<16x32xbf16>
    %cst_24 = arith.constant dense<0.000000e+00> : vector<16x16xf32>
    %50 = tpu.matmul %47, %48, %cst_24 {dimension_numbers = #tpu.dot_dimension_numbers<[1], [1], [0], [0], [0, 0, 1, 0], [], []>} : vector<16x32xbf16>, vector<16x32xbf16>, vector<16x16xf32> -> vector<16x16xf32>
    %cst_25 = arith.constant -1.000000e+09 : f32
    %51 = vector.broadcast %cst_25 : f32 to vector<16x16xf32>
    %52 = arith.select %24, %50, %51 : vector<16x16xi1>, vector<16x16xf32>
    %cst_26 = arith.constant dense<0xFF800000> : vector<16xf32>
    %53 = vector.multi_reduction <maximumf>, %52, %cst_26 [1] : vector<16x16xf32> to vector<16xf32>
    %54 = vector.shape_cast %53 : vector<16xf32> to vector<16x1xf32>
    %55 = vector.broadcast %54 : vector<16x1xf32> to vector<16x16xf32>
    %56 = arith.subf %52, %55 : vector<16x16xf32>
    %57 = math.exp %56 : vector<16x16xf32>
    %cst_27 = arith.constant dense<0.000000e+00> : vector<16xf32>
    %58 = vector.multi_reduction <add>, %57, %cst_27 [1] : vector<16x16xf32> to vector<16xf32>
    %59 = vector.shape_cast %58 : vector<16xf32> to vector<16x1xf32>
    %60 = arith.truncf %57 : vector<16x16xf32> to vector<16x16xbf16>
    %cst_28 = arith.constant dense<0.000000e+00> : vector<16x32xf32>
    %61 = tpu.matmul %60, %49, %cst_28 {dimension_numbers = #tpu.dot_dimension_numbers<[1], [0], [0], [1], [0, 0, 1, 1], [], []>} : vector<16x16xbf16>, vector<16x32xbf16>, vector<16x32xf32> -> vector<16x32xf32>
    %62 = tpu.reciprocal %59 {approx = true} : vector<16x1xf32> -> vector<16x1xf32>
    %63 = vector.broadcast %62 : vector<16x1xf32> to vector<16x32xf32>
    %64 = arith.mulf %61, %63 : vector<16x32xf32>
    %65 = arith.truncf %64 : vector<16x32xf32> to vector<16x32xbf16>
    %c0_29 = arith.constant 0 : index
    %c32_30 = arith.constant 32 : index
    %66 = vector.load %arg15[%c0_29, %c32_30] : memref<16x128xbf16, #tpu.memory_space<vmem>>, vector<16x32xbf16>
    tpu.vector_store %arg15[%c0_29, %c32_30], %65 {strides = array<i32>} : memref<16x128xbf16, #tpu.memory_space<vmem>>, vector<16x32xbf16>,
    %67 = vector.extract_strided_slice %12 {offsets = [0, 64], sizes = [16, 32], strides = [1, 1]} : vector<16x128xf32> to vector<16x32xf32>
    %68 = arith.truncf %67 : vector<16x32xf32> to vector<16x32xbf16>
    %c0_31 = arith.constant 0 : index
    %c64 = arith.constant 64 : index
    %69 = vector.load %arg14[%c0_31, %c64] : memref<16x256xbf16, #tpu.memory_space<vmem>>, vector<16x32xbf16>
    %c0_32 = arith.constant 0 : index
    %c192 = arith.constant 192 : index
    %70 = vector.load %arg14[%c0_32, %c192] : memref<16x256xbf16, #tpu.memory_space<vmem>>, vector<16x32xbf16>
    %cst_33 = arith.constant dense<0.000000e+00> : vector<16x16xf32>
    %71 = tpu.matmul %68, %69, %cst_33 {dimension_numbers = #tpu.dot_dimension_numbers<[1], [1], [0], [0], [0, 0, 1, 0], [], []>} : vector<16x32xbf16>, vector<16x32xbf16>, vector<16x16xf32> -> vector<16x16xf32>
    %cst_34 = arith.constant -1.000000e+09 : f32
    %72 = vector.broadcast %cst_34 : f32 to vector<16x16xf32>
    %73 = arith.select %24, %71, %72 : vector<16x16xi1>, vector<16x16xf32>
    %cst_35 = arith.constant dense<0xFF800000> : vector<16xf32>
    %74 = vector.multi_reduction <maximumf>, %73, %cst_35 [1] : vector<16x16xf32> to vector<16xf32>
    %75 = vector.shape_cast %74 : vector<16xf32> to vector<16x1xf32>
    %76 = vector.broadcast %75 : vector<16x1xf32> to vector<16x16xf32>
    %77 = arith.subf %73, %76 : vector<16x16xf32>
    %78 = math.exp %77 : vector<16x16xf32>
    %cst_36 = arith.constant dense<0.000000e+00> : vector<16xf32>
    %79 = vector.multi_reduction <add>, %78, %cst_36 [1] : vector<16x16xf32> to vector<16xf32>
    %80 = vector.shape_cast %79 : vector<16xf32> to vector<16x1xf32>
    %81 = arith.truncf %78 : vector<16x16xf32> to vector<16x16xbf16>
    %cst_37 = arith.constant dense<0.000000e+00> : vector<16x32xf32>
    %82 = tpu.matmul %81, %70, %cst_37 {dimension_numbers = #tpu.dot_dimension_numbers<[1], [0], [0], [1], [0, 0, 1, 1], [], []>} : vector<16x16xbf16>, vector<16x32xbf16>, vector<16x32xf32> -> vector<16x32xf32>
    %83 = tpu.reciprocal %80 {approx = true} : vector<16x1xf32> -> vector<16x1xf32>
    %84 = vector.broadcast %83 : vector<16x1xf32> to vector<16x32xf32>
    %85 = arith.mulf %82, %84 : vector<16x32xf32>
    %86 = arith.truncf %85 : vector<16x32xf32> to vector<16x32xbf16>
    %c0_38 = arith.constant 0 : index
    %c64_39 = arith.constant 64 : index
    %87 = vector.load %arg15[%c0_38, %c64_39] : memref<16x128xbf16, #tpu.memory_space<vmem>>, vector<16x32xbf16>
    tpu.vector_store %arg15[%c0_38, %c64_39], %86 {strides = array<i32>} : memref<16x128xbf16, #tpu.memory_space<vmem>>, vector<16x32xbf16>,
    %88 = vector.extract_strided_slice %12 {offsets = [0, 96], sizes = [16, 32], strides = [1, 1]} : vector<16x128xf32> to vector<16x32xf32>
    %89 = arith.truncf %88 : vector<16x32xf32> to vector<16x32xbf16>
    %c0_40 = arith.constant 0 : index
    %c96 = arith.constant 96 : index
    %90 = vector.load %arg14[%c0_40, %c96] : memref<16x256xbf16, #tpu.memory_space<vmem>>, vector<16x32xbf16>
    %c0_41 = arith.constant 0 : index
    %c224 = arith.constant 224 : index
    %91 = vector.load %arg14[%c0_41, %c224] : memref<16x256xbf16, #tpu.memory_space<vmem>>, vector<16x32xbf16>
    %cst_42 = arith.constant dense<0.000000e+00> : vector<16x16xf32>
    %92 = tpu.matmul %89, %90, %cst_42 {dimension_numbers = #tpu.dot_dimension_numbers<[1], [1], [0], [0], [0, 0, 1, 0], [], []>} : vector<16x32xbf16>, vector<16x32xbf16>, vector<16x16xf32> -> vector<16x16xf32>
    %cst_43 = arith.constant -1.000000e+09 : f32
    %93 = vector.broadcast %cst_43 : f32 to vector<16x16xf32>
    %94 = arith.select %24, %92, %93 : vector<16x16xi1>, vector<16x16xf32>
    %cst_44 = arith.constant dense<0xFF800000> : vector<16xf32>
    %95 = vector.multi_reduction <maximumf>, %94, %cst_44 [1] : vector<16x16xf32> to vector<16xf32>
    %96 = vector.shape_cast %95 : vector<16xf32> to vector<16x1xf32>
    %97 = vector.broadcast %96 : vector<16x1xf32> to vector<16x16xf32>
    %98 = arith.subf %94, %97 : vector<16x16xf32>
    %99 = math.exp %98 : vector<16x16xf32>
    %cst_45 = arith.constant dense<0.000000e+00> : vector<16xf32>
    %100 = vector.multi_reduction <add>, %99, %cst_45 [1] : vector<16x16xf32> to vector<16xf32>
    %101 = vector.shape_cast %100 : vector<16xf32> to vector<16x1xf32>
    %102 = arith.truncf %99 : vector<16x16xf32> to vector<16x16xbf16>
    %cst_46 = arith.constant dense<0.000000e+00> : vector<16x32xf32>
    %103 = tpu.matmul %102, %91, %cst_46 {dimension_numbers = #tpu.dot_dimension_numbers<[1], [0], [0], [1], [0, 0, 1, 1], [], []>} : vector<16x16xbf16>, vector<16x32xbf16>, vector<16x32xf32> -> vector<16x32xf32>
    %104 = tpu.reciprocal %101 {approx = true} : vector<16x1xf32> -> vector<16x1xf32>
    %105 = vector.broadcast %104 : vector<16x1xf32> to vector<16x32xf32>
    %106 = arith.mulf %103, %105 : vector<16x32xf32>
    %107 = arith.truncf %106 : vector<16x32xf32> to vector<16x32xbf16>
    %c0_47 = arith.constant 0 : index
    %c96_48 = arith.constant 96 : index
    %108 = vector.load %arg15[%c0_47, %c96_48] : memref<16x128xbf16, #tpu.memory_space<vmem>>, vector<16x32xbf16>
    tpu.vector_store %arg15[%c0_47, %c96_48], %107 {strides = array<i32>} : memref<16x128xbf16, #tpu.memory_space<vmem>>, vector<16x32xbf16>,
    %c0_49 = arith.constant 0 : index
    %c0_50 = arith.constant 0 : index
    %109 = vector.load %arg15[%c0_49, %c0_50] : memref<16x128xbf16, #tpu.memory_space<vmem>>, vector<16x128xbf16>
    %c0_51 = arith.constant 0 : index
    %c0_52 = arith.constant 0 : index
    %110 = vector.load %arg9[%c0_51, %c0_52] : memref<128x128xbf16, #tpu.memory_space<vmem>>, vector<128x128xbf16>
    %cst_53 = arith.constant dense<0.000000e+00> : vector<16x128xf32>
    %111 = tpu.matmul %109, %110, %cst_53 {dimension_numbers = #tpu.dot_dimension_numbers<[1], [0], [0], [1], [0, 0, 1, 1], [], []>} : vector<16x128xbf16>, vector<128x128xbf16>, vector<16x128xf32> -> vector<16x128xf32>
    %112 = arith.addf %1, %111 : vector<16x128xf32>
    %c0_54 = arith.constant 0 : index
    %c0_55 = arith.constant 0 : index
    %113 = vector.load %arg10[%c0_54, %c0_55] : memref<1x128xf32, #tpu.memory_space<vmem>>, vector<1x128xf32>
    %114 = vector.broadcast %113 : vector<1x128xf32> to vector<16x128xf32>
    %115 = arith.addf %112, %114 : vector<16x128xf32>
    %cst_56 = arith.constant dense<0.000000e+00> : vector<16xf32>
    %116 = vector.multi_reduction <add>, %115, %cst_56 [1] : vector<16x128xf32> to vector<16xf32>
    %117 = vector.shape_cast %116 : vector<16xf32> to vector<16x1xf32>
    %cst_57 = arith.constant 1.280000e+02 : f32
    %118 = vector.broadcast %cst_57 : f32 to vector<16x1xf32>
    %119 = arith.divf %117, %118 : vector<16x1xf32>
    %120 = vector.broadcast %119 : vector<16x1xf32> to vector<16x128xf32>
    %121 = arith.subf %115, %120 : vector<16x128xf32>
    %122 = vector.broadcast %119 : vector<16x1xf32> to vector<16x128xf32>
    %123 = arith.subf %115, %122 : vector<16x128xf32>
    %124 = arith.mulf %121, %123 : vector<16x128xf32>
    %cst_58 = arith.constant dense<0.000000e+00> : vector<16xf32>
    %125 = vector.multi_reduction <add>, %124, %cst_58 [1] : vector<16x128xf32> to vector<16xf32>
    %126 = vector.shape_cast %125 : vector<16xf32> to vector<16x1xf32>
    %cst_59 = arith.constant 1.280000e+02 : f32
    %127 = vector.broadcast %cst_59 : f32 to vector<16x1xf32>
    %128 = arith.divf %126, %127 : vector<16x1xf32>
    %129 = vector.broadcast %119 : vector<16x1xf32> to vector<16x128xf32>
    %130 = arith.subf %115, %129 : vector<16x128xf32>
    %cst_60 = arith.constant 9.99999974E-6 : f32
    %131 = vector.broadcast %cst_60 : f32 to vector<16x1xf32>
    %132 = arith.addf %128, %131 : vector<16x1xf32>
    %133 = math.rsqrt %132 : vector<16x1xf32>
    %134 = vector.broadcast %133 : vector<16x1xf32> to vector<16x128xf32>
    %135 = arith.mulf %130, %134 : vector<16x128xf32>
    %c0_61 = arith.constant 0 : index
    %c0_62 = arith.constant 0 : index
    %136 = vector.load %arg11[%c0_61, %c0_62] : memref<1x128xf32, #tpu.memory_space<vmem>>, vector<1x128xf32>
    %137 = vector.broadcast %136 : vector<1x128xf32> to vector<16x128xf32>
    %138 = arith.mulf %135, %137 : vector<16x128xf32>
    %c0_63 = arith.constant 0 : index
    %c0_64 = arith.constant 0 : index
    %139 = vector.load %arg12[%c0_63, %c0_64] : memref<1x128xf32, #tpu.memory_space<vmem>>, vector<1x128xf32>
    %140 = vector.broadcast %139 : vector<1x128xf32> to vector<16x128xf32>
    %141 = arith.addf %138, %140 : vector<16x128xf32>
    %c0_65 = arith.constant 0 : index
    %c0_66 = arith.constant 0 : index
    %c0_67 = arith.constant 0 : index
    %142 = vector.load %arg13[%c0_65, %c0_66, %c0_67] : memref<1x16x128xf32, #tpu.memory_space<vmem>>, vector<1x16x128xf32>
    %143 = vector.shape_cast %142 : vector<1x16x128xf32> to vector<16x128xf32>
    %144 = vector.shape_cast %141 : vector<16x128xf32> to vector<1x16x128xf32>
    tpu.vector_store %arg13[%c0_65, %c0_66, %c0_67], %144 {strides = array<i32>} : memref<1x16x128xf32, #tpu.memory_space<vmem>>, vector<1x16x128xf32>,
    return
  }
  func.func @transform_0(%arg0: i32, %arg1: i32) -> (i32, i32, i32) {
    %c0_i32 = arith.constant 0 : i32
    %c0_i32_0 = arith.constant 0 : i32
    return %arg0, %arg1, %c0_i32 : i32, i32, i32
  }
  func.func @transform_1(%arg0: i32, %arg1: i32) -> (i32, i32, i32) {
    %c0_i32 = arith.constant 0 : i32
    %c0_i32_0 = arith.constant 0 : i32
    %c0_i32_1 = arith.constant 0 : i32
    return %arg0, %c0_i32, %c0_i32_0 : i32, i32, i32
  }
  func.func @transform_2(%arg0: i32, %arg1: i32) -> (i32, i32, i32) {
    %c0_i32 = arith.constant 0 : i32
    %c0_i32_0 = arith.constant 0 : i32
    return %arg0, %arg1, %c0_i32 : i32, i32, i32
  }
  func.func @transform_3(%arg0: i32, %arg1: i32) -> (i32, i32) {
    %c0_i32 = arith.constant 0 : i32
    %c0_i32_0 = arith.constant 0 : i32
    %c0_i32_1 = arith.constant 0 : i32
    return %c0_i32, %c0_i32_0 : i32, i32
  }
  func.func @transform_4(%arg0: i32, %arg1: i32) -> (i32, i32) {
    %c0_i32 = arith.constant 0 : i32
    %c0_i32_0 = arith.constant 0 : i32
    %c0_i32_1 = arith.constant 0 : i32
    return %c0_i32, %c0_i32_0 : i32, i32
  }
  func.func @transform_5(%arg0: i32, %arg1: i32) -> (i32, i32) {
    %c0_i32 = arith.constant 0 : i32
    %c0_i32_0 = arith.constant 0 : i32
    %c0_i32_1 = arith.constant 0 : i32
    return %c0_i32, %c0_i32_0 : i32, i32
  }
  func.func @transform_6(%arg0: i32, %arg1: i32) -> (i32, i32) {
    %c0_i32 = arith.constant 0 : i32
    %c0_i32_0 = arith.constant 0 : i32
    %c0_i32_1 = arith.constant 0 : i32
    return %c0_i32, %c0_i32_0 : i32, i32
  }
  func.func @transform_7(%arg0: i32, %arg1: i32) -> (i32, i32) {
    %c0_i32 = arith.constant 0 : i32
    %c0_i32_0 = arith.constant 0 : i32
    %c0_i32_1 = arith.constant 0 : i32
    return %c0_i32, %c0_i32_0 : i32, i32
  }
  func.func @transform_8(%arg0: i32, %arg1: i32) -> (i32, i32) {
    %c0_i32 = arith.constant 0 : i32
    %c0_i32_0 = arith.constant 0 : i32
    %c0_i32_1 = arith.constant 0 : i32
    return %c0_i32, %c0_i32_0 : i32, i32
  }
  func.func @transform_9(%arg0: i32, %arg1: i32) -> (i32, i32) {
    %c0_i32 = arith.constant 0 : i32
    %c0_i32_0 = arith.constant 0 : i32
    %c0_i32_1 = arith.constant 0 : i32
    return %c0_i32, %c0_i32_0 : i32, i32
  }
  func.func @transform_10(%arg0: i32, %arg1: i32) -> (i32, i32) {
    %c0_i32 = arith.constant 0 : i32
    %c0_i32_0 = arith.constant 0 : i32
    %c0_i32_1 = arith.constant 0 : i32
    return %c0_i32, %c0_i32_0 : i32, i32
  }
  func.func @transform_11(%arg0: i32, %arg1: i32) -> (i32, i32, i32) {
    %c0_i32 = arith.constant 0 : i32
    %c0_i32_0 = arith.constant 0 : i32
    return %arg0, %arg1, %c0_i32 : i32, i32, i32
  }
}

</mosaic_0001>

<llo_original>
// kernel: tpu_custom_call.1
$region0: #{tpu_custom_call.1}
  #allocation0 [shape = 'u32[]', space=smem, size = 0x4, offset = 0x4, fixed_abs, tag = 'smem constant byte address 0x4 - core index']
  #allocation1 [shape = 'u32[144,128]{1,0:T(1,128)}', space=vmem, size = 0x12000, scoped, tag = 'internal scratch']
  %s0 = inlined_call_operand.hbm [shape: f32[8,128], index: 0, kind: input, shape index: {}]
  %s1 = inlined_call_operand.hbm [shape: f32[8,128], index: 1, kind: output, shape index: {}]
  %s2 = sld [smem:[#allocation0]]
  $region41: #{tpu_custom_call.1} parent=0
    _
  %s4 = ssub.s32 1, %s2
  %s5 = scalar_select 0, %s4, %s2
  $region1: #{tpu_custom_call.1} parent=0
    #allocation2 [shape = 'u8[4096]{0}', space=vmem, size = 0x1000, scoped, tag = 'input window, operand 0, single buffered']
    #allocation3 [shape = 's32[2]{0}', space=sflag, size = 0x8, scoped, tag = 'scoped memory for tpu_custom_call.1']
    #allocation4 [shape = 's32[2]{0}', space=sflag, size = 0x8, scoped, tag = 'scoped memory for tpu_custom_call.1']
    #allocation5 [shape = 'u8[4096]{0}', space=vmem, size = 0x1000, scoped, tag = 'output window, operand 0, single buffered']
    %6 = vsyncpa [#allocation3], 0
    %7 = vsyncpa [#allocation4], 0
    loop: start=0, step=1, limit=4
    $region2: #{tpu_custom_call.1} parent=1 // loop_pre_header
      _
    $region3: #{tpu_custom_call.1} parent=1 // loop_header
      %s9 = sphi 0, %s13
      %p10 = scmp.ge.s32.totalorder %s9, 4
      %s17 = sphi 0, %s17
      %s19 = sphi 0, %s17
      %s20 = sphi 0, %s19
      %s34 = sphi 0, %s20
      %s38 = sphi 0, %s38
      %s40 = sphi 0, %s38
      %s41 = sphi 0, %s40
      %s55 = sphi 0, %s41
    $region4: #{tpu_custom_call.1} parent=1 // loop_header_branch
      %12 = sbr.rel (%p10) target = $region8
    $region5: #{tpu_custom_call.1} parent=1 // loop_body
      %s14 = ssub.s32 %s9, 1
      %s15 = ssub.s32 %s9, 2
      %s16 = sadd.s32 %s9, 1
      %s18 = sadd.s32 %s17, 1
      %p21 = scmp.eq.s32.totalorder %s9, 1
      %p22 = scmp.ne.s32.totalorder %s17, %s19
      %p23 = scmp.eq.s32.totalorder %s9, 0
      %p24 = por %p22, %p23
      %p25 = scmp.ne.s32.totalorder %s17, %s19
      %p26 = scmp.eq.s32.totalorder %s14, 1
      %p27 = por %p25, %p26
      %p28 = scmp.ne.s32.totalorder %s19, %s20
      %p29 = scmp.eq.s32.totalorder %s14, 0
      %p30 = por %p28, %p29
      %p31 = scmp.ne.s32.totalorder %s19, %s20
      %p32 = scmp.eq.s32.totalorder %s15, 1
      %p33 = por %p31, %p32
      %p35 = scmp.ne.s32.totalorder %s20, %s34
      %p36 = scmp.eq.s32.totalorder %s15, 0
      %p37 = por %p35, %p36
      %s39 = sadd.s32 %s38, 1
      %p42 = scmp.eq.s32.totalorder %s9, 1
      %p43 = scmp.ne.s32.totalorder %s38, %s40
      %p44 = scmp.eq.s32.totalorder %s9, 0
      %p45 = por %p43, %p44
      %p46 = scmp.ne.s32.totalorder %s38, %s40
      %p47 = scmp.eq.s32.totalorder %s14, 1
      %p48 = por %p46, %p47
      %p49 = scmp.ne.s32.totalorder %s40, %s41
      %p50 = scmp.eq.s32.totalorder %s14, 0
      %p51 = por %p49, %p50
      %p52 = scmp.ne.s32.totalorder %s40, %s41
      %p53 = scmp.eq.s32.totalorder %s15, 1
      %p54 = por %p52, %p53
      %p56 = scmp.ne.s32.totalorder %s41, %s55
      %p57 = scmp.eq.s32.totalorder %s15, 0
      %p58 = por %p56, %p57
      %p59 = scmp.le.s32.totalorder 1, %s9
      %p60 = scmp.lt.s32.totalorder %s9, 3
      %p61 = pnand %p59, %p60
      %p62 = pneg %p61
      // Predicated region
      $region9: #{tpu_custom_call.1} parent=5 // pred_check
        _
      $region10: #{tpu_custom_call.1} parent=5 // pred_check_branch
        %64 = sbr.rel (%p61) target = $region12
      $region11: #{tpu_custom_call.1} parent=5 // pred_region
        %s65 = ssub.s32 %s9, 1
        // Predicated region
        $region13: #{tpu_custom_call.1} parent=11 // pred_check
          %p66 = pneg %p30
        $region14: #{tpu_custom_call.1} parent=11 // pred_check_branch
          %68 = sbr.rel (%p66) target = $region16
        $region15: #{tpu_custom_call.1} parent=11 // pred_region
          %s70 = ssub.s32 128, 128
          %71 = vsyncadd [#allocation3], %s70
          %s73 = sshll.u32 [#allocation2], 4
          %s74 = int_to_ptr.vmem [resolvable:$true] %s73
          %76 = dma.hbm_to_vmem [thread:$0]  %s0, 128, %s74, [#allocation3]
        $region16: #{tpu_custom_call.1} parent=11 // pred_fallthru
          _
      $region12: #{tpu_custom_call.1} parent=5 // pred_fallthru
        _
      %p77 = scmp.lt.s32.totalorder %s9, 2
      // Predicated region
      $region17: #{tpu_custom_call.1} parent=5 // pred_check
        %p78 = pneg %p77
      $region18: #{tpu_custom_call.1} parent=5 // pred_check_branch
        %80 = sbr.rel (%p78) target = $region20
      $region19: #{tpu_custom_call.1} parent=5 // pred_region
        _
      $region20: #{tpu_custom_call.1} parent=5 // pred_fallthru
        _
      %p81 = scmp.le.s32.totalorder 1, %s9
      %p82 = scmp.lt.s32.totalorder %s9, 3
      %p83 = pnand %p81, %p82
      %p84 = pneg %p83
      // Predicated region
      $region21: #{tpu_custom_call.1} parent=5 // pred_check
        _
      $region22: #{tpu_custom_call.1} parent=5 // pred_check_branch
        %86 = sbr.rel (%p83) target = $region24
      $region23: #{tpu_custom_call.1} parent=5 // pred_region
        %s87 = ssub.s32 %s9, 1
        // Predicated region
        $region25: #{tpu_custom_call.1} parent=23 // pred_check
          %p88 = pneg %p30
        $region26: #{tpu_custom_call.1} parent=23 // pred_check_branch
          %90 = sbr.rel (%p88) target = $region28
        $region27: #{tpu_custom_call.1} parent=23 // pred_region
          %91 = dma.done [#allocation3], 128
        $region28: #{tpu_custom_call.1} parent=23 // pred_fallthru
          _
        %p92 = pneg %p30
        %p93 = pneg %p27
        %p94 = pneg %p51
        %p95 = pneg %p48
        %v96 = vld [vmem:[#allocation2] sm:$0xff]
        %v97 = vadd.f32 %v96, 1.0
        %98 = vst [vmem:[#allocation5] sm:$0xff] %v97
        // Predicated region
        $region29: #{tpu_custom_call.1} parent=23 // pred_check
          %p99 = pneg %p48
        $region30: #{tpu_custom_call.1} parent=23 // pred_check_branch
          %101 = sbr.rel (%p99) target = $region32
        $region31: #{tpu_custom_call.1} parent=23 // pred_region
          %s103 = ssub.s32 128, 128
          %104 = vsyncadd [#allocation4], %s103
          %s106 = sshll.u32 [#allocation5], 4
          %s107 = int_to_ptr.vmem [resolvable:$true] %s106
          %109 = dma.vmem_to_hbm [thread:$0]  %s107, 128, %s1, [#allocation4]
        $region32: #{tpu_custom_call.1} parent=23 // pred_fallthru
          _
        // Predicated region
        $region33: #{tpu_custom_call.1} parent=23 // pred_check
          %p110 = pneg %p48
        $region34: #{tpu_custom_call.1} parent=23 // pred_check_branch
          %112 = sbr.rel (%p110) target = $region36
        $region35: #{tpu_custom_call.1} parent=23 // pred_region
          %113 = dma.done [#allocation4], 128
        $region36: #{tpu_custom_call.1} parent=23 // pred_fallthru
          _
      $region24: #{tpu_custom_call.1} parent=5 // pred_fallthru
        _
      %p114 = scmp.le.s32.totalorder 2, %s9
      // Predicated region
      $region37: #{tpu_custom_call.1} parent=5 // pred_check
        %p115 = pneg %p114
      $region38: #{tpu_custom_call.1} parent=5 // pred_check_branch
        %117 = sbr.rel (%p115) target = $region40
      $region39: #{tpu_custom_call.1} parent=5 // pred_region
        %s118 = ssub.s32 %s9, 2
      $region40: #{tpu_custom_call.1} parent=5 // pred_fallthru
        _
    $region6: #{tpu_custom_call.1} parent=1 // loop_footer
      %s13 = sadd.s32 1, %s9
    $region7: #{tpu_custom_call.1} parent=1 // loop_footer_branch
      %8 = sbr.rel target = $region3
    $region8: #{tpu_custom_call.1} parent=1 // loop_exit
      _
    %119 = vsyncpa [#allocation3], 1
    %s120 = scalar_lea.sflag [#allocation3], 1
    %121 = vsyncpa %s120, 1
    %122 = vsyncpa [#allocation4], 1
    %s123 = scalar_lea.sflag [#allocation4], 1
    %124 = vsyncpa %s123, 1

// kernel: transformer_forward.21
$region0: #{transformer_forward.21}
  #allocation0 [shape = 'u32[]', space=smem, size = 0x4, offset = 0x4, fixed_abs, tag = 'smem constant byte address 0x4 - core index']
  #allocation1 [shape = 'u32[144,128]{1,0:T(1,128)}', space=vmem, size = 0x12000, scoped, tag = 'internal scratch']
  %s0 = inlined_call_operand.vmem [shape: f32[32,128], index: 0, kind: input, shape index: {}]
  %s1 = inlined_call_operand.vmem [shape: bf16[128,1024], index: 1, kind: input, shape index: {}]
  %s2 = inlined_call_operand.vmem [shape: f32[1,1024], index: 2, kind: input, shape index: {}]
  %s3 = inlined_call_operand.hbm [shape: f32[32,1024], index: 3, kind: output, shape index: {}]
  %s4 = sld [smem:[#allocation0]]
  $region68: #{transformer_forward.21} parent=0
    _
  %s6 = ssub.s32 1, %s4
  %s7 = scalar_select 0, %s6, %s4
  $region1: #{transformer_forward.21} parent=0
    #allocation2 [shape = 'u8[262144]{0}', space=vmem, size = 0x40000, scoped, tag = 'input window, operand 1']
    #allocation3 [shape = 'u8[131072]{0}', space=vmem, size = 0x20000, scoped, tag = 'output window, operand 0']
    #allocation4 [shape = 's32[2]{0}', space=sflag, size = 0x8, scoped, tag = 'scoped memory for transformer_forward.21']
    %8 = vsyncpa [#allocation4], 0
    %s9 = scalar_lea.sflag [#allocation4], 1
    %10 = vsyncpa %s9, 0
    loop: start=0, step=1, limit=4
    $region2: #{transformer_forward.21} parent=1 // loop_pre_header
      _
    $region3: #{transformer_forward.21} parent=1 // loop_header
      %s12 = sphi 0, %s16
      %p13 = scmp.ge.s32.totalorder %s12, 4
      %s19 = sphi 0, %s31
      %s20 = sphi 0, %s27
      %s21 = sphi 0, %s19
      %s22 = sphi 0, %s20
      %s23 = sphi 0, %s21
      %s24 = sphi 0, %s22
      %s34 = sphi 0, %s36
      %s37 = sphi 0, %s34
      %s38 = sphi 0, %s37
      %s54 = sphi 0, %s38
      %s60 = sphi 0, %s62
      %s63 = sphi 0, %s60
      %s64 = sphi 0, %s63
      %s80 = sphi 0, %s64
      %s86 = sphi 0, %s88
      %s89 = sphi 0, %s86
      %s90 = sphi 0, %s89
      %s106 = sphi 0, %s90
      %s114 = sphi 0, %s116
      %s117 = sphi 0, %s114
      %s118 = sphi 0, %s117
      %s134 = sphi 0, %s118
    $region4: #{transformer_forward.21} parent=1 // loop_header_branch
      %15 = sbr.rel (%p13) target = $region8
    $region5: #{transformer_forward.21} parent=1 // loop_body
      %s17 = ssub.s32 %s12, 1
      %s18 = ssub.s32 %s12, 2
      %s25 = sadd.s32 1, %s20
      %p26 = scmp.ge.s32.totalorder %s25, 2
      %s27 = scalar_select %p26, 0, %s25
      %s28 = sadd.s32 1, %s19
      %s29 = scalar_select %p26, %s28, %s19
      %p30 = scmp.ge.s32.totalorder %s29, 1
      %s31 = scalar_select %p30, 0, %s29
      %s32 = ssub.s32 %s19, %s31
      %p33 = scmp.eq.s32.totalorder %s32, 0
      %s35 = sadd.s32 %s34, 1
      %s36 = scalar_select %p33, %s34, %s35
      %p39 = pneg %p33
      %p40 = scmp.eq.s32.totalorder %s12, 1
      %p41 = por %p39, %p40
      %p42 = scmp.ne.s32.totalorder %s34, %s37
      %p43 = scmp.eq.s32.totalorder %s12, 0
      %p44 = por %p42, %p43
      %p45 = scmp.ne.s32.totalorder %s34, %s37
      %p46 = scmp.eq.s32.totalorder %s17, 1
      %p47 = por %p45, %p46
      %p48 = scmp.ne.s32.totalorder %s37, %s38
      %p49 = scmp.eq.s32.totalorder %s17, 0
      %p50 = por %p48, %p49
      %p51 = scmp.ne.s32.totalorder %s37, %s38
      %p52 = scmp.eq.s32.totalorder %s18, 1
      %p53 = por %p51, %p52
      %p55 = scmp.ne.s32.totalorder %s38, %s54
      %p56 = scmp.eq.s32.totalorder %s18, 0
      %p57 = por %p55, %p56
      %s58 = ssub.s32 %s20, %s27
      %p59 = scmp.eq.s32.totalorder %s58, 0
      %s61 = sadd.s32 %s60, 1
      %s62 = scalar_select %p59, %s60, %s61
      %p65 = pneg %p59
      %p66 = scmp.eq.s32.totalorder %s12, 1
      %p67 = por %p65, %p66
      %p68 = scmp.ne.s32.totalorder %s60, %s63
      %p69 = scmp.eq.s32.totalorder %s12, 0
      %p70 = por %p68, %p69
      %p71 = scmp.ne.s32.totalorder %s60, %s63
      %p72 = scmp.eq.s32.totalorder %s17, 1
      %p73 = por %p71, %p72
      %p74 = scmp.ne.s32.totalorder %s63, %s64
      %p75 = scmp.eq.s32.totalorder %s17, 0
      %p76 = por %p74, %p75
      %p77 = scmp.ne.s32.totalorder %s63, %s64
      %p78 = scmp.eq.s32.totalorder %s18, 1
      %p79 = por %p77, %p78
      %p81 = scmp.ne.s32.totalorder %s64, %s80
      %p82 = scmp.eq.s32.totalorder %s18, 0
      %p83 = por %p81, %p82
      %s84 = ssub.s32 %s20, %s27
      %p85 = scmp.eq.s32.totalorder %s84, 0
      %s87 = sadd.s32 %s86, 1
      %s88 = scalar_select %p85, %s86, %s87
      %p91 = pneg %p85
      %p92 = scmp.eq.s32.totalorder %s12, 1
      %p93 = por %p91, %p92
      %p94 = scmp.ne.s32.totalorder %s86, %s89
      %p95 = scmp.eq.s32.totalorder %s12, 0
      %p96 = por %p94, %p95
      %p97 = scmp.ne.s32.totalorder %s86, %s89
      %p98 = scmp.eq.s32.totalorder %s17, 1
      %p99 = por %p97, %p98
      %p100 = scmp.ne.s32.totalorder %s89, %s90
      %p101 = scmp.eq.s32.totalorder %s17, 0
      %p102 = por %p100, %p101
      %p103 = scmp.ne.s32.totalorder %s89, %s90
      %p104 = scmp.eq.s32.totalorder %s18, 1
      %p105 = por %p103, %p104
      %p107 = scmp.ne.s32.totalorder %s90, %s106
      %p108 = scmp.eq.s32.totalorder %s18, 0
      %p109 = por %p107, %p108
      %s110 = ssub.s32 %s19, %s31
      %s111 = ssub.s32 %s20, %s27
      %s112 = sor.u32 %s110, %s111
      %p113 = scmp.eq.s32.totalorder %s112, 0
      %s115 = sadd.s32 %s114, 1
      %s116 = scalar_select %p113, %s114, %s115
      %p119 = pneg %p113
      %p120 = scmp.eq.s32.totalorder %s12, 1
      %p121 = por %p119, %p120
      %p122 = scmp.ne.s32.totalorder %s114, %s117
      %p123 = scmp.eq.s32.totalorder %s12, 0
      %p124 = por %p122, %p123
      %p125 = scmp.ne.s32.totalorder %s114, %s117
      %p126 = scmp.eq.s32.totalorder %s17, 1
      %p127 = por %p125, %p126
      %p128 = scmp.ne.s32.totalorder %s117, %s118
      %p129 = scmp.eq.s32.totalorder %s17, 0
      %p130 = por %p128, %p129
      %p131 = scmp.ne.s32.totalorder %s117, %s118
      %p132 = scmp.eq.s32.totalorder %s18, 1
      %p133 = por %p131, %p132
      %p135 = scmp.ne.s32.totalorder %s118, %s134
      %p136 = scmp.eq.s32.totalorder %s18, 0
      %p137 = por %p135, %p136
      %p138 = scmp.le.s32.totalorder 1, %s12
      %p139 = scmp.lt.s32.totalorder %s12, 3
      %p140 = pnand %p138, %p139
      %p141 = pneg %p140
      // Predicated region
      $region9: #{transformer_forward.21} parent=5 // pred_check
        _
      $region10: #{transformer_forward.21} parent=5 // pred_check_branch
        %143 = sbr.rel (%p140) target = $region12
      $region11: #{transformer_forward.21} parent=5 // pred_region
        %s144 = ssub.s32 %s12, 1
        // Predicated region
        $region13: #{transformer_forward.21} parent=11 // pred_check
          %p145 = pneg %p50
        $region14: #{transformer_forward.21} parent=11 // pred_check_branch
          %147 = sbr.rel (%p145) target = $region16
        $region15: #{transformer_forward.21} parent=11 // pred_region
          %s148 = smul.u32 4, %s21
          %p149 = scmp.lt.s32.totalorder %s148, 3
          %s150 = scalar_select %p149, %s148, 3
          %s151 = smul.addr %s150, 8
          %s152 = scalar_lea.vmem %s0, %s151
          %s153 = smul.u32 4, %s21
        $region16: #{transformer_forward.21} parent=11 // pred_fallthru
          _
      $region12: #{transformer_forward.21} parent=5 // pred_fallthru
        _
      %p154 = scmp.lt.s32.totalorder %s12, 2
      // Predicated region
      $region17: #{transformer_forward.21} parent=5 // pred_check
        %p155 = pneg %p154
      $region18: #{transformer_forward.21} parent=5 // pred_check_branch
        %157 = sbr.rel (%p155) target = $region20
      $region19: #{transformer_forward.21} parent=5 // pred_region
        // Predicated region
        $region21: #{transformer_forward.21} parent=19 // pred_check
          %p158 = pneg %p70
        $region22: #{transformer_forward.21} parent=19 // pred_check_branch
          %160 = sbr.rel (%p158) target = $region24
        $region23: #{transformer_forward.21} parent=19 // pred_region
          %s161 = sand.u32 %s60, 1
          %s162 = sand.u32 %s60, 1
          %s163 = smul.addr %s162, 256
          %s164 = scalar_lea.vmem [#allocation2], %s163
          %s165 = smul.u32 4, %s20
          %s166 = smul.addr %s165, 4
          %s167 = scalar_lea.vmem %s1, %s166
          // Predicated region
          $region25: #{transformer_forward.21} parent=23 // pred_check
            _
          $region26: #{transformer_forward.21} parent=23 // pred_check_branch
            %169 = sbr.rel (0) target = $region28
          $region27: #{transformer_forward.21} parent=23 // pred_region
            // Predicated region
            $region29: #{transformer_forward.21} parent=27 // pred_check
              _
            $region30: #{transformer_forward.21} parent=27 // pred_check_branch
              %171 = sbr.rel (0) target = $region32
            $region31: #{transformer_forward.21} parent=27 // pred_region
              loop: start=0, step=1, limit=1
              $region33: #{transformer_forward.21} parent=31 // loop_pre_header
                _
              $region34: #{transformer_forward.21} parent=31 // loop_header
                %s173 = sphi 0, %s177
                %p174 = scmp.ge.s32.totalorder %s173, 1
                %s178 = sphi %s167, %s167
                %s179 = sphi %s164, %s164
              $region35: #{transformer_forward.21} parent=31 // loop_header_branch
                %176 = sbr.rel (%p174) target = $region39
              $region36: #{transformer_forward.21} parent=31 // loop_body
                %v180 = vld [vmem:[%s178] sm:$0xff]
                %181 = vst [vmem:[%s179] sm:$0xff] %v180
                %v182 = vld [vmem:[%s178 + $0x8] sm:$0xff]
                %183 = vst [vmem:[%s179 + $0x8] sm:$0xff] %v182
                %v184 = vld [vmem:[%s178 + $0x20] sm:$0xff]
                %185 = vst [vmem:[%s179 + $0x10] sm:$0xff] %v184
                %v186 = vld [vmem:[%s178 + $0x28] sm:$0xff]
                %187 = vst [vmem:[%s179 + $0x18] sm:$0xff] %v186
                %v188 = vld [vmem:[%s178 + $0x40] sm:$0xff]
                %189 = vst [vmem:[%s179 + $0x20] sm:$0xff] %v188
                %v190 = vld [vmem:[%s178 + $0x48] sm:$0xff]
                %191 = vst [vmem:[%s179 + $0x28] sm:$0xff] %v190
                %v192 = vld [vmem:[%s178 + $0x60] sm:$0xff]
                %193 = vst [vmem:[%s179 + $0x30] sm:$0xff] %v192
                %v194 = vld [vmem:[%s178 + $0x68] sm:$0xff]
                %195 = vst [vmem:[%s179 + $0x38] sm:$0xff] %v194
                %v196 = vld [vmem:[%s178 + $0x80] sm:$0xff]
                %197 = vst [vmem:[%s179 + $0x40] sm:$0xff] %v196
                %v198 = vld [vmem:[%s178 + $0x88] sm:$0xff]
                %199 = vst [vmem:[%s179 + $0x48] sm:$0xff] %v198
                %v200 = vld [vmem:[%s178 + $0xa0] sm:$0xff]
                %201 = vst [vmem:[%s179 + $0x50] sm:$0xff] %v200
                %v202 = vld [vmem:[%s178 + $0xa8] sm:$0xff]
                %203 = vst [vmem:[%s179 + $0x58] sm:$0xff] %v202
                %v204 = vld [vmem:[%s178 + $0xc0] sm:$0xff]
                %205 = vst [vmem:[%s179 + $0x60] sm:$0xff] %v204
                %v206 = vld [vmem:[%s178 + $0xc8] sm:$0xff]
                %207 = vst [vmem:[%s179 + $0x68] sm:$0xff] %v206
                %v208 = vld [vmem:[%s178 + $0xe0] sm:$0xff]
                %209 = vst [vmem:[%s179 + $0x70] sm:$0xff] %v208
                %v210 = vld [vmem:[%s178 + $0xe8] sm:$0xff]
                %211 = vst [vmem:[%s179 + $0x78] sm:$0xff] %v210
                %v212 = vld [vmem:[%s178 + $0x100] sm:$0xff]
                %213 = vst [vmem:[%s179 + $0x80] sm:$0xff] %v212
                %v214 = vld [vmem:[%s178 + $0x108] sm:$0xff]
                %215 = vst [vmem:[%s179 + $0x88] sm:$0xff] %v214
                %v216 = vld [vmem:[%s178 + $0x120] sm:$0xff]
                %217 = vst [vmem:[%s179 + $0x90] sm:$0xff] %v216
                %v218 = vld [vmem:[%s178 + $0x128] sm:$0xff]
                %219 = vst [vmem:[%s179 + $0x98] sm:$0xff] %v218
                %v220 = vld [vmem:[%s178 + $0x140] sm:$0xff]
                %221 = vst [vmem:[%s179 + $0xa0] sm:$0xff] %v220
                %v222 = vld [vmem:[%s178 + $0x148] sm:$0xff]
                %223 = vst [vmem:[%s179 + $0xa8] sm:$0xff] %v222
                %v224 = vld [vmem:[%s178 + $0x160] sm:$0xff]
                %225 = vst [vmem:[%s179 + $0xb0] sm:$0xff] %v224
                %v226 = vld [vmem:[%s178 + $0x168] sm:$0xff]
                %227 = vst [vmem:[%s179 + $0xb8] sm:$0xff] %v226
                %v228 = vld [vmem:[%s178 + $0x180] sm:$0xff]
                %229 = vst [vmem:[%s179 + $0xc0] sm:$0xff] %v228
                %v230 = vld [vmem:[%s178 + $0x188] sm:$0xff]
                %231 = vst [vmem:[%s179 + $0xc8] sm:$0xff] %v230
                %v232 = vld [vmem:[%s178 + $0x1a0] sm:$0xff]
                %233 = vst [vmem:[%s179 + $0xd0] sm:$0xff] %v232
                %v234 = vld [vmem:[%s178 + $0x1a8] sm:$0xff]
                %235 = vst [vmem:[%s179 + $0xd8] sm:$0xff] %v234
                %v236 = vld [vmem:[%s178 + $0x1c0] sm:$0xff]
                %237 = vst [vmem:[%s179 + $0xe0] sm:$0xff] %v236
                %v238 = vld [vmem:[%s178 + $0x1c8] sm:$0xff]
                %239 = vst [vmem:[%s179 + $0xe8] sm:$0xff] %v238
                %v240 = vld [vmem:[%s178 + $0x1e0] sm:$0xff]
                %241 = vst [vmem:[%s179 + $0xf0] sm:$0xff] %v240
                %v242 = vld [vmem:[%s178 + $0x1e8] sm:$0xff]
                %243 = vst [vmem:[%s179 + $0xf8] sm:$0xff] %v242
              $region37: #{transformer_forward.21} parent=31 // loop_footer
                %s177 = sadd.s32 1, %s173
              $region38: #{transformer_forward.21} parent=31 // loop_footer_branch
                %172 = sbr.rel target = $region34
              $region39: #{transformer_forward.21} parent=31 // loop_exit
                _
            $region32: #{transformer_forward.21} parent=27 // pred_fallthru
              _
            // Predicated region
            $region40: #{transformer_forward.21} parent=27 // pred_check
              _
            $region41: #{transformer_forward.21} parent=27 // pred_check_branch
              %245 = sbr.rel target = $region43
            $region42: #{transformer_forward.21} parent=27 // pred_region
              _
            $region43: #{transformer_forward.21} parent=27 // pred_fallthru
              _
          $region28: #{transformer_forward.21} parent=23 // pred_fallthru
            _
          %246 = vnop
        $region24: #{transformer_forward.21} parent=19 // pred_fallthru
          _
        // Predicated region
        $region44: #{transformer_forward.21} parent=19 // pred_check
          %p247 = pneg %p96
        $region45: #{transformer_forward.21} parent=19 // pred_check_branch
          %249 = sbr.rel (%p247) target = $region47
        $region46: #{transformer_forward.21} parent=19 // pred_region
          %s250 = smul.u32 4, %s20
          %p251 = scmp.lt.s32.totalorder %s250, 7
          %s252 = scalar_select %p251, %s250, 7
          %s253 = scalar_lea.vmem %s2, %s252
          %s254 = smul.u32 4, %s20
        $region47: #{transformer_forward.21} parent=19 // pred_fallthru
          _
      $region20: #{transformer_forward.21} parent=5 // pred_fallthru
        _
      %p255 = scmp.le.s32.totalorder 1, %s12
      %p256 = scmp.lt.s32.totalorder %s12, 3
      %p257 = pnand %p255, %p256
      %p258 = pneg %p257
      // Predicated region
      $region48: #{transformer_forward.21} parent=5 // pred_check
        _
      $region49: #{transformer_forward.21} parent=5 // pred_check_branch
        %260 = sbr.rel (%p257) target = $region51
      $region50: #{transformer_forward.21} parent=5 // pred_region
        %s261 = ssub.s32 %s12, 1
        %s262 = sand.u32 %s63, 1
        %s263 = sand.u32 %s63, 1
        %s264 = smul.addr %s263, 256
        %s265 = scalar_lea.vmem [#allocation2], %s264
        // Predicated region
        $region52: #{transformer_forward.21} parent=50 // pred_check
          %p266 = pneg %p76
        $region53: #{transformer_forward.21} parent=50 // pred_check_branch
          %268 = sbr.rel (%p266) target = $region55
        $region54: #{transformer_forward.21} parent=50 // pred_region
          _
        $region55: #{transformer_forward.21} parent=50 // pred_fallthru
          _
        %s269 = smul.u32 4, %s21
        %p270 = scmp.lt.s32.totalorder %s269, 3
        %s271 = scalar_select %p270, %s269, 3
        %s272 = smul.addr %s271, 8
        %s273 = scalar_lea.vmem %s0, %s272
        %p274 = pneg %p50
        %p275 = pneg %p47
        %s276 = sand.u32 %s63, 1
        %s277 = sand.u32 %s63, 1
        %s278 = smul.addr %s277, 256
        %s279 = scalar_lea.vmem [#allocation2], %s278
        %p280 = pneg %p76
        %p281 = pneg %p73
        %s282 = smul.u32 4, %s22
        %p283 = scmp.lt.s32.totalorder %s282, 7
        %s284 = scalar_select %p283, %s282, 7
        %s285 = scalar_lea.vmem %s2, %s284
        %p286 = pneg %p102
        %p287 = pneg %p99
        %p288 = pneg %p130
        %p289 = pneg %p127
        %s290 = sand.u32 %s117, 1
        %s291 = scalar_lea.sflag [#allocation4], %s290
        %s292 = sand.u32 %s117, 1
        %s293 = smul.addr %s292, 128
        %s294 = scalar_lea.vmem [#allocation3], %s293
        %s295 = smul.u32 4, %s21
        %p296 = scmp.lt.s32.totalorder %s295, 3
        %s297 = scalar_select %p296, %s295, 3
        %s298 = smul.addr %s297, 8
        %s299 = scalar_lea.vmem %s0, %s298
        %s300 = smul.u32 4, %s21
        %s301 = smul.u32 4, %s22
        %s302 = smul.u32 4, %s22
        %p303 = scmp.lt.s32.totalorder %s302, 7
        %s304 = scalar_select %p303, %s302, 7
        %s305 = scalar_lea.vmem %s2, %s304
        %s306 = smul.u32 4, %s22
        %s307 = smul.u32 4, %s21
        %s308 = smul.u32 4, %s22
        %v310 = vld [vmem:[%s299] sm:$0xff]
        %v311 = vld [vmem:[%s299 + $0x8] sm:$0xff]
        %v312 = vld [vmem:[%s299 + $0x10] sm:$0xff]
        %v313 = vld [vmem:[%s299 + $0x18] sm:$0xff]
        %v314 = vpack.c.bf16 %v311, %v310
        %v315 = vpack.c.bf16 %v313, %v312
        %v316 = vld [vmem:[%s265] sm:$0xff]
        %v317 = vld [vmem:[%s265 + $0x8] sm:$0xff]
        %v318 = vld [vmem:[%s265 + $0x10] sm:$0xff]
        %v319 = vld [vmem:[%s265 + $0x18] sm:$0xff]
        %v320 = vld [vmem:[%s265 + $0x20] sm:$0xff]
        %v321 = vld [vmem:[%s265 + $0x28] sm:$0xff]
        %v322 = vld [vmem:[%s265 + $0x30] sm:$0xff]
        %v323 = vld [vmem:[%s265 + $0x38] sm:$0xff]
        %v324 = vld [vmem:[%s265 + $0x40] sm:$0xff]
        %v325 = vld [vmem:[%s265 + $0x48] sm:$0xff]
        %v326 = vld [vmem:[%s265 + $0x50] sm:$0xff]
        %v327 = vld [vmem:[%s265 + $0x58] sm:$0xff]
        %v328 = vld [vmem:[%s265 + $0x60] sm:$0xff]
        %v329 = vld [vmem:[%s265 + $0x68] sm:$0xff]
        %v330 = vld [vmem:[%s265 + $0x70] sm:$0xff]
        %v331 = vld [vmem:[%s265 + $0x78] sm:$0xff]
        %v332 = vld [vmem:[%s265 + $0x80] sm:$0xff]
        %v333 = vld [vmem:[%s265 + $0x88] sm:$0xff]
        %v334 = vld [vmem:[%s265 + $0x90] sm:$0xff]
        %v335 = vld [vmem:[%s265 + $0x98] sm:$0xff]
        %v336 = vld [vmem:[%s265 + $0xa0] sm:$0xff]
        %v337 = vld [vmem:[%s265 + $0xa8] sm:$0xff]
        %v338 = vld [vmem:[%s265 + $0xb0] sm:$0xff]
        %v339 = vld [vmem:[%s265 + $0xb8] sm:$0xff]
        %v340 = vld [vmem:[%s265 + $0xc0] sm:$0xff]
        %v341 = vld [vmem:[%s265 + $0xc8] sm:$0xff]
        %v342 = vld [vmem:[%s265 + $0xd0] sm:$0xff]
        %v343 = vld [vmem:[%s265 + $0xd8] sm:$0xff]
        %v344 = vld [vmem:[%s265 + $0xe0] sm:$0xff]
        %v345 = vld [vmem:[%s265 + $0xe8] sm:$0xff]
        %v346 = vld [vmem:[%s265 + $0xf0] sm:$0xff]
        %v347 = vld [vmem:[%s265 + $0xf8] sm:$0xff]
        %v348 = vld [vmem:[%s305] sm:$0xf]
        %v350 = vlaneseq
        %v351 = vshrl.u32 %v350, 7
        %v352 = vsub.s32 0, %v351
        %v353 = vrot.slane %v348, %v352
        %v354 = vlaneseq
        %v355 = vshrl.u32 %v354, 7
        %v356 = vsub.s32 1, %v355
        %v357 = vrot.slane %v348, %v356
        %v358 = vlaneseq
        %v359 = vshrl.u32 %v358, 7
        %v360 = vsub.s32 2, %v359
        %v361 = vrot.slane %v348, %v360
        %v362 = vlaneseq
        %v363 = vshrl.u32 %v362, 7
        %v364 = vsub.s32 3, %v363
        %v365 = vrot.slane %v348, %v364
        %v402 = vunpack.c.l.b16 %v316
        %v403 = vunpack.c.h.b16 %v316
        %v404 = vunpack.c.l.b16 %v317
        %v405 = vunpack.c.h.b16 %v317
        %v406 = vunpack.c.l.b16 %v318
        %v407 = vunpack.c.h.b16 %v318
        %v408 = vunpack.c.l.b16 %v319
        %v409 = vunpack.c.h.b16 %v319
        %v410 = vunpack.c.l.b16 %v320
        %v411 = vunpack.c.h.b16 %v320
        %v412 = vunpack.c.l.b16 %v321
        %v413 = vunpack.c.h.b16 %v321
        %v414 = vunpack.c.l.b16 %v322
        %v415 = vunpack.c.h.b16 %v322
        %v416 = vunpack.c.l.b16 %v323
        %v417 = vunpack.c.h.b16 %v323
        %v418 = vunpack.c.l.b16 %v324
        %v419 = vunpack.c.h.b16 %v324
        %v420 = vunpack.c.l.b16 %v325
        %v421 = vunpack.c.h.b16 %v325
        %v422 = vunpack.c.l.b16 %v326
        %v423 = vunpack.c.h.b16 %v326
        %v424 = vunpack.c.l.b16 %v327
        %v425 = vunpack.c.h.b16 %v327
        %v426 = vunpack.c.l.b16 %v328
        %v427 = vunpack.c.h.b16 %v328
        %v428 = vunpack.c.l.b16 %v329
        %v429 = vunpack.c.h.b16 %v329
        %v430 = vunpack.c.l.b16 %v330
        %v431 = vunpack.c.h.b16 %v330
        %v432 = vunpack.c.l.b16 %v331
        %v433 = vunpack.c.h.b16 %v331
        %v434 = vunpack.c.l.b16 %v332
        %v435 = vunpack.c.h.b16 %v332
        %v436 = vunpack.c.l.b16 %v333
        %v437 = vunpack.c.h.b16 %v333
        %v438 = vunpack.c.l.b16 %v334
        %v439 = vunpack.c.h.b16 %v334
        %v440 = vunpack.c.l.b16 %v335
        %v441 = vunpack.c.h.b16 %v335
        %v442 = vunpack.c.l.b16 %v336
        %v443 = vunpack.c.h.b16 %v336
        %v444 = vunpack.c.l.b16 %v337
        %v445 = vunpack.c.h.b16 %v337
        %v446 = vunpack.c.l.b16 %v338
        %v447 = vunpack.c.h.b16 %v338
        %v448 = vunpack.c.l.b16 %v339
        %v449 = vunpack.c.h.b16 %v339
        %v450 = vunpack.c.l.b16 %v340
        %v451 = vunpack.c.h.b16 %v340
        %v452 = vunpack.c.l.b16 %v341
        %v453 = vunpack.c.h.b16 %v341
        %v454 = vunpack.c.l.b16 %v342
        %v455 = vunpack.c.h.b16 %v342
        %v456 = vunpack.c.l.b16 %v343
        %v457 = vunpack.c.h.b16 %v343
        %v458 = vunpack.c.l.b16 %v344
        %v459 = vunpack.c.h.b16 %v344
        %v460 = vunpack.c.l.b16 %v345
        %v461 = vunpack.c.h.b16 %v345
        %v462 = vunpack.c.l.b16 %v346
        %v463 = vunpack.c.h.b16 %v346
        %v464 = vunpack.c.l.b16 %v347
        %v465 = vunpack.c.h.b16 %v347
        %v466 = vpack.c.b16 %v406, %v402
        %v467 = vpack.c.b16 %v407, %v403
        %v468 = vpack.c.b16 %v408, %v404
        %v469 = vpack.c.b16 %v409, %v405
        %v470 = vpack.c.b16 %v414, %v410
        %v471 = vpack.c.b16 %v415, %v411
        %v472 = vpack.c.b16 %v416, %v412
        %v473 = vpack.c.b16 %v417, %v413
        %v474 = vpack.c.b16 %v422, %v418
        %v475 = vpack.c.b16 %v423, %v419
        %v476 = vpack.c.b16 %v424, %v420
        %v477 = vpack.c.b16 %v425, %v421
        %v478 = vpack.c.b16 %v430, %v426
        %v479 = vpack.c.b16 %v431, %v427
        %v480 = vpack.c.b16 %v432, %v428
        %v481 = vpack.c.b16 %v433, %v429
        %v482 = vpack.c.b16 %v438, %v434
        %v483 = vpack.c.b16 %v439, %v435
        %v484 = vpack.c.b16 %v440, %v436
        %v485 = vpack.c.b16 %v441, %v437
        %v486 = vpack.c.b16 %v446, %v442
        %v487 = vpack.c.b16 %v447, %v443
        %v488 = vpack.c.b16 %v448, %v444
        %v489 = vpack.c.b16 %v449, %v445
        %v490 = vpack.c.b16 %v454, %v450
        %v491 = vpack.c.b16 %v455, %v451
        %v492 = vpack.c.b16 %v456, %v452
        %v493 = vpack.c.b16 %v457, %v453
        %v494 = vpack.c.b16 %v462, %v458
        %v495 = vpack.c.b16 %v463, %v459
        %v496 = vpack.c.b16 %v464, %v460
        %v497 = vpack.c.b16 %v465, %v461
        %530 = vmatprep.subr.bf16.mxu0 %v467
        %531 = vmatpush1.bf16.msra.mxu0 %v466
        %532 = vmatprep.subr.bf16.mxu0 %v471
        %533 = vmatpush1.bf16.msra.mxu0 %v470
        %534 = vmatprep.subr.bf16.mxu0 %v475
        %535 = vmatpush1.bf16.msra.mxu0 %v474
        %536 = vmatprep.subr.bf16.mxu0 %v479
        %537 = vmatpush1.bf16.msra.mxu0 %v478
        %538 = vmatprep.subr.bf16.mxu0 %v483
        %539 = vmatpush1.bf16.msra.mxu0 %v482
        %540 = vmatprep.subr.bf16.mxu0 %v487
        %541 = vmatpush1.bf16.msra.mxu0 %v486
        %542 = vmatprep.subr.bf16.mxu0 %v491
        %543 = vmatpush1.bf16.msra.mxu0 %v490
        %544 = vmatprep.subr.bf16.mxu0 %v495
        %545 = vmatpush1.bf16.msra.mxu0 %v494
        %546 = vmatprep.subr.bf16.mxu0 0
        %547 = vmatpush1.bf16.msra.mxu0 0
        %548 = vmatprep.subr.bf16.mxu0 0
        %549 = vmatpush1.bf16.msra.mxu0 0
        %550 = vmatprep.subr.bf16.mxu0 0
        %551 = vmatpush1.bf16.msra.mxu0 0
        %552 = vmatprep.subr.bf16.mxu0 0
        %553 = vmatpush1.bf16.msra.mxu0 0
        %554 = vmatprep.subr.bf16.mxu0 0
        %555 = vmatpush1.bf16.msra.mxu0 0
        %556 = vmatprep.subr.bf16.mxu0 0
        %557 = vmatpush1.bf16.msra.mxu0 0
        %558 = vmatprep.subr.bf16.mxu0 0
        %559 = vmatpush1.bf16.msra.mxu0 0
        %560 = vmatprep.subr.bf16.mxu0 0
        %561 = vmatpush1.bf16.msra.mxu0 0
        %562 = vmatprep.mubr.bf16.mxu0 0
        %563 = vmatmul.mubr.bf16.gmra.mrb[0].mxu0 %v314
        %v564 = vpop.f32.mrb[0].mxu0
        %v565 = vadd.f32 %v353, %v564
        %v566 = vpop.f32.mrb[0].mxu0
        %v567 = vadd.f32 %v357, %v566
        %v568 = vpop.f32.mrb[0].mxu0
        %v569 = vadd.f32 %v353, %v568
        %v570 = vpop.f32.mrb[0].mxu0
        %v571 = vadd.f32 %v357, %v570
        %572 = vmatprep.mubr.bf16.mxu0 0
        %573 = vmatmul.mubr.bf16.gmra.mrb[0].mxu0 %v315
        %v574 = vpop.f32.mrb[0].mxu0
        %v575 = vadd.f32 %v353, %v574
        %v576 = vpop.f32.mrb[0].mxu0
        %v577 = vadd.f32 %v357, %v576
        %v578 = vpop.f32.mrb[0].mxu0
        %v579 = vadd.f32 %v353, %v578
        %v580 = vpop.f32.mrb[0].mxu0
        %v581 = vadd.f32 %v357, %v580
        %582 = vdwg.mxu0
        %583 = vmatprep.subr.bf16.mxu0 %v469
        %584 = vmatpush1.bf16.msra.mxu0 %v468
        %585 = vmatprep.subr.bf16.mxu0 %v473
        %586 = vmatpush1.bf16.msra.mxu0 %v472
        %587 = vmatprep.subr.bf16.mxu0 %v477
        %588 = vmatpush1.bf16.msra.mxu0 %v476
        %589 = vmatprep.subr.bf16.mxu0 %v481
        %590 = vmatpush1.bf16.msra.mxu0 %v480
        %591 = vmatprep.subr.bf16.mxu0 %v485
        %592 = vmatpush1.bf16.msra.mxu0 %v484
        %593 = vmatprep.subr.bf16.mxu0 %v489
        %594 = vmatpush1.bf16.msra.mxu0 %v488
        %595 = vmatprep.subr.bf16.mxu0 %v493
        %596 = vmatpush1.bf16.msra.mxu0 %v492
        %597 = vmatprep.subr.bf16.mxu0 %v497
        %598 = vmatpush1.bf16.msra.mxu0 %v496
        %599 = vmatprep.subr.bf16.mxu0 0
        %600 = vmatpush1.bf16.msra.mxu0 0
        %601 = vmatprep.subr.bf16.mxu0 0
        %602 = vmatpush1.bf16.msra.mxu0 0
        %603 = vmatprep.subr.bf16.mxu0 0
        %604 = vmatpush1.bf16.msra.mxu0 0
        %605 = vmatprep.subr.bf16.mxu0 0
        %606 = vmatpush1.bf16.msra.mxu0 0
        %607 = vmatprep.subr.bf16.mxu0 0
        %608 = vmatpush1.bf16.msra.mxu0 0
        %609 = vmatprep.subr.bf16.mxu0 0
        %610 = vmatpush1.bf16.msra.mxu0 0
        %611 = vmatprep.subr.bf16.mxu0 0
        %612 = vmatpush1.bf16.msra.mxu0 0
        %613 = vmatprep.subr.bf16.mxu0 0
        %614 = vmatpush1.bf16.msra.mxu0 0
        %615 = vmatprep.mubr.bf16.mxu0 0
        %616 = vmatmul.mubr.bf16.gmra.mrb[0].mxu0 %v314
        %v617 = vpop.f32.mrb[0].mxu0
        %v618 = vadd.f32 %v361, %v617
        %v619 = vpop.f32.mrb[0].mxu0
        %v620 = vadd.f32 %v365, %v619
        %v621 = vpop.f32.mrb[0].mxu0
        %v622 = vadd.f32 %v361, %v621
        %v623 = vpop.f32.mrb[0].mxu0
        %v624 = vadd.f32 %v365, %v623
        %625 = vmatprep.mubr.bf16.mxu0 0
        %626 = vmatmul.mubr.bf16.gmra.mrb[0].mxu0 %v315
        %v627 = vpop.f32.mrb[0].mxu0
        %v628 = vadd.f32 %v361, %v627
        %v629 = vpop.f32.mrb[0].mxu0
        %v630 = vadd.f32 %v365, %v629
        %v631 = vpop.f32.mrb[0].mxu0
        %v632 = vadd.f32 %v361, %v631
        %v633 = vpop.f32.mrb[0].mxu0
        %v634 = vadd.f32 %v365, %v633
        %635 = vdwg.mxu0
        %636 = vst [vmem:[%s294] sm:$0xff] %v565
        %637 = vst [vmem:[%s294 + $0x8] sm:$0xff] %v567
        %638 = vst [vmem:[%s294 + $0x10] sm:$0xff] %v618
        %639 = vst [vmem:[%s294 + $0x18] sm:$0xff] %v620
        %640 = vst [vmem:[%s294 + $0x20] sm:$0xff] %v569
        %641 = vst [vmem:[%s294 + $0x28] sm:$0xff] %v571
        %642 = vst [vmem:[%s294 + $0x30] sm:$0xff] %v622
        %643 = vst [vmem:[%s294 + $0x38] sm:$0xff] %v624
        %644 = vst [vmem:[%s294 + $0x40] sm:$0xff] %v575
        %645 = vst [vmem:[%s294 + $0x48] sm:$0xff] %v577
        %646 = vst [vmem:[%s294 + $0x50] sm:$0xff] %v628
        %647 = vst [vmem:[%s294 + $0x58] sm:$0xff] %v630
        %648 = vst [vmem:[%s294 + $0x60] sm:$0xff] %v579
        %649 = vst [vmem:[%s294 + $0x68] sm:$0xff] %v581
        %650 = vst [vmem:[%s294 + $0x70] sm:$0xff] %v632
        %651 = vst [vmem:[%s294 + $0x78] sm:$0xff] %v634
        %s652 = sand.u32 %s117, 1
        %s653 = scalar_lea.sflag [#allocation4], %s652
        %s654 = sand.u32 %s117, 1
        %s655 = smul.addr %s654, 128
        %s656 = scalar_lea.vmem [#allocation3], %s655
        // Predicated region
        $region56: #{transformer_forward.21} parent=50 // pred_check
          %p657 = pneg %p127
        $region57: #{transformer_forward.21} parent=50 // pred_check_branch
          %659 = sbr.rel (%p657) target = $region59
        $region58: #{transformer_forward.21} parent=50 // pred_region
          %s660 = smul.u32 4, %s21
          %s661 = smul.u32 4, %s22
          %s663 = ssub.s32 2048, 2048
          %664 = vsyncadd %s653, %s663
          %s665 = smul.addr %s660, 8
          %s666 = sadd.s32 %s661, %s665
          %s667 = smul.addr %s666, 128
          %s668 = scalar_lea.hbm %s3, %s667
          %s669 = sshll.u32 %s656, 4
          %s670 = int_to_ptr.vmem [resolvable:$true] %s669
          %675 = dma.vmem_to_hbm [thread:$0]  %s670, 2048, %s668, %s653, 512, 1024, 32
        $region59: #{transformer_forward.21} parent=50 // pred_fallthru
          _
      $region51: #{transformer_forward.21} parent=5 // pred_fallthru
        _
      %p676 = scmp.le.s32.totalorder 2, %s12
      // Predicated region
      $region60: #{transformer_forward.21} parent=5 // pred_check
        %p677 = pneg %p676
      $region61: #{transformer_forward.21} parent=5 // pred_check_branch
        %679 = sbr.rel (%p677) target = $region63
      $region62: #{transformer_forward.21} parent=5 // pred_region
        %s680 = ssub.s32 %s12, 2
        // Predicated region
        $region64: #{transformer_forward.21} parent=62 // pred_check
          %p681 = pneg %p133
        $region65: #{transformer_forward.21} parent=62 // pred_check_branch
          %683 = sbr.rel (%p681) target = $region67
        $region66: #{transformer_forward.21} parent=62 // pred_region
          %s684 = sand.u32 %s118, 1
          %s685 = scalar_lea.sflag [#allocation4], %s684
          %s686 = sand.u32 %s118, 1
          %s687 = smul.addr %s686, 128
          %s688 = scalar_lea.vmem [#allocation3], %s687
          %689 = dma.done %s685, 2048
        $region67: #{transformer_forward.21} parent=62 // pred_fallthru
          _
      $region63: #{transformer_forward.21} parent=5 // pred_fallthru
        _
    $region6: #{transformer_forward.21} parent=1 // loop_footer
      %s16 = sadd.s32 1, %s12
    $region7: #{transformer_forward.21} parent=1 // loop_footer_branch
      %11 = sbr.rel target = $region3
    $region8: #{transformer_forward.21} parent=1 // loop_exit
      _
    %690 = vsyncpa [#allocation4], 1
    %s691 = scalar_lea.sflag [#allocation4], 1
    %692 = vsyncpa %s691, 1

// kernel: transformer_forward.11
$region0: #{transformer_forward.11}
  #allocation0 [shape = 'u32[]', space=smem, size = 0x4, offset = 0x4, fixed_abs, tag = 'smem constant byte address 0x4 - core index']
  #allocation1 [shape = 'u32[144,128]{1,0:T(1,128)}', space=vmem, size = 0x12000, scoped, tag = 'internal scratch']
  #allocation2 [shape = 'bf16[16,256]{1,0:T(16,128)(2,1)}', space=vmem, size = 0x2000, scoped, tag = 'scratch operand']
  #allocation3 [shape = 'bf16[16,128]{1,0:T(16,128)(2,1)}', space=vmem, size = 0x1000, scoped, tag = 'scratch operand']
  %s0 = inlined_call_operand.vmem [shape: f32[2,16,128], index: 0, kind: input, shape index: {}, may-alias: {0,1}]
  %s1 = inlined_call_operand.vmem [shape: f32[2,16,128], index: 1, kind: input, shape index: {}, may-alias: {0,1}]
  %s2 = inlined_call_operand.vmem [shape: f32[2,1,16], index: 2, kind: input, shape index: {}]
  %s3 = inlined_call_operand.vmem [shape: bf16[128,128], index: 3, kind: input, shape index: {}]
  %s4 = inlined_call_operand.vmem [shape: f32[1,128], index: 4, kind: input, shape index: {}]
  %s5 = inlined_call_operand.vmem [shape: bf16[128,256], index: 5, kind: input, shape index: {}]
  %s6 = inlined_call_operand.vmem [shape: f32[1,256], index: 6, kind: input, shape index: {}]
  %s7 = inlined_call_operand.vmem [shape: bf16[128,128], index: 7, kind: input, shape index: {}]
  %s8 = inlined_call_operand.vmem [shape: f32[1,128], index: 8, kind: input, shape index: {}]
  %s9 = inlined_call_operand.vmem [shape: f32[1,128], index: 9, kind: input, shape index: {}]
  %s10 = inlined_call_operand.vmem [shape: f32[1,128], index: 10, kind: input, shape index: {}]
  %s11 = inlined_call_operand.vmem [shape: f32[2,16,128], index: 11, kind: output, shape index: {}]
  %s12 = sld [smem:[#allocation0]]
  $region81: #{transformer_forward.11} parent=0
    _
  %s14 = ssub.s32 1, %s12
  %s15 = scalar_select 0, %s14, %s12
  loop: start=0, step=1, limit=4
  $region2: #{transformer_forward.11} parent=0 // loop_pre_header
    _
  $region3: #{transformer_forward.11} parent=0 // loop_header
    %s17 = sphi 0, %s21
    %p18 = scmp.ge.s32.totalorder %s17, 4
    %s24 = sphi 0, %s36
    %s25 = sphi 0, %s32
    %s26 = sphi 0, %s24
    %s27 = sphi 0, %s25
    %s28 = sphi 0, %s26
    %s29 = sphi 0, %s27
    %s41 = sphi 0, %s43
    %s44 = sphi 0, %s41
    %s45 = sphi 0, %s44
    %s61 = sphi 0, %s45
    %s67 = sphi 0, %s69
    %s70 = sphi 0, %s67
    %s71 = sphi 0, %s70
    %s87 = sphi 0, %s71
    %s93 = sphi 0, %s95
    %s96 = sphi 0, %s93
    %s97 = sphi 0, %s96
    %s113 = sphi 0, %s97
    %s117 = sphi 0, %s117
    %s119 = sphi 0, %s117
    %s120 = sphi 0, %s119
    %s134 = sphi 0, %s120
    %s138 = sphi 0, %s138
    %s140 = sphi 0, %s138
    %s141 = sphi 0, %s140
    %s155 = sphi 0, %s141
    %s159 = sphi 0, %s159
    %s161 = sphi 0, %s159
    %s162 = sphi 0, %s161
    %s176 = sphi 0, %s162
    %s180 = sphi 0, %s180
    %s182 = sphi 0, %s180
    %s183 = sphi 0, %s182
    %s197 = sphi 0, %s183
    %s201 = sphi 0, %s201
    %s203 = sphi 0, %s201
    %s204 = sphi 0, %s203
    %s218 = sphi 0, %s204
    %s222 = sphi 0, %s222
    %s224 = sphi 0, %s222
    %s225 = sphi 0, %s224
    %s239 = sphi 0, %s225
    %s243 = sphi 0, %s243
    %s245 = sphi 0, %s243
    %s246 = sphi 0, %s245
    %s260 = sphi 0, %s246
    %s264 = sphi 0, %s264
    %s266 = sphi 0, %s264
    %s267 = sphi 0, %s266
    %s281 = sphi 0, %s267
    %s289 = sphi 0, %s291
    %s292 = sphi 0, %s289
    %s293 = sphi 0, %s292
    %s309 = sphi 0, %s293
  $region4: #{transformer_forward.11} parent=0 // loop_header_branch
    %20 = sbr.rel (%p18) target = $region8
  $region5: #{transformer_forward.11} parent=0 // loop_body
    %s22 = ssub.s32 %s17, 1
    %s23 = ssub.s32 %s17, 2
    %s30 = sadd.s32 1, %s25
    %p31 = scmp.ge.s32.totalorder %s30, 1
    %s32 = scalar_select %p31, 0, %s30
    %s33 = sadd.s32 1, %s24
    %s34 = scalar_select %p31, %s33, %s24
    %p35 = scmp.ge.s32.totalorder %s34, 2
    %s36 = scalar_select %p35, 0, %s34
    %s37 = ssub.s32 %s24, %s36
    %s38 = ssub.s32 %s25, %s32
    %s39 = sor.u32 %s37, %s38
    %p40 = scmp.eq.s32.totalorder %s39, 0
    %s42 = sadd.s32 %s41, 1
    %s43 = scalar_select %p40, %s41, %s42
    %p46 = pneg %p40
    %p47 = scmp.eq.s32.totalorder %s17, 1
    %p48 = por %p46, %p47
    %p49 = scmp.ne.s32.totalorder %s41, %s44
    %p50 = scmp.eq.s32.totalorder %s17, 0
    %p51 = por %p49, %p50
    %p52 = scmp.ne.s32.totalorder %s41, %s44
    %p53 = scmp.eq.s32.totalorder %s22, 1
    %p54 = por %p52, %p53
    %p55 = scmp.ne.s32.totalorder %s44, %s45
    %p56 = scmp.eq.s32.totalorder %s22, 0
    %p57 = por %p55, %p56
    %p58 = scmp.ne.s32.totalorder %s44, %s45
    %p59 = scmp.eq.s32.totalorder %s23, 1
    %p60 = por %p58, %p59
    %p62 = scmp.ne.s32.totalorder %s45, %s61
    %p63 = scmp.eq.s32.totalorder %s23, 0
    %p64 = por %p62, %p63
    %s65 = ssub.s32 %s24, %s36
    %p66 = scmp.eq.s32.totalorder %s65, 0
    %s68 = sadd.s32 %s67, 1
    %s69 = scalar_select %p66, %s67, %s68
    %p72 = pneg %p66
    %p73 = scmp.eq.s32.totalorder %s17, 1
    %p74 = por %p72, %p73
    %p75 = scmp.ne.s32.totalorder %s67, %s70
    %p76 = scmp.eq.s32.totalorder %s17, 0
    %p77 = por %p75, %p76
    %p78 = scmp.ne.s32.totalorder %s67, %s70
    %p79 = scmp.eq.s32.totalorder %s22, 1
    %p80 = por %p78, %p79
    %p81 = scmp.ne.s32.totalorder %s70, %s71
    %p82 = scmp.eq.s32.totalorder %s22, 0
    %p83 = por %p81, %p82
    %p84 = scmp.ne.s32.totalorder %s70, %s71
    %p85 = scmp.eq.s32.totalorder %s23, 1
    %p86 = por %p84, %p85
    %p88 = scmp.ne.s32.totalorder %s71, %s87
    %p89 = scmp.eq.s32.totalorder %s23, 0
    %p90 = por %p88, %p89
    %s91 = ssub.s32 %s24, %s36
    %p92 = scmp.eq.s32.totalorder %s91, 0
    %s94 = sadd.s32 %s93, 1
    %s95 = scalar_select %p92, %s93, %s94
    %p98 = pneg %p92
    %p99 = scmp.eq.s32.totalorder %s17, 1
    %p100 = por %p98, %p99
    %p101 = scmp.ne.s32.totalorder %s93, %s96
    %p102 = scmp.eq.s32.totalorder %s17, 0
    %p103 = por %p101, %p102
    %p104 = scmp.ne.s32.totalorder %s93, %s96
    %p105 = scmp.eq.s32.totalorder %s22, 1
    %p106 = por %p104, %p105
    %p107 = scmp.ne.s32.totalorder %s96, %s97
    %p108 = scmp.eq.s32.totalorder %s22, 0
    %p109 = por %p107, %p108
    %p110 = scmp.ne.s32.totalorder %s96, %s97
    %p111 = scmp.eq.s32.totalorder %s23, 1
    %p112 = por %p110, %p111
    %p114 = scmp.ne.s32.totalorder %s97, %s113
    %p115 = scmp.eq.s32.totalorder %s23, 0
    %p116 = por %p114, %p115
    %s118 = sadd.s32 %s117, 1
    %p121 = scmp.eq.s32.totalorder %s17, 1
    %p122 = scmp.ne.s32.totalorder %s117, %s119
    %p123 = scmp.eq.s32.totalorder %s17, 0
    %p124 = por %p122, %p123
    %p125 = scmp.ne.s32.totalorder %s117, %s119
    %p126 = scmp.eq.s32.totalorder %s22, 1
    %p127 = por %p125, %p126
    %p128 = scmp.ne.s32.totalorder %s119, %s120
    %p129 = scmp.eq.s32.totalorder %s22, 0
    %p130 = por %p128, %p129
    %p131 = scmp.ne.s32.totalorder %s119, %s120
    %p132 = scmp.eq.s32.totalorder %s23, 1
    %p133 = por %p131, %p132
    %p135 = scmp.ne.s32.totalorder %s120, %s134
    %p136 = scmp.eq.s32.totalorder %s23, 0
    %p137 = por %p135, %p136
    %s139 = sadd.s32 %s138, 1
    %p142 = scmp.eq.s32.totalorder %s17, 1
    %p143 = scmp.ne.s32.totalorder %s138, %s140
    %p144 = scmp.eq.s32.totalorder %s17, 0
    %p145 = por %p143, %p144
    %p146 = scmp.ne.s32.totalorder %s138, %s140
    %p147 = scmp.eq.s32.totalorder %s22, 1
    %p148 = por %p146, %p147
    %p149 = scmp.ne.s32.totalorder %s140, %s141
    %p150 = scmp.eq.s32.totalorder %s22, 0
    %p151 = por %p149, %p150
    %p152 = scmp.ne.s32.totalorder %s140, %s141
    %p153 = scmp.eq.s32.totalorder %s23, 1
    %p154 = por %p152, %p153
    %p156 = scmp.ne.s32.totalorder %s141, %s155
    %p157 = scmp.eq.s32.totalorder %s23, 0
    %p158 = por %p156, %p157
    %s160 = sadd.s32 %s159, 1
    %p163 = scmp.eq.s32.totalorder %s17, 1
    %p164 = scmp.ne.s32.totalorder %s159, %s161
    %p165 = scmp.eq.s32.totalorder %s17, 0
    %p166 = por %p164, %p165
    %p167 = scmp.ne.s32.totalorder %s159, %s161
    %p168 = scmp.eq.s32.totalorder %s22, 1
    %p169 = por %p167, %p168
    %p170 = scmp.ne.s32.totalorder %s161, %s162
    %p171 = scmp.eq.s32.totalorder %s22, 0
    %p172 = por %p170, %p171
    %p173 = scmp.ne.s32.totalorder %s161, %s162
    %p174 = scmp.eq.s32.totalorder %s23, 1
    %p175 = por %p173, %p174
    %p177 = scmp.ne.s32.totalorder %s162, %s176
    %p178 = scmp.eq.s32.totalorder %s23, 0
    %p179 = por %p177, %p178
    %s181 = sadd.s32 %s180, 1
    %p184 = scmp.eq.s32.totalorder %s17, 1
    %p185 = scmp.ne.s32.totalorder %s180, %s182
    %p186 = scmp.eq.s32.totalorder %s17, 0
    %p187 = por %p185, %p186
    %p188 = scmp.ne.s32.totalorder %s180, %s182
    %p189 = scmp.eq.s32.totalorder %s22, 1
    %p190 = por %p188, %p189
    %p191 = scmp.ne.s32.totalorder %s182, %s183
    %p192 = scmp.eq.s32.totalorder %s22, 0
    %p193 = por %p191, %p192
    %p194 = scmp.ne.s32.totalorder %s182, %s183
    %p195 = scmp.eq.s32.totalorder %s23, 1
    %p196 = por %p194, %p195
    %p198 = scmp.ne.s32.totalorder %s183, %s197
    %p199 = scmp.eq.s32.totalorder %s23, 0
    %p200 = por %p198, %p199
    %s202 = sadd.s32 %s201, 1
    %p205 = scmp.eq.s32.totalorder %s17, 1
    %p206 = scmp.ne.s32.totalorder %s201, %s203
    %p207 = scmp.eq.s32.totalorder %s17, 0
    %p208 = por %p206, %p207
    %p209 = scmp.ne.s32.totalorder %s201, %s203
    %p210 = scmp.eq.s32.totalorder %s22, 1
    %p211 = por %p209, %p210
    %p212 = scmp.ne.s32.totalorder %s203, %s204
    %p213 = scmp.eq.s32.totalorder %s22, 0
    %p214 = por %p212, %p213
    %p215 = scmp.ne.s32.totalorder %s203, %s204
    %p216 = scmp.eq.s32.totalorder %s23, 1
    %p217 = por %p215, %p216
    %p219 = scmp.ne.s32.totalorder %s204, %s218
    %p220 = scmp.eq.s32.totalorder %s23, 0
    %p221 = por %p219, %p220
    %s223 = sadd.s32 %s222, 1
    %p226 = scmp.eq.s32.totalorder %s17, 1
    %p227 = scmp.ne.s32.totalorder %s222, %s224
    %p228 = scmp.eq.s32.totalorder %s17, 0
    %p229 = por %p227, %p228
    %p230 = scmp.ne.s32.totalorder %s222, %s224
    %p231 = scmp.eq.s32.totalorder %s22, 1
    %p232 = por %p230, %p231
    %p233 = scmp.ne.s32.totalorder %s224, %s225
    %p234 = scmp.eq.s32.totalorder %s22, 0
    %p235 = por %p233, %p234
    %p236 = scmp.ne.s32.totalorder %s224, %s225
    %p237 = scmp.eq.s32.totalorder %s23, 1
    %p238 = por %p236, %p237
    %p240 = scmp.ne.s32.totalorder %s225, %s239
    %p241 = scmp.eq.s32.totalorder %s23, 0
    %p242 = por %p240, %p241
    %s244 = sadd.s32 %s243, 1
    %p247 = scmp.eq.s32.totalorder %s17, 1
    %p248 = scmp.ne.s32.totalorder %s243, %s245
    %p249 = scmp.eq.s32.totalorder %s17, 0
    %p250 = por %p248, %p249
    %p251 = scmp.ne.s32.totalorder %s243, %s245
    %p252 = scmp.eq.s32.totalorder %s22, 1
    %p253 = por %p251, %p252
    %p254 = scmp.ne.s32.totalorder %s245, %s246
    %p255 = scmp.eq.s32.totalorder %s22, 0
    %p256 = por %p254, %p255
    %p257 = scmp.ne.s32.totalorder %s245, %s246
    %p258 = scmp.eq.s32.totalorder %s23, 1
    %p259 = por %p257, %p258
    %p261 = scmp.ne.s32.totalorder %s246, %s260
    %p262 = scmp.eq.s32.totalorder %s23, 0
    %p263 = por %p261, %p262
    %s265 = sadd.s32 %s264, 1
    %p268 = scmp.eq.s32.totalorder %s17, 1
    %p269 = scmp.ne.s32.totalorder %s264, %s266
    %p270 = scmp.eq.s32.totalorder %s17, 0
    %p271 = por %p269, %p270
    %p272 = scmp.ne.s32.totalorder %s264, %s266
    %p273 = scmp.eq.s32.totalorder %s22, 1
    %p274 = por %p272, %p273
    %p275 = scmp.ne.s32.totalorder %s266, %s267
    %p276 = scmp.eq.s32.totalorder %s22, 0
    %p277 = por %p275, %p276
    %p278 = scmp.ne.s32.totalorder %s266, %s267
    %p279 = scmp.eq.s32.totalorder %s23, 1
    %p280 = por %p278, %p279
    %p282 = scmp.ne.s32.totalorder %s267, %s281
    %p283 = scmp.eq.s32.totalorder %s23, 0
    %p284 = por %p282, %p283
    %s285 = ssub.s32 %s24, %s36
    %s286 = ssub.s32 %s25, %s32
    %s287 = sor.u32 %s285, %s286
    %p288 = scmp.eq.s32.totalorder %s287, 0
    %s290 = sadd.s32 %s289, 1
    %s291 = scalar_select %p288, %s289, %s290
    %p294 = pneg %p288
    %p295 = scmp.eq.s32.totalorder %s17, 1
    %p296 = por %p294, %p295
    %p297 = scmp.ne.s32.totalorder %s289, %s292
    %p298 = scmp.eq.s32.totalorder %s17, 0
    %p299 = por %p297, %p298
    %p300 = scmp.ne.s32.totalorder %s289, %s292
    %p301 = scmp.eq.s32.totalorder %s22, 1
    %p302 = por %p300, %p301
    %p303 = scmp.ne.s32.totalorder %s292, %s293
    %p304 = scmp.eq.s32.totalorder %s22, 0
    %p305 = por %p303, %p304
    %p306 = scmp.ne.s32.totalorder %s292, %s293
    %p307 = scmp.eq.s32.totalorder %s23, 1
    %p308 = por %p306, %p307
    %p310 = scmp.ne.s32.totalorder %s293, %s309
    %p311 = scmp.eq.s32.totalorder %s23, 0
    %p312 = por %p310, %p311
    %p313 = scmp.le.s32.totalorder 1, %s17
    %p314 = scmp.lt.s32.totalorder %s17, 3
    %p315 = pnand %p313, %p314
    %p316 = pneg %p315
    // Predicated region
    $region9: #{transformer_forward.11} parent=5 // pred_check
      _
    $region10: #{transformer_forward.11} parent=5 // pred_check_branch
      %318 = sbr.rel (%p315) target = $region12
    $region11: #{transformer_forward.11} parent=5 // pred_region
      %s319 = ssub.s32 %s17, 1
      // Predicated region
      $region13: #{transformer_forward.11} parent=11 // pred_check
        %p320 = pneg %p130
      $region14: #{transformer_forward.11} parent=11 // pred_check_branch
        %322 = sbr.rel (%p320) target = $region16
      $region15: #{transformer_forward.11} parent=11 // pred_region
        _
      $region16: #{transformer_forward.11} parent=11 // pred_fallthru
        _
      // Predicated region
      $region17: #{transformer_forward.11} parent=11 // pred_check
        %p323 = pneg %p151
      $region18: #{transformer_forward.11} parent=11 // pred_check_branch
        %325 = sbr.rel (%p323) target = $region20
      $region19: #{transformer_forward.11} parent=11 // pred_region
        _
      $region20: #{transformer_forward.11} parent=11 // pred_fallthru
        _
      // Predicated region
      $region21: #{transformer_forward.11} parent=11 // pred_check
        %p326 = pneg %p172
      $region22: #{transformer_forward.11} parent=11 // pred_check_branch
        %328 = sbr.rel (%p326) target = $region24
      $region23: #{transformer_forward.11} parent=11 // pred_region
        _
      $region24: #{transformer_forward.11} parent=11 // pred_fallthru
        _
      // Predicated region
      $region25: #{transformer_forward.11} parent=11 // pred_check
        %p329 = pneg %p193
      $region26: #{transformer_forward.11} parent=11 // pred_check_branch
        %331 = sbr.rel (%p329) target = $region28
      $region27: #{transformer_forward.11} parent=11 // pred_region
        _
      $region28: #{transformer_forward.11} parent=11 // pred_fallthru
        _
      // Predicated region
      $region29: #{transformer_forward.11} parent=11 // pred_check
        %p332 = pneg %p214
      $region30: #{transformer_forward.11} parent=11 // pred_check_branch
        %334 = sbr.rel (%p332) target = $region32
      $region31: #{transformer_forward.11} parent=11 // pred_region
        _
      $region32: #{transformer_forward.11} parent=11 // pred_fallthru
        _
      // Predicated region
      $region33: #{transformer_forward.11} parent=11 // pred_check
        %p335 = pneg %p235
      $region34: #{transformer_forward.11} parent=11 // pred_check_branch
        %337 = sbr.rel (%p335) target = $region36
      $region35: #{transformer_forward.11} parent=11 // pred_region
        _
      $region36: #{transformer_forward.11} parent=11 // pred_fallthru
        _
      // Predicated region
      $region37: #{transformer_forward.11} parent=11 // pred_check
        %p338 = pneg %p256
      $region38: #{transformer_forward.11} parent=11 // pred_check_branch
        %340 = sbr.rel (%p338) target = $region40
      $region39: #{transformer_forward.11} parent=11 // pred_region
        _
      $region40: #{transformer_forward.11} parent=11 // pred_fallthru
        _
      // Predicated region
      $region41: #{transformer_forward.11} parent=11 // pred_check
        %p341 = pneg %p277
      $region42: #{transformer_forward.11} parent=11 // pred_check_branch
        %343 = sbr.rel (%p341) target = $region44
      $region43: #{transformer_forward.11} parent=11 // pred_region
        _
      $region44: #{transformer_forward.11} parent=11 // pred_fallthru
        _
    $region12: #{transformer_forward.11} parent=5 // pred_fallthru
      _
    %p344 = scmp.lt.s32.totalorder %s17, 2
    // Predicated region
    $region45: #{transformer_forward.11} parent=5 // pred_check
      %p345 = pneg %p344
    $region46: #{transformer_forward.11} parent=5 // pred_check_branch
      %347 = sbr.rel (%p345) target = $region48
    $region47: #{transformer_forward.11} parent=5 // pred_region
      // Predicated region
      $region49: #{transformer_forward.11} parent=47 // pred_check
        %p348 = pneg %p51
      $region50: #{transformer_forward.11} parent=47 // pred_check_branch
        %350 = sbr.rel (%p348) target = $region52
      $region51: #{transformer_forward.11} parent=47 // pred_region
        %s351 = smul.u32 2, %s25
        %p352 = scmp.lt.s32.totalorder %s24, 1
        %s353 = scalar_select %p352, %s24, 1
        %p354 = scmp.lt.s32.totalorder %s351, 1
        %s355 = scalar_select %p354, %s351, 1
        %s356 = smul.addr %s353, 2
        %s357 = sadd.s32 %s355, %s356
        %s358 = smul.addr %s357, 8
        %s359 = scalar_lea.vmem %s0, %s358
        %s360 = smul.u32 2, %s25
      $region52: #{transformer_forward.11} parent=47 // pred_fallthru
        _
      // Predicated region
      $region53: #{transformer_forward.11} parent=47 // pred_check
        %p361 = pneg %p77
      $region54: #{transformer_forward.11} parent=47 // pred_check_branch
        %363 = sbr.rel (%p361) target = $region56
      $region55: #{transformer_forward.11} parent=47 // pred_region
        %p364 = scmp.lt.s32.totalorder %s24, 1
        %s365 = scalar_select %p364, %s24, 1
        %s366 = smul.addr %s365, 2
        %s367 = smul.addr %s366, 8
        %s368 = scalar_lea.vmem %s1, %s367
      $region56: #{transformer_forward.11} parent=47 // pred_fallthru
        _
      // Predicated region
      $region57: #{transformer_forward.11} parent=47 // pred_check
        %p369 = pneg %p103
      $region58: #{transformer_forward.11} parent=47 // pred_check_branch
        %371 = sbr.rel (%p369) target = $region60
      $region59: #{transformer_forward.11} parent=47 // pred_region
        %p372 = scmp.lt.s32.totalorder %s24, 1
        %s373 = scalar_select %p372, %s24, 1
        %s374 = scalar_lea.vmem %s2, %s373
      $region60: #{transformer_forward.11} parent=47 // pred_fallthru
        _
    $region48: #{transformer_forward.11} parent=5 // pred_fallthru
      _
    %p375 = scmp.le.s32.totalorder 1, %s17
    %p376 = scmp.lt.s32.totalorder %s17, 3
    %p377 = pnand %p375, %p376
    %p378 = pneg %p377
    // Predicated region
    $region61: #{transformer_forward.11} parent=5 // pred_check
      _
    $region62: #{transformer_forward.11} parent=5 // pred_check_branch
      %380 = sbr.rel (%p377) target = $region64
    $region63: #{transformer_forward.11} parent=5 // pred_region
      %s381 = ssub.s32 %s17, 1
      %s382 = smul.u32 2, %s27
      %p383 = scmp.lt.s32.totalorder %s26, 1
      %s384 = scalar_select %p383, %s26, 1
      %p385 = scmp.lt.s32.totalorder %s382, 1
      %s386 = scalar_select %p385, %s382, 1
      %s387 = smul.addr %s384, 2
      %s388 = sadd.s32 %s386, %s387
      %s389 = smul.addr %s388, 8
      %s390 = scalar_lea.vmem %s0, %s389
      %p391 = pneg %p57
      %p392 = pneg %p54
      %p393 = scmp.lt.s32.totalorder %s26, 1
      %s394 = scalar_select %p393, %s26, 1
      %s395 = smul.addr %s394, 2
      %s396 = smul.addr %s395, 8
      %s397 = scalar_lea.vmem %s1, %s396
      %p398 = pneg %p83
      %p399 = pneg %p80
      %p400 = scmp.lt.s32.totalorder %s26, 1
      %s401 = scalar_select %p400, %s26, 1
      %s402 = scalar_lea.vmem %s2, %s401
      %p403 = pneg %p109
      %p404 = pneg %p106
      %p405 = pneg %p130
      %p406 = pneg %p127
      %p407 = pneg %p151
      %p408 = pneg %p148
      %p409 = pneg %p172
      %p410 = pneg %p169
      %p411 = pneg %p193
      %p412 = pneg %p190
      %p413 = pneg %p214
      %p414 = pneg %p211
      %p415 = pneg %p235
      %p416 = pneg %p232
      %p417 = pneg %p256
      %p418 = pneg %p253
      %p419 = pneg %p277
      %p420 = pneg %p274
      %p421 = pneg %p305
      %p422 = pneg %p302
      %s423 = smul.u32 2, %s27
      %p424 = scmp.lt.s32.totalorder %s26, 1
      %s425 = scalar_select %p424, %s26, 1
      %p426 = scmp.lt.s32.totalorder %s423, 1
      %s427 = scalar_select %p426, %s423, 1
      %s428 = smul.addr %s425, 2
      %s429 = sadd.s32 %s427, %s428
      %s430 = smul.addr %s429, 8
      %s431 = scalar_lea.vmem %s11, %s430
      %s432 = smul.u32 2, %s27
      %p433 = scmp.lt.s32.totalorder %s26, 1
      %s434 = scalar_select %p433, %s26, 1
      %p435 = scmp.lt.s32.totalorder %s432, 1
      %s436 = scalar_select %p435, %s432, 1
      %s437 = smul.addr %s434, 2
      %s438 = sadd.s32 %s436, %s437
      %s439 = smul.addr %s438, 8
      %s440 = scalar_lea.vmem %s0, %s439
      %s441 = smul.u32 2, %s27
      %p442 = scmp.lt.s32.totalorder %s26, 1
      %s443 = scalar_select %p442, %s26, 1
      %s444 = smul.addr %s443, 2
      %s445 = smul.addr %s444, 8
      %s446 = scalar_lea.vmem %s1, %s445
      %p447 = scmp.lt.s32.totalorder %s26, 1
      %s448 = scalar_select %p447, %s26, 1
      %s449 = scalar_lea.vmem %s2, %s448
      %s450 = smul.u32 2, %s27
      %p451 = scmp.lt.s32.totalorder %s26, 1
      %s452 = scalar_select %p451, %s26, 1
      %p453 = scmp.lt.s32.totalorder %s450, 1
      %s454 = scalar_select %p453, %s450, 1
      %s455 = smul.addr %s452, 2
      %s456 = sadd.s32 %s454, %s455
      %s457 = smul.addr %s456, 8
      %s458 = scalar_lea.vmem %s11, %s457
      %s459 = smul.u32 2, %s27
      %v461 = vld [vmem:[%s440] sm:$0xff]
      %v462 = vld [vmem:[%s440 + $0x8] sm:$0xff]
      %p463 = scmp.eq.s32.totalorder %s27, 0
      // Predicated region
      $region65: #{transformer_forward.11} parent=63 // pred_check
        %p464 = pneg %p463
      $region66: #{transformer_forward.11} parent=63 // pred_check_branch
        %466 = sbr.rel (%p464) target = $region68
      $region67: #{transformer_forward.11} parent=63 // pred_region
        %v467 = vld [vmem:[%s446] sm:$0xff]
        %v468 = vld [vmem:[%s446 + $0x8] sm:$0xff]
        %v469 = vpack.c.bf16 %v468, %v467
        %v470 = vld [vmem:[%s5] sm:$0xff]
        %v471 = vld [vmem:[%s5 + $0x8] sm:$0xff]
        %v472 = vld [vmem:[%s5 + $0x10] sm:$0xff]
        %v473 = vld [vmem:[%s5 + $0x18] sm:$0xff]
        %v474 = vld [vmem:[%s5 + $0x20] sm:$0xff]
        %v475 = vld [vmem:[%s5 + $0x28] sm:$0xff]
        %v476 = vld [vmem:[%s5 + $0x30] sm:$0xff]
        %v477 = vld [vmem:[%s5 + $0x38] sm:$0xff]
        %v478 = vld [vmem:[%s5 + $0x40] sm:$0xff]
        %v479 = vld [vmem:[%s5 + $0x48] sm:$0xff]
        %v480 = vld [vmem:[%s5 + $0x50] sm:$0xff]
        %v481 = vld [vmem:[%s5 + $0x58] sm:$0xff]
        %v482 = vld [vmem:[%s5 + $0x60] sm:$0xff]
        %v483 = vld [vmem:[%s5 + $0x68] sm:$0xff]
        %v484 = vld [vmem:[%s5 + $0x70] sm:$0xff]
        %v485 = vld [vmem:[%s5 + $0x78] sm:$0xff]
        %v486 = vld [vmem:[%s6] sm:$0x3]
        %v488 = vlaneseq
        %v489 = vshrl.u32 %v488, 7
        %v490 = vsub.s32 0, %v489
        %v491 = vrot.slane %v486, %v490
        %v492 = vlaneseq
        %v493 = vshrl.u32 %v492, 7
        %v494 = vsub.s32 1, %v493
        %v495 = vrot.slane %v486, %v494
        %v514 = vunpack.c.l.b16 %v470
        %v515 = vunpack.c.h.b16 %v470
        %v516 = vunpack.c.l.b16 %v471
        %v517 = vunpack.c.h.b16 %v471
        %v518 = vunpack.c.l.b16 %v472
        %v519 = vunpack.c.h.b16 %v472
        %v520 = vunpack.c.l.b16 %v473
        %v521 = vunpack.c.h.b16 %v473
        %v522 = vunpack.c.l.b16 %v474
        %v523 = vunpack.c.h.b16 %v474
        %v524 = vunpack.c.l.b16 %v475
        %v525 = vunpack.c.h.b16 %v475
        %v526 = vunpack.c.l.b16 %v476
        %v527 = vunpack.c.h.b16 %v476
        %v528 = vunpack.c.l.b16 %v477
        %v529 = vunpack.c.h.b16 %v477
        %v530 = vunpack.c.l.b16 %v478
        %v531 = vunpack.c.h.b16 %v478
        %v532 = vunpack.c.l.b16 %v479
        %v533 = vunpack.c.h.b16 %v479
        %v534 = vunpack.c.l.b16 %v480
        %v535 = vunpack.c.h.b16 %v480
        %v536 = vunpack.c.l.b16 %v481
        %v537 = vunpack.c.h.b16 %v481
        %v538 = vunpack.c.l.b16 %v482
        %v539 = vunpack.c.h.b16 %v482
        %v540 = vunpack.c.l.b16 %v483
        %v541 = vunpack.c.h.b16 %v483
        %v542 = vunpack.c.l.b16 %v484
        %v543 = vunpack.c.h.b16 %v484
        %v544 = vunpack.c.l.b16 %v485
        %v545 = vunpack.c.h.b16 %v485
        %v546 = vpack.c.b16 %v516, %v514
        %v547 = vpack.c.b16 %v517, %v515
        %v548 = vpack.c.b16 %v520, %v518
        %v549 = vpack.c.b16 %v521, %v519
        %v550 = vpack.c.b16 %v524, %v522
        %v551 = vpack.c.b16 %v525, %v523
        %v552 = vpack.c.b16 %v528, %v526
        %v553 = vpack.c.b16 %v529, %v527
        %v554 = vpack.c.b16 %v532, %v530
        %v555 = vpack.c.b16 %v533, %v531
        %v556 = vpack.c.b16 %v536, %v534
        %v557 = vpack.c.b16 %v537, %v535
        %v558 = vpack.c.b16 %v540, %v538
        %v559 = vpack.c.b16 %v541, %v539
        %v560 = vpack.c.b16 %v544, %v542
        %v561 = vpack.c.b16 %v545, %v543
        %578 = vmatprep.subr.bf16.mxu0 %v547
        %579 = vmatpush1.bf16.msra.mxu0 %v546
        %580 = vmatprep.subr.bf16.mxu0 %v549
        %581 = vmatpush1.bf16.msra.mxu0 %v548
        %582 = vmatprep.subr.bf16.mxu0 %v551
        %583 = vmatpush1.bf16.msra.mxu0 %v550
        %584 = vmatprep.subr.bf16.mxu0 %v553
        %585 = vmatpush1.bf16.msra.mxu0 %v552
        %586 = vmatprep.subr.bf16.mxu0 %v555
        %587 = vmatpush1.bf16.msra.mxu0 %v554
        %588 = vmatprep.subr.bf16.mxu0 %v557
        %589 = vmatpush1.bf16.msra.mxu0 %v556
        %590 = vmatprep.subr.bf16.mxu0 %v559
        %591 = vmatpush1.bf16.msra.mxu0 %v558
        %592 = vmatprep.subr.bf16.mxu0 %v561
        %593 = vmatpush1.bf16.msra.mxu0 %v560
        %594 = vmatprep.subr.bf16.mxu0 0
        %595 = vmatpush1.bf16.msra.mxu0 0
        %596 = vmatprep.subr.bf16.mxu0 0
        %597 = vmatpush1.bf16.msra.mxu0 0
        %598 = vmatprep.subr.bf16.mxu0 0
        %599 = vmatpush1.bf16.msra.mxu0 0
        %600 = vmatprep.subr.bf16.mxu0 0
        %601 = vmatpush1.bf16.msra.mxu0 0
        %602 = vmatprep.subr.bf16.mxu0 0
        %603 = vmatpush1.bf16.msra.mxu0 0
        %604 = vmatprep.subr.bf16.mxu0 0
        %605 = vmatpush1.bf16.msra.mxu0 0
        %606 = vmatprep.subr.bf16.mxu0 0
        %607 = vmatpush1.bf16.msra.mxu0 0
        %608 = vmatprep.subr.bf16.mxu0 0
        %609 = vmatpush1.bf16.msra.mxu0 0
        %610 = vmatprep.mubr.bf16.mxu0 0
        %611 = vmatmul.mubr.bf16.gmra.mrb[0].mxu0 %v469
        %v612 = vpop.f32.mrb[0].mxu0
        %v613 = vadd.f32 %v491, %v612
        %v614 = vpop.f32.mrb[0].mxu0
        %v615 = vadd.f32 %v495, %v614
        %v616 = vpop.f32.mrb[0].mxu0
        %v617 = vadd.f32 %v491, %v616
        %v618 = vpop.f32.mrb[0].mxu0
        %v619 = vadd.f32 %v495, %v618
        %620 = vdwg.mxu0
        %v621 = vpack.c.bf16 %v617, %v613
        %v622 = vpack.c.bf16 %v619, %v615
        %623 = vst [vmem:[#allocation2] sm:$0xff] %v621
        %624 = vst [vmem:[#allocation2 + $0x8] sm:$0xff] %v622
      $region68: #{transformer_forward.11} parent=63 // pred_fallthru
        _
      %v625 = vpack.c.bf16 %v462, %v461
      %v626 = vld [vmem:[%s3] sm:$0xf]
      %v627 = vld [vmem:[%s3 + $0x4] sm:$0xf]
      %v628 = vld [vmem:[%s3 + $0x8] sm:$0xf]
      %v629 = vld [vmem:[%s3 + $0xc] sm:$0xf]
      %v630 = vld [vmem:[%s3 + $0x10] sm:$0xf]
      %v631 = vld [vmem:[%s3 + $0x14] sm:$0xf]
      %v632 = vld [vmem:[%s3 + $0x18] sm:$0xf]
      %v633 = vld [vmem:[%s3 + $0x1c] sm:$0xf]
      %v634 = vld [vmem:[%s3 + $0x20] sm:$0xf]
      %v635 = vld [vmem:[%s3 + $0x24] sm:$0xf]
      %v636 = vld [vmem:[%s3 + $0x28] sm:$0xf]
      %v637 = vld [vmem:[%s3 + $0x2c] sm:$0xf]
      %v638 = vld [vmem:[%s3 + $0x30] sm:$0xf]
      %v639 = vld [vmem:[%s3 + $0x34] sm:$0xf]
      %v640 = vld [vmem:[%s3 + $0x38] sm:$0xf]
      %v641 = vld [vmem:[%s3 + $0x3c] sm:$0xf]
      %v642 = vld [vmem:[%s4] sm:$0x1]
      %v644 = vlaneseq
      %v645 = vshrl.u32 %v644, 7
      %v646 = vsub.s32 0, %v645
      %v647 = vrot.slane %v642, %v646
      %v665 = vunpack.c.l.b16 %v626
      %v666 = vunpack.c.l.b16 %v627
      %v667 = vunpack.c.l.b16 %v628
      %v668 = vunpack.c.l.b16 %v629
      %v669 = vunpack.c.l.b16 %v630
      %v670 = vunpack.c.l.b16 %v631
      %v671 = vunpack.c.l.b16 %v632
      %v672 = vunpack.c.l.b16 %v633
      %v673 = vunpack.c.l.b16 %v634
      %v674 = vunpack.c.l.b16 %v635
      %v675 = vunpack.c.l.b16 %v636
      %v676 = vunpack.c.l.b16 %v637
      %v677 = vunpack.c.l.b16 %v638
      %v678 = vunpack.c.l.b16 %v639
      %v679 = vunpack.c.l.b16 %v640
      %v680 = vunpack.c.l.b16 %v641
      %v681 = vpack.c.b16 %v666, %v665
      %v682 = vpack.c.b16 %v668, %v667
      %v683 = vpack.c.b16 %v670, %v669
      %v684 = vpack.c.b16 %v672, %v671
      %v685 = vpack.c.b16 %v674, %v673
      %v686 = vpack.c.b16 %v676, %v675
      %v687 = vpack.c.b16 %v678, %v677
      %v688 = vpack.c.b16 %v680, %v679
      %697 = vmatprep.subr.bf16.mxu0 0
      %698 = vmatpush1.bf16.msra.mxu0 %v681
      %699 = vmatprep.subr.bf16.mxu0 0
      %700 = vmatpush1.bf16.msra.mxu0 %v682
      %701 = vmatprep.subr.bf16.mxu0 0
      %702 = vmatpush1.bf16.msra.mxu0 %v683
      %703 = vmatprep.subr.bf16.mxu0 0
      %704 = vmatpush1.bf16.msra.mxu0 %v684
      %705 = vmatprep.subr.bf16.mxu0 0
      %706 = vmatpush1.bf16.msra.mxu0 %v685
      %707 = vmatprep.subr.bf16.mxu0 0
      %708 = vmatpush1.bf16.msra.mxu0 %v686
      %709 = vmatprep.subr.bf16.mxu0 0
      %710 = vmatpush1.bf16.msra.mxu0 %v687
      %711 = vmatprep.subr.bf16.mxu0 0
      %712 = vmatpush1.bf16.msra.mxu0 %v688
      %713 = vmatprep.subr.bf16.mxu0 0
      %714 = vmatpush1.bf16.msra.mxu0 0
      %715 = vmatprep.subr.bf16.mxu0 0
      %716 = vmatpush1.bf16.msra.mxu0 0
      %717 = vmatprep.subr.bf16.mxu0 0
      %718 = vmatpush1.bf16.msra.mxu0 0
      %719 = vmatprep.subr.bf16.mxu0 0
      %720 = vmatpush1.bf16.msra.mxu0 0
      %721 = vmatprep.subr.bf16.mxu0 0
      %722 = vmatpush1.bf16.msra.mxu0 0
      %723 = vmatprep.subr.bf16.mxu0 0
      %724 = vmatpush1.bf16.msra.mxu0 0
      %725 = vmatprep.subr.bf16.mxu0 0
      %726 = vmatpush1.bf16.msra.mxu0 0
      %727 = vmatprep.subr.bf16.mxu0 0
      %728 = vmatpush1.bf16.msra.mxu0 0
      %729 = vmatprep.mubr.bf16.mxu0 0
      %730 = vmatmul.mubr.bf16.gmra.mrb[0].mxu0 %v625
      %v731 = vpop.f32.mrb[0].mxu0
      %v732 = vadd.f32 %v647, %v731
      %v733 = vpop.f32.mrb[0].mxu0
      %v734 = vpop.f32.mrb[0].mxu0
      %v735 = vadd.f32 %v647, %v734
      %v736 = vpop.f32.mrb[0].mxu0
      %737 = vdwg.mxu0
      %v738 = vmul.f32 %v732, 0.17677669
      %v739 = vmul.f32 %v735, 0.17677669
      %v740 = vld [vmem:[%s449] sm:$0x1]
      %vm741 = vcmp.ne.f32.partialorder %v740, 0.0
      %v742 = vpack.c.bf16 %v739, %v738
      %v743 = vld [vmem:[#allocation2] sm:$0xff]
      %v744 = vld [vmem:[#allocation2 + $0x8] sm:$0xff]
      %vm745 = vcmask 261120
      %v747 = vsel %vm745, %v742, 0
      %v750 = vsel %vm745, %v743, 0
      %752 = vmatprep.subr.bf16.mxu0 0
      %753 = vmatpush1.bf16.xpose.msra.mxu0 %v750
      %754 = vmatprep.subr.bf16.mxu0 0
      %755 = vmatpush1.bf16.xpose.msra.mxu0 0
      %756 = vmatprep.subr.bf16.mxu0 0
      %757 = vmatpush1.bf16.xpose.msra.mxu0 0
      %758 = vmatprep.subr.bf16.mxu0 0
      %759 = vmatpush1.bf16.xpose.msra.mxu0 0
      %760 = vmatprep.subr.bf16.mxu0 0
      %761 = vmatpush1.bf16.xpose.msra.mxu0 0
      %762 = vmatprep.subr.bf16.mxu0 0
      %763 = vmatpush1.bf16.xpose.msra.mxu0 0
      %764 = vmatprep.subr.bf16.mxu0 0
      %765 = vmatpush1.bf16.xpose.msra.mxu0 0
      %766 = vmatprep.subr.bf16.mxu0 0
      %767 = vmatpush1.bf16.xpose.msra.mxu0 0
      %768 = vmatprep.subr.bf16.mxu0 0
      %769 = vmatpush1.bf16.xpose.msra.mxu0 0
      %770 = vmatprep.subr.bf16.mxu0 0
      %771 = vmatpush1.bf16.xpose.msra.mxu0 0
      %772 = vmatprep.subr.bf16.mxu0 0
      %773 = vmatpush1.bf16.xpose.msra.mxu0 0
      %774 = vmatprep.subr.bf16.mxu0 0
      %775 = vmatpush1.bf16.xpose.msra.mxu0 0
      %776 = vmatprep.subr.bf16.mxu0 0
      %777 = vmatpush1.bf16.xpose.msra.mxu0 0
      %778 = vmatprep.subr.bf16.mxu0 0
      %779 = vmatpush1.bf16.xpose.msra.mxu0 0
      %780 = vmatprep.subr.bf16.mxu0 0
      %781 = vmatpush1.bf16.xpose.msra.mxu0 0
      %782 = vmatprep.subr.bf16.mxu0 0
      %783 = vmatpush1.bf16.xpose.msra.mxu0 0
      %784 = vmatprep.mubr.bf16.mxu0 0
      %785 = vmatmul.mubr.bf16.gmra.mrb[0].mxu0 %v747
      %v786 = vpop.f32.mrb[0].mxu0
      %v787 = vadd.f32 0.0, %v786
      %v788 = vpop.f32.mrb[0].mxu0
      %v789 = vpop.f32.mrb[0].mxu0
      %v790 = vadd.f32 0.0, %v789
      %v791 = vpop.f32.mrb[0].mxu0
      %792 = vdwg.mxu0
      %v793 = vsel %vm741, 1, 0
      %v794 = vlaneseq
      %v795 = vshrl.u32 %v794, 7
      %v796 = vsub.s32 0, %v795
      %v797 = vrot.slane %v793, %v796
      %vm798 = vcmp.eq.s32.totalorder %v797, 1
      %v799 = vsel %vm798, %v787, -1e+09
      %v800 = vsel %vm798, %v790, -1e+09
      %vm801 = vcmask 130048
      %v802 = vsel %vm801, %v799, -inf
      %803 = vmax.xlane.f32.xlu0 %v802
      %v804 = vpop.xlane.xlu0 %803
      %v805 = vsel %vm801, %v800, -inf
      %806 = vmax.xlane.f32.xlu0 %v805
      %v807 = vpop.xlane.xlu0 %806
      %v808 = vsub.f32 %v799, %v804
      %v809 = vsub.f32 %v800, %v807
      %v810 = vmul.f32 %v808, 1.442695
      %v811 = vpow.pop %v810
      %v812 = vmul.f32 %v809, 1.442695
      %v813 = vpow.pop %v812
      %v814 = vsel %vm801, %v811, 0.0
      %815 = vadd.xlane.f32.xlu0 %v814
      %v816 = vpop.xlane.xlu0 %815
      %v817 = vsel %vm801, %v813, 0.0
      %818 = vadd.xlane.f32.xlu0 %v817
      %v819 = vpop.xlane.xlu0 %818
      %v820 = vpack.c.bf16 %v813, %v811
      %v822 = vsel %vm801, %v820, 0
      %824 = vmatprep.subr.bf16.mxu0 0
      %825 = vmatpush1.bf16.msra.mxu0 %v744
      %826 = vmatprep.subr.bf16.mxu0 0
      %827 = vmatpush1.bf16.msra.mxu0 0
      %828 = vmatprep.subr.bf16.mxu0 0
      %829 = vmatpush1.bf16.msra.mxu0 0
      %830 = vmatprep.subr.bf16.mxu0 0
      %831 = vmatpush1.bf16.msra.mxu0 0
      %832 = vmatprep.subr.bf16.mxu0 0
      %833 = vmatpush1.bf16.msra.mxu0 0
      %834 = vmatprep.subr.bf16.mxu0 0
      %835 = vmatpush1.bf16.msra.mxu0 0
      %836 = vmatprep.subr.bf16.mxu0 0
      %837 = vmatpush1.bf16.msra.mxu0 0
      %838 = vmatprep.subr.bf16.mxu0 0
      %839 = vmatpush1.bf16.msra.mxu0 0
      %840 = vmatprep.subr.bf16.mxu0 0
      %841 = vmatpush1.bf16.msra.mxu0 0
      %842 = vmatprep.subr.bf16.mxu0 0
      %843 = vmatpush1.bf16.msra.mxu0 0
      %844 = vmatprep.subr.bf16.mxu0 0
      %845 = vmatpush1.bf16.msra.mxu0 0
      %846 = vmatprep.subr.bf16.mxu0 0
      %847 = vmatpush1.bf16.msra.mxu0 0
      %848 = vmatprep.subr.bf16.mxu0 0
      %849 = vmatpush1.bf16.msra.mxu0 0
      %850 = vmatprep.subr.bf16.mxu0 0
      %851 = vmatpush1.bf16.msra.mxu0 0
      %852 = vmatprep.subr.bf16.mxu0 0
      %853 = vmatpush1.bf16.msra.mxu0 0
      %854 = vmatprep.subr.bf16.mxu0 0
      %855 = vmatpush1.bf16.msra.mxu0 0
      %856 = vmatprep.mubr.bf16.mxu0 0
      %857 = vmatmul.mubr.bf16.gmra.mrb[0].mxu0 %v822
      %v858 = vpop.f32.mrb[0].mxu0
      %v859 = vadd.f32 0.0, %v858
      %v860 = vpop.f32.mrb[0].mxu0
      %v861 = vpop.f32.mrb[0].mxu0
      %v862 = vadd.f32 0.0, %v861
      %v863 = vpop.f32.mrb[0].mxu0
      %864 = vdwg.mxu0
      %v865 = vrcp.pop %v816
      %v866 = vrcp.pop %v819
      %v867 = vmul.f32 %v859, %v865
      %v868 = vmul.f32 %v862, %v866
      %v869 = vpack.c.bf16 %v868, %v867
      %870 = vst.msk [vmem:[#allocation3] sm:$0xff] %vm745, %v869
      %v871 = vld [vmem:[#allocation2] sm:$0xff]
      %v872 = vld [vmem:[#allocation2 + $0x8] sm:$0xff]
      %874 = vrot.lane.b32.xlu0 %v742, 96
      %v875 = vpop.permute.xlu0 %874
      %877 = vrot.lane.b32.xlu0 %v871, 96
      %v878 = vpop.permute.xlu0 %877
      %v880 = vsel %vm745, %v875, 0
      %v883 = vsel %vm745, %v878, 0
      %885 = vmatprep.subr.bf16.mxu0 0
      %886 = vmatpush1.bf16.xpose.msra.mxu0 %v883
      %887 = vmatprep.subr.bf16.mxu0 0
      %888 = vmatpush1.bf16.xpose.msra.mxu0 0
      %889 = vmatprep.subr.bf16.mxu0 0
      %890 = vmatpush1.bf16.xpose.msra.mxu0 0
      %891 = vmatprep.subr.bf16.mxu0 0
      %892 = vmatpush1.bf16.xpose.msra.mxu0 0
      %893 = vmatprep.subr.bf16.mxu0 0
      %894 = vmatpush1.bf16.xpose.msra.mxu0 0
      %895 = vmatprep.subr.bf16.mxu0 0
      %896 = vmatpush1.bf16.xpose.msra.mxu0 0
      %897 = vmatprep.subr.bf16.mxu0 0
      %898 = vmatpush1.bf16.xpose.msra.mxu0 0
      %899 = vmatprep.subr.bf16.mxu0 0
      %900 = vmatpush1.bf16.xpose.msra.mxu0 0
      %901 = vmatprep.subr.bf16.mxu0 0
      %902 = vmatpush1.bf16.xpose.msra.mxu0 0
      %903 = vmatprep.subr.bf16.mxu0 0
      %904 = vmatpush1.bf16.xpose.msra.mxu0 0
      %905 = vmatprep.subr.bf16.mxu0 0
      %906 = vmatpush1.bf16.xpose.msra.mxu0 0
      %907 = vmatprep.subr.bf16.mxu0 0
      %908 = vmatpush1.bf16.xpose.msra.mxu0 0
      %909 = vmatprep.subr.bf16.mxu0 0
      %910 = vmatpush1.bf16.xpose.msra.mxu0 0
      %911 = vmatprep.subr.bf16.mxu0 0
      %912 = vmatpush1.bf16.xpose.msra.mxu0 0
      %913 = vmatprep.subr.bf16.mxu0 0
      %914 = vmatpush1.bf16.xpose.msra.mxu0 0
      %915 = vmatprep.subr.bf16.mxu0 0
      %916 = vmatpush1.bf16.xpose.msra.mxu0 0
      %917 = vmatprep.mubr.bf16.mxu0 0
      %918 = vmatmul.mubr.bf16.gmra.mrb[0].mxu0 %v880
      %v919 = vpop.f32.mrb[0].mxu0
      %v920 = vadd.f32 0.0, %v919
      %v921 = vpop.f32.mrb[0].mxu0
      %v922 = vpop.f32.mrb[0].mxu0
      %v923 = vadd.f32 0.0, %v922
      %v924 = vpop.f32.mrb[0].mxu0
      %925 = vdwg.mxu0
      %v926 = vsel %vm798, %v920, -1e+09
      %v927 = vsel %vm798, %v923, -1e+09
      %v928 = vsel %vm801, %v926, -inf
      %929 = vmax.xlane.f32.xlu0 %v928
      %v930 = vpop.xlane.xlu0 %929
      %v931 = vsel %vm801, %v927, -inf
      %932 = vmax.xlane.f32.xlu0 %v931
      %v933 = vpop.xlane.xlu0 %932
      %v934 = vsub.f32 %v926, %v930
      %v935 = vsub.f32 %v927, %v933
      %v936 = vmul.f32 %v934, 1.442695
      %v937 = vpow.pop %v936
      %v938 = vmul.f32 %v935, 1.442695
      %v939 = vpow.pop %v938
      %v940 = vsel %vm801, %v937, 0.0
      %941 = vadd.xlane.f32.xlu0 %v940
      %v942 = vpop.xlane.xlu0 %941
      %v943 = vsel %vm801, %v939, 0.0
      %944 = vadd.xlane.f32.xlu0 %v943
      %v945 = vpop.xlane.xlu0 %944
      %v946 = vpack.c.bf16 %v939, %v937
      %948 = vrot.lane.b32.xlu0 %v872, 96
      %v949 = vpop.permute.xlu0 %948
      %v952 = vsel %vm801, %v946, 0
      %954 = vmatprep.subr.bf16.mxu0 0
      %955 = vmatpush1.bf16.msra.mxu0 %v949
      %956 = vmatprep.subr.bf16.mxu0 0
      %957 = vmatpush1.bf16.msra.mxu0 0
      %958 = vmatprep.subr.bf16.mxu0 0
      %959 = vmatpush1.bf16.msra.mxu0 0
      %960 = vmatprep.subr.bf16.mxu0 0
      %961 = vmatpush1.bf16.msra.mxu0 0
      %962 = vmatprep.subr.bf16.mxu0 0
      %963 = vmatpush1.bf16.msra.mxu0 0
      %964 = vmatprep.subr.bf16.mxu0 0
      %965 = vmatpush1.bf16.msra.mxu0 0
      %966 = vmatprep.subr.bf16.mxu0 0
      %967 = vmatpush1.bf16.msra.mxu0 0
      %968 = vmatprep.subr.bf16.mxu0 0
      %969 = vmatpush1.bf16.msra.mxu0 0
      %970 = vmatprep.subr.bf16.mxu0 0
      %971 = vmatpush1.bf16.msra.mxu0 0
      %972 = vmatprep.subr.bf16.mxu0 0
      %973 = vmatpush1.bf16.msra.mxu0 0
      %974 = vmatprep.subr.bf16.mxu0 0
      %975 = vmatpush1.bf16.msra.mxu0 0
      %976 = vmatprep.subr.bf16.mxu0 0
      %977 = vmatpush1.bf16.msra.mxu0 0
      %978 = vmatprep.subr.bf16.mxu0 0
      %979 = vmatpush1.bf16.msra.mxu0 0
      %980 = vmatprep.subr.bf16.mxu0 0
      %981 = vmatpush1.bf16.msra.mxu0 0
      %982 = vmatprep.subr.bf16.mxu0 0
      %983 = vmatpush1.bf16.msra.mxu0 0
      %984 = vmatprep.subr.bf16.mxu0 0
      %985 = vmatpush1.bf16.msra.mxu0 0
      %986 = vmatprep.mubr.bf16.mxu0 0
      %987 = vmatmul.mubr.bf16.gmra.mrb[0].mxu0 %v952
      %v988 = vpop.f32.mrb[0].mxu0
      %v989 = vadd.f32 0.0, %v988
      %v990 = vpop.f32.mrb[0].mxu0
      %v991 = vpop.f32.mrb[0].mxu0
      %v992 = vadd.f32 0.0, %v991
      %v993 = vpop.f32.mrb[0].mxu0
      %994 = vdwg.mxu0
      %v995 = vrcp.pop %v942
      %v996 = vrcp.pop %v945
      %v997 = vmul.f32 %v989, %v995
      %v998 = vmul.f32 %v992, %v996
      %v999 = vpack.c.bf16 %v998, %v997
      %1001 = vrot.lane.b32.xlu0 %v999, 32
      %v1002 = vpop.permute.xlu0 %1001
      %vm1004 = vcmask 523520
      %1005 = vst.msk [vmem:[#allocation3] sm:$0xff] %vm1004, %v1002
      %v1006 = vld [vmem:[#allocation2] sm:$0xff]
      %v1007 = vld [vmem:[#allocation2 + $0x8] sm:$0xff]
      %1008 = vrot.lane.b32.xlu0 %v742, 64
      %v1009 = vpop.permute.xlu0 %1008
      %1011 = vrot.lane.b32.xlu0 %v1006, 64
      %v1012 = vpop.permute.xlu0 %1011
      %v1014 = vsel %vm745, %v1009, 0
      %v1017 = vsel %vm745, %v1012, 0
      %1019 = vmatprep.subr.bf16.mxu0 0
      %1020 = vmatpush1.bf16.xpose.msra.mxu0 %v1017
      %1021 = vmatprep.subr.bf16.mxu0 0
      %1022 = vmatpush1.bf16.xpose.msra.mxu0 0
      %1023 = vmatprep.subr.bf16.mxu0 0
      %1024 = vmatpush1.bf16.xpose.msra.mxu0 0
      %1025 = vmatprep.subr.bf16.mxu0 0
      %1026 = vmatpush1.bf16.xpose.msra.mxu0 0
      %1027 = vmatprep.subr.bf16.mxu0 0
      %1028 = vmatpush1.bf16.xpose.msra.mxu0 0
      %1029 = vmatprep.subr.bf16.mxu0 0
      %1030 = vmatpush1.bf16.xpose.msra.mxu0 0
      %1031 = vmatprep.subr.bf16.mxu0 0
      %1032 = vmatpush1.bf16.xpose.msra.mxu0 0
      %1033 = vmatprep.subr.bf16.mxu0 0
      %1034 = vmatpush1.bf16.xpose.msra.mxu0 0
      %1035 = vmatprep.subr.bf16.mxu0 0
      %1036 = vmatpush1.bf16.xpose.msra.mxu0 0
      %1037 = vmatprep.subr.bf16.mxu0 0
      %1038 = vmatpush1.bf16.xpose.msra.mxu0 0
      %1039 = vmatprep.subr.bf16.mxu0 0
      %1040 = vmatpush1.bf16.xpose.msra.mxu0 0
      %1041 = vmatprep.subr.bf16.mxu0 0
      %1042 = vmatpush1.bf16.xpose.msra.mxu0 0
      %1043 = vmatprep.subr.bf16.mxu0 0
      %1044 = vmatpush1.bf16.xpose.msra.mxu0 0
      %1045 = vmatprep.subr.bf16.mxu0 0
      %1046 = vmatpush1.bf16.xpose.msra.mxu0 0
      %1047 = vmatprep.subr.bf16.mxu0 0
      %1048 = vmatpush1.bf16.xpose.msra.mxu0 0
      %1049 = vmatprep.subr.bf16.mxu0 0
      %1050 = vmatpush1.bf16.xpose.msra.mxu0 0
      %1051 = vmatprep.mubr.bf16.mxu0 0
      %1052 = vmatmul.mubr.bf16.gmra.mrb[0].mxu0 %v1014
      %v1053 = vpop.f32.mrb[0].mxu0
      %v1054 = vadd.f32 0.0, %v1053
      %v1055 = vpop.f32.mrb[0].mxu0
      %v1056 = vpop.f32.mrb[0].mxu0
      %v1057 = vadd.f32 0.0, %v1056
      %v1058 = vpop.f32.mrb[0].mxu0
      %1059 = vdwg.mxu0
      %v1060 = vsel %vm798, %v1054, -1e+09
      %v1061 = vsel %vm798, %v1057, -1e+09
      %v1062 = vsel %vm801, %v1060, -inf
      %1063 = vmax.xlane.f32.xlu0 %v1062
      %v1064 = vpop.xlane.xlu0 %1063
      %v1065 = vsel %vm801, %v1061, -inf
      %1066 = vmax.xlane.f32.xlu0 %v1065
      %v1067 = vpop.xlane.xlu0 %1066
      %v1068 = vsub.f32 %v1060, %v1064
      %v1069 = vsub.f32 %v1061, %v1067
      %v1070 = vmul.f32 %v1068, 1.442695
      %v1071 = vpow.pop %v1070
      %v1072 = vmul.f32 %v1069, 1.442695
      %v1073 = vpow.pop %v1072
      %v1074 = vsel %vm801, %v1071, 0.0
      %1075 = vadd.xlane.f32.xlu0 %v1074
      %v1076 = vpop.xlane.xlu0 %1075
      %v1077 = vsel %vm801, %v1073, 0.0
      %1078 = vadd.xlane.f32.xlu0 %v1077
      %v1079 = vpop.xlane.xlu0 %1078
      %v1080 = vpack.c.bf16 %v1073, %v1071
      %1082 = vrot.lane.b32.xlu0 %v1007, 64
      %v1083 = vpop.permute.xlu0 %1082
      %v1086 = vsel %vm801, %v1080, 0
      %1088 = vmatprep.subr.bf16.mxu0 0
      %1089 = vmatpush1.bf16.msra.mxu0 %v1083
      %1090 = vmatprep.subr.bf16.mxu0 0
      %1091 = vmatpush1.bf16.msra.mxu0 0
      %1092 = vmatprep.subr.bf16.mxu0 0
      %1093 = vmatpush1.bf16.msra.mxu0 0
      %1094 = vmatprep.subr.bf16.mxu0 0
      %1095 = vmatpush1.bf16.msra.mxu0 0
      %1096 = vmatprep.subr.bf16.mxu0 0
      %1097 = vmatpush1.bf16.msra.mxu0 0
      %1098 = vmatprep.subr.bf16.mxu0 0
      %1099 = vmatpush1.bf16.msra.mxu0 0
      %1100 = vmatprep.subr.bf16.mxu0 0
      %1101 = vmatpush1.bf16.msra.mxu0 0
      %1102 = vmatprep.subr.bf16.mxu0 0
      %1103 = vmatpush1.bf16.msra.mxu0 0
      %1104 = vmatprep.subr.bf16.mxu0 0
      %1105 = vmatpush1.bf16.msra.mxu0 0
      %1106 = vmatprep.subr.bf16.mxu0 0
      %1107 = vmatpush1.bf16.msra.mxu0 0
      %1108 = vmatprep.subr.bf16.mxu0 0
      %1109 = vmatpush1.bf16.msra.mxu0 0
      %1110 = vmatprep.subr.bf16.mxu0 0
      %1111 = vmatpush1.bf16.msra.mxu0 0
      %1112 = vmatprep.subr.bf16.mxu0 0
      %1113 = vmatpush1.bf16.msra.mxu0 0
      %1114 = vmatprep.subr.bf16.mxu0 0
      %1115 = vmatpush1.bf16.msra.mxu0 0
      %1116 = vmatprep.subr.bf16.mxu0 0
      %1117 = vmatpush1.bf16.msra.mxu0 0
      %1118 = vmatprep.subr.bf16.mxu0 0
      %1119 = vmatpush1.bf16.msra.mxu0 0
      %1120 = vmatprep.mubr.bf16.mxu0 0
      %1121 = vmatmul.mubr.bf16.gmra.mrb[0].mxu0 %v1086
      %v1122 = vpop.f32.mrb[0].mxu0
      %v1123 = vadd.f32 0.0, %v1122
      %v1124 = vpop.f32.mrb[0].mxu0
      %v1125 = vpop.f32.mrb[0].mxu0
      %v1126 = vadd.f32 0.0, %v1125
      %v1127 = vpop.f32.mrb[0].mxu0
      %1128 = vdwg.mxu0
      %v1129 = vrcp.pop %v1076
      %v1130 = vrcp.pop %v1079
      %v1131 = vmul.f32 %v1123, %v1129
      %v1132 = vmul.f32 %v1126, %v1130
      %v1133 = vpack.c.bf16 %v1132, %v1131
      %1135 = vrot.lane.b32.xlu0 %v1133, 64
      %v1136 = vpop.permute.xlu0 %1135
      %vm1138 = vcmask 785920
      %1139 = vst.msk [vmem:[#allocation3] sm:$0xff] %vm1138, %v1136
      %v1140 = vld [vmem:[#allocation2] sm:$0xff]
      %v1141 = vld [vmem:[#allocation2 + $0x8] sm:$0xff]
      %1142 = vrot.lane.b32.xlu0 %v742, 32
      %v1143 = vpop.permute.xlu0 %1142
      %1145 = vrot.lane.b32.xlu0 %v1140, 32
      %v1146 = vpop.permute.xlu0 %1145
      %v1148 = vsel %vm745, %v1143, 0
      %v1151 = vsel %vm745, %v1146, 0
      %1153 = vmatprep.subr.bf16.mxu0 0
      %1154 = vmatpush1.bf16.xpose.msra.mxu0 %v1151
      %1155 = vmatprep.subr.bf16.mxu0 0
      %1156 = vmatpush1.bf16.xpose.msra.mxu0 0
      %1157 = vmatprep.subr.bf16.mxu0 0
      %1158 = vmatpush1.bf16.xpose.msra.mxu0 0
      %1159 = vmatprep.subr.bf16.mxu0 0
      %1160 = vmatpush1.bf16.xpose.msra.mxu0 0
      %1161 = vmatprep.subr.bf16.mxu0 0
      %1162 = vmatpush1.bf16.xpose.msra.mxu0 0
      %1163 = vmatprep.subr.bf16.mxu0 0
      %1164 = vmatpush1.bf16.xpose.msra.mxu0 0
      %1165 = vmatprep.subr.bf16.mxu0 0
      %1166 = vmatpush1.bf16.xpose.msra.mxu0 0
      %1167 = vmatprep.subr.bf16.mxu0 0
      %1168 = vmatpush1.bf16.xpose.msra.mxu0 0
      %1169 = vmatprep.subr.bf16.mxu0 0
      %1170 = vmatpush1.bf16.xpose.msra.mxu0 0
      %1171 = vmatprep.subr.bf16.mxu0 0
      %1172 = vmatpush1.bf16.xpose.msra.mxu0 0
      %1173 = vmatprep.subr.bf16.mxu0 0
      %1174 = vmatpush1.bf16.xpose.msra.mxu0 0
      %1175 = vmatprep.subr.bf16.mxu0 0
      %1176 = vmatpush1.bf16.xpose.msra.mxu0 0
      %1177 = vmatprep.subr.bf16.mxu0 0
      %1178 = vmatpush1.bf16.xpose.msra.mxu0 0
      %1179 = vmatprep.subr.bf16.mxu0 0
      %1180 = vmatpush1.bf16.xpose.msra.mxu0 0
      %1181 = vmatprep.subr.bf16.mxu0 0
      %1182 = vmatpush1.bf16.xpose.msra.mxu0 0
      %1183 = vmatprep.subr.bf16.mxu0 0
      %1184 = vmatpush1.bf16.xpose.msra.mxu0 0
      %1185 = vmatprep.mubr.bf16.mxu0 0
      %1186 = vmatmul.mubr.bf16.gmra.mrb[0].mxu0 %v1148
      %v1187 = vpop.f32.mrb[0].mxu0
      %v1188 = vadd.f32 0.0, %v1187
      %v1189 = vpop.f32.mrb[0].mxu0
      %v1190 = vpop.f32.mrb[0].mxu0
      %v1191 = vadd.f32 0.0, %v1190
      %v1192 = vpop.f32.mrb[0].mxu0
      %1193 = vdwg.mxu0
      %v1194 = vsel %vm798, %v1188, -1e+09
      %v1195 = vsel %vm798, %v1191, -1e+09
      %v1196 = vsel %vm801, %v1194, -inf
      %1197 = vmax.xlane.f32.xlu0 %v1196
      %v1198 = vpop.xlane.xlu0 %1197
      %v1199 = vsel %vm801, %v1195, -inf
      %1200 = vmax.xlane.f32.xlu0 %v1199
      %v1201 = vpop.xlane.xlu0 %1200
      %v1202 = vsub.f32 %v1194, %v1198
      %v1203 = vsub.f32 %v1195, %v1201
      %v1204 = vmul.f32 %v1202, 1.442695
      %v1205 = vpow.pop %v1204
      %v1206 = vmul.f32 %v1203, 1.442695
      %v1207 = vpow.pop %v1206
      %v1208 = vsel %vm801, %v1205, 0.0
      %1209 = vadd.xlane.f32.xlu0 %v1208
      %v1210 = vpop.xlane.xlu0 %1209
      %v1211 = vsel %vm801, %v1207, 0.0
      %1212 = vadd.xlane.f32.xlu0 %v1211
      %v1213 = vpop.xlane.xlu0 %1212
      %v1214 = vpack.c.bf16 %v1207, %v1205
      %1216 = vrot.lane.b32.xlu0 %v1141, 32
      %v1217 = vpop.permute.xlu0 %1216
      %v1220 = vsel %vm801, %v1214, 0
      %1222 = vmatprep.subr.bf16.mxu0 0
      %1223 = vmatpush1.bf16.msra.mxu0 %v1217
      %1224 = vmatprep.subr.bf16.mxu0 0
      %1225 = vmatpush1.bf16.msra.mxu0 0
      %1226 = vmatprep.subr.bf16.mxu0 0
      %1227 = vmatpush1.bf16.msra.mxu0 0
      %1228 = vmatprep.subr.bf16.mxu0 0
      %1229 = vmatpush1.bf16.msra.mxu0 0
      %1230 = vmatprep.subr.bf16.mxu0 0
      %1231 = vmatpush1.bf16.msra.mxu0 0
      %1232 = vmatprep.subr.bf16.mxu0 0
      %1233 = vmatpush1.bf16.msra.mxu0 0
      %1234 = vmatprep.subr.bf16.mxu0 0
      %1235 = vmatpush1.bf16.msra.mxu0 0
      %1236 = vmatprep.subr.bf16.mxu0 0
      %1237 = vmatpush1.bf16.msra.mxu0 0
      %1238 = vmatprep.subr.bf16.mxu0 0
      %1239 = vmatpush1.bf16.msra.mxu0 0
      %1240 = vmatprep.subr.bf16.mxu0 0
      %1241 = vmatpush1.bf16.msra.mxu0 0
      %1242 = vmatprep.subr.bf16.mxu0 0
      %1243 = vmatpush1.bf16.msra.mxu0 0
      %1244 = vmatprep.subr.bf16.mxu0 0
      %1245 = vmatpush1.bf16.msra.mxu0 0
      %1246 = vmatprep.subr.bf16.mxu0 0
      %1247 = vmatpush1.bf16.msra.mxu0 0
      %1248 = vmatprep.subr.bf16.mxu0 0
      %1249 = vmatpush1.bf16.msra.mxu0 0
      %1250 = vmatprep.subr.bf16.mxu0 0
      %1251 = vmatpush1.bf16.msra.mxu0 0
      %1252 = vmatprep.subr.bf16.mxu0 0
      %1253 = vmatpush1.bf16.msra.mxu0 0
      %1254 = vmatprep.mubr.bf16.mxu0 0
      %1255 = vmatmul.mubr.bf16.gmra.mrb[0].mxu0 %v1220
      %v1256 = vpop.f32.mrb[0].mxu0
      %v1257 = vadd.f32 0.0, %v1256
      %v1258 = vpop.f32.mrb[0].mxu0
      %v1259 = vpop.f32.mrb[0].mxu0
      %v1260 = vadd.f32 0.0, %v1259
      %v1261 = vpop.f32.mrb[0].mxu0
      %1262 = vdwg.mxu0
      %v1263 = vrcp.pop %v1210
      %v1264 = vrcp.pop %v1213
      %v1265 = vmul.f32 %v1257, %v1263
      %v1266 = vmul.f32 %v1260, %v1264
      %v1267 = vpack.c.bf16 %v1266, %v1265
      %1269 = vrot.lane.b32.xlu0 %v1267, 96
      %v1270 = vpop.permute.xlu0 %1269
      %vm1272 = vcmask 1048320
      %1273 = vst.msk [vmem:[#allocation3] sm:$0xff] %vm1272, %v1270
      %v1274 = vld [vmem:[#allocation3] sm:$0xff]
      %v1275 = vld [vmem:[%s7] sm:$0xf]
      %v1276 = vld [vmem:[%s7 + $0x4] sm:$0xf]
      %v1277 = vld [vmem:[%s7 + $0x8] sm:$0xf]
      %v1278 = vld [vmem:[%s7 + $0xc] sm:$0xf]
      %v1279 = vld [vmem:[%s7 + $0x10] sm:$0xf]
      %v1280 = vld [vmem:[%s7 + $0x14] sm:$0xf]
      %v1281 = vld [vmem:[%s7 + $0x18] sm:$0xf]
      %v1282 = vld [vmem:[%s7 + $0x1c] sm:$0xf]
      %v1283 = vld [vmem:[%s7 + $0x20] sm:$0xf]
      %v1284 = vld [vmem:[%s7 + $0x24] sm:$0xf]
      %v1285 = vld [vmem:[%s7 + $0x28] sm:$0xf]
      %v1286 = vld [vmem:[%s7 + $0x2c] sm:$0xf]
      %v1287 = vld [vmem:[%s7 + $0x30] sm:$0xf]
      %v1288 = vld [vmem:[%s7 + $0x34] sm:$0xf]
      %v1289 = vld [vmem:[%s7 + $0x38] sm:$0xf]
      %v1290 = vld [vmem:[%s7 + $0x3c] sm:$0xf]
      %v1307 = vunpack.c.l.b16 %v1275
      %v1308 = vunpack.c.l.b16 %v1276
      %v1309 = vunpack.c.l.b16 %v1277
      %v1310 = vunpack.c.l.b16 %v1278
      %v1311 = vunpack.c.l.b16 %v1279
      %v1312 = vunpack.c.l.b16 %v1280
      %v1313 = vunpack.c.l.b16 %v1281
      %v1314 = vunpack.c.l.b16 %v1282
      %v1315 = vunpack.c.l.b16 %v1283
      %v1316 = vunpack.c.l.b16 %v1284
      %v1317 = vunpack.c.l.b16 %v1285
      %v1318 = vunpack.c.l.b16 %v1286
      %v1319 = vunpack.c.l.b16 %v1287
      %v1320 = vunpack.c.l.b16 %v1288
      %v1321 = vunpack.c.l.b16 %v1289
      %v1322 = vunpack.c.l.b16 %v1290
      %v1323 = vpack.c.b16 %v1308, %v1307
      %v1324 = vpack.c.b16 %v1310, %v1309
      %v1325 = vpack.c.b16 %v1312, %v1311
      %v1326 = vpack.c.b16 %v1314, %v1313
      %v1327 = vpack.c.b16 %v1316, %v1315
      %v1328 = vpack.c.b16 %v1318, %v1317
      %v1329 = vpack.c.b16 %v1320, %v1319
      %v1330 = vpack.c.b16 %v1322, %v1321
      %1339 = vmatprep.subr.bf16.mxu0 0
      %1340 = vmatpush1.bf16.msra.mxu0 %v1323
      %1341 = vmatprep.subr.bf16.mxu0 0
      %1342 = vmatpush1.bf16.msra.mxu0 %v1324
      %1343 = vmatprep.subr.bf16.mxu0 0
      %1344 = vmatpush1.bf16.msra.mxu0 %v1325
      %1345 = vmatprep.subr.bf16.mxu0 0
      %1346 = vmatpush1.bf16.msra.mxu0 %v1326
      %1347 = vmatprep.subr.bf16.mxu0 0
      %1348 = vmatpush1.bf16.msra.mxu0 %v1327
      %1349 = vmatprep.subr.bf16.mxu0 0
      %1350 = vmatpush1.bf16.msra.mxu0 %v1328
      %1351 = vmatprep.subr.bf16.mxu0 0
      %1352 = vmatpush1.bf16.msra.mxu0 %v1329
      %1353 = vmatprep.subr.bf16.mxu0 0
      %1354 = vmatpush1.bf16.msra.mxu0 %v1330
      %1355 = vmatprep.subr.bf16.mxu0 0
      %1356 = vmatpush1.bf16.msra.mxu0 0
      %1357 = vmatprep.subr.bf16.mxu0 0
      %1358 = vmatpush1.bf16.msra.mxu0 0
      %1359 = vmatprep.subr.bf16.mxu0 0
      %1360 = vmatpush1.bf16.msra.mxu0 0
      %1361 = vmatprep.subr.bf16.mxu0 0
      %1362 = vmatpush1.bf16.msra.mxu0 0
      %1363 = vmatprep.subr.bf16.mxu0 0
      %1364 = vmatpush1.bf16.msra.mxu0 0
      %1365 = vmatprep.subr.bf16.mxu0 0
      %1366 = vmatpush1.bf16.msra.mxu0 0
      %1367 = vmatprep.subr.bf16.mxu0 0
      %1368 = vmatpush1.bf16.msra.mxu0 0
      %1369 = vmatprep.subr.bf16.mxu0 0
      %1370 = vmatpush1.bf16.msra.mxu0 0
      %1371 = vmatprep.mubr.bf16.mxu0 0
      %1372 = vmatmul.mubr.bf16.gmra.mrb[0].mxu0 %v1274
      %v1373 = vpop.f32.mrb[0].mxu0
      %v1374 = vadd.f32 0.0, %v1373
      %v1375 = vpop.f32.mrb[0].mxu0
      %v1376 = vpop.f32.mrb[0].mxu0
      %v1377 = vadd.f32 0.0, %v1376
      %v1378 = vpop.f32.mrb[0].mxu0
      %1379 = vdwg.mxu0
      %v1380 = vadd.f32 %v461, %v1374
      %v1381 = vadd.f32 %v462, %v1377
      %v1382 = vld [vmem:[%s8] sm:$0x1]
      %v1384 = vlaneseq
      %v1385 = vshrl.u32 %v1384, 7
      %v1386 = vsub.s32 0, %v1385
      %v1387 = vrot.slane %v1382, %v1386
      %v1389 = vadd.f32 %v1380, %v1387
      %v1390 = vadd.f32 %v1381, %v1387
      %1391 = vadd.xlane.f32.xlu0 %v1389
      %v1392 = vpop.xlane.xlu0 %1391
      %1393 = vadd.xlane.f32.xlu0 %v1390
      %v1394 = vpop.xlane.xlu0 %1393
      %v1395 = vrcp.pop 128.0
      %v1396 = vmul.f32 %v1392, %v1395
      %v1397 = vmul.f32 %v1394, %v1395
      %v1398 = vsub.f32 %v1389, %v1396
      %v1399 = vsub.f32 %v1390, %v1397
      %v1400 = vmul.f32 %v1398, %v1398
      %v1401 = vmul.f32 %v1399, %v1399
      %1402 = vadd.xlane.f32.xlu0 %v1400
      %v1403 = vpop.xlane.xlu0 %1402
      %1404 = vadd.xlane.f32.xlu0 %v1401
      %v1405 = vpop.xlane.xlu0 %1404
      %v1406 = vmul.f32 %v1403, %v1395
      %v1407 = vmul.f32 %v1405, %v1395
      %v1408 = vadd.f32 %v1406, 1e-05
      %v1409 = vadd.f32 %v1407, 1e-05
      %v1410 = vrsqrt.pop %v1408
      %v1411 = vrsqrt.pop %v1409
      %v1412 = vmul.f32 %v1398, %v1410
      %v1413 = vmul.f32 %v1399, %v1411
      %v1414 = vld [vmem:[%s9] sm:$0x1]
      %v1416 = vlaneseq
      %v1417 = vshrl.u32 %v1416, 7
      %v1418 = vsub.s32 0, %v1417
      %v1419 = vrot.slane %v1414, %v1418
      %v1421 = vmul.f32 %v1412, %v1419
      %v1422 = vmul.f32 %v1413, %v1419
      %v1423 = vld [vmem:[%s10] sm:$0x1]
      %v1425 = vlaneseq
      %v1426 = vshrl.u32 %v1425, 7
      %v1427 = vsub.s32 0, %v1426
      %v1428 = vrot.slane %v1423, %v1427
      %v1430 = vadd.f32 %v1421, %v1428
      %v1431 = vadd.f32 %v1422, %v1428
      %1432 = vst [vmem:[%s458] sm:$0xff] %v1430
      %1433 = vst [vmem:[%s458 + $0x8] sm:$0xff] %v1431
      %s1434 = smul.u32 2, %s27
      %p1435 = scmp.lt.s32.totalorder %s26, 1
      %s1436 = scalar_select %p1435, %s26, 1
      %p1437 = scmp.lt.s32.totalorder %s1434, 1
      %s1438 = scalar_select %p1437, %s1434, 1
      %s1439 = smul.addr %s1436, 2
      %s1440 = sadd.s32 %s1438, %s1439
      %s1441 = smul.addr %s1440, 8
      %s1442 = scalar_lea.vmem %s11, %s1441
      // Predicated region
      $region69: #{transformer_forward.11} parent=63 // pred_check
        %p1443 = pneg %p302
      $region70: #{transformer_forward.11} parent=63 // pred_check_branch
        %1445 = sbr.rel (%p1443) target = $region72
      $region71: #{transformer_forward.11} parent=63 // pred_region
        %s1446 = smul.u32 2, %s27
      $region72: #{transformer_forward.11} parent=63 // pred_fallthru
        _
    $region64: #{transformer_forward.11} parent=5 // pred_fallthru
      _
    %p1447 = scmp.le.s32.totalorder 2, %s17
    // Predicated region
    $region73: #{transformer_forward.11} parent=5 // pred_check
      %p1448 = pneg %p1447
    $region74: #{transformer_forward.11} parent=5 // pred_check_branch
      %1450 = sbr.rel (%p1448) target = $region76
    $region75: #{transformer_forward.11} parent=5 // pred_region
      %s1451 = ssub.s32 %s17, 2
      // Predicated region
      $region77: #{transformer_forward.11} parent=75 // pred_check
        %p1452 = pneg %p308
      $region78: #{transformer_forward.11} parent=75 // pred_check_branch
        %1454 = sbr.rel (%p1452) target = $region80
      $region79: #{transformer_forward.11} parent=75 // pred_region
        %s1455 = smul.u32 2, %s29
        %p1456 = scmp.lt.s32.totalorder %s28, 1
        %s1457 = scalar_select %p1456, %s28, 1
        %p1458 = scmp.lt.s32.totalorder %s1455, 1
        %s1459 = scalar_select %p1458, %s1455, 1
        %s1460 = smul.addr %s1457, 2
        %s1461 = sadd.s32 %s1459, %s1460
        %s1462 = smul.addr %s1461, 8
        %s1463 = scalar_lea.vmem %s11, %s1462
      $region80: #{transformer_forward.11} parent=75 // pred_fallthru
        _
    $region76: #{transformer_forward.11} parent=5 // pred_fallthru
      _
  $region6: #{transformer_forward.11} parent=0 // loop_footer
    %s21 = sadd.s32 1, %s17
  $region7: #{transformer_forward.11} parent=0 // loop_footer_branch
    %16 = sbr.rel target = $region3
  $region8: #{transformer_forward.11} parent=0 // loop_exit
    _

// kernel: transformer_forward.12
$region0: #{transformer_forward.12}
  #allocation0 [shape = 'u32[]', space=smem, size = 0x4, offset = 0x4, fixed_abs, tag = 'smem constant byte address 0x4 - core index']
  #allocation1 [shape = 'u32[144,128]{1,0:T(1,128)}', space=vmem, size = 0x12000, scoped, tag = 'internal scratch']
  #allocation2 [shape = 'f32[32,128]{1,0:T(8,128)}', space=vmem, size = 0x4000, scoped, tag = 'scratch operand']
  %s0 = inlined_call_operand.vmem [shape: f32[32,128], index: 0, kind: input, shape index: {}]
  %s1 = inlined_call_operand.vmem [shape: bf16[128,512], index: 1, kind: input, shape index: {}]
  %s2 = inlined_call_operand.vmem [shape: f32[1,512], index: 2, kind: input, shape index: {}]
  %s3 = inlined_call_operand.vmem [shape: bf16[512,128], index: 3, kind: input, shape index: {}]
  %s4 = inlined_call_operand.vmem [shape: f32[1,128], index: 4, kind: input, shape index: {}]
  %s5 = inlined_call_operand.vmem [shape: f32[1,128], index: 5, kind: input, shape index: {}]
  %s6 = inlined_call_operand.vmem [shape: f32[1,128], index: 6, kind: input, shape index: {}]
  %s7 = inlined_call_operand.vmem [shape: f32[32,128], index: 7, kind: output, shape index: {}]
  %s8 = sld [smem:[#allocation0]]
  $region46: #{transformer_forward.12} parent=0
    _
  %s10 = ssub.s32 1, %s8
  %s11 = scalar_select 0, %s10, %s8
  // Predicated region
  $region2: #{transformer_forward.12} parent=0 // pred_check
    _
  $region3: #{transformer_forward.12} parent=0 // pred_check_branch
    %13 = sbr.rel (0) target = $region5
  $region4: #{transformer_forward.12} parent=0 // pred_region
    _
  $region5: #{transformer_forward.12} parent=0 // pred_fallthru
    _
  // Predicated region
  $region6: #{transformer_forward.12} parent=0 // pred_check
    _
  $region7: #{transformer_forward.12} parent=0 // pred_check_branch
    %15 = sbr.rel (0) target = $region9
  $region8: #{transformer_forward.12} parent=0 // pred_region
    _
  $region9: #{transformer_forward.12} parent=0 // pred_fallthru
    _
  // Predicated region
  $region10: #{transformer_forward.12} parent=0 // pred_check
    _
  $region11: #{transformer_forward.12} parent=0 // pred_check_branch
    %17 = sbr.rel (0) target = $region13
  $region12: #{transformer_forward.12} parent=0 // pred_region
    _
  $region13: #{transformer_forward.12} parent=0 // pred_fallthru
    _
  // Predicated region
  $region14: #{transformer_forward.12} parent=0 // pred_check
    _
  $region15: #{transformer_forward.12} parent=0 // pred_check_branch
    %19 = sbr.rel (0) target = $region17
  $region16: #{transformer_forward.12} parent=0 // pred_region
    _
  $region17: #{transformer_forward.12} parent=0 // pred_fallthru
    _
  // Predicated region
  $region18: #{transformer_forward.12} parent=0 // pred_check
    _
  $region19: #{transformer_forward.12} parent=0 // pred_check_branch
    %21 = sbr.rel (0) target = $region21
  $region20: #{transformer_forward.12} parent=0 // pred_region
    _
  $region21: #{transformer_forward.12} parent=0 // pred_fallthru
    _
  // Predicated region
  $region22: #{transformer_forward.12} parent=0 // pred_check
    _
  $region23: #{transformer_forward.12} parent=0 // pred_check_branch
    %23 = sbr.rel (0) target = $region25
  $region24: #{transformer_forward.12} parent=0 // pred_region
    _
  $region25: #{transformer_forward.12} parent=0 // pred_fallthru
    _
  // Predicated region
  $region26: #{transformer_forward.12} parent=0 // pred_check
    _
  $region27: #{transformer_forward.12} parent=0 // pred_check_branch
    %25 = sbr.rel (0) target = $region29
  $region28: #{transformer_forward.12} parent=0 // pred_region
    _
  $region29: #{transformer_forward.12} parent=0 // pred_fallthru
    _
  %p27 = scmp.eq.s32.totalorder 0, 0
  // Predicated region
  $region30: #{transformer_forward.12} parent=0 // pred_check
    %p28 = pneg %p27
  $region31: #{transformer_forward.12} parent=0 // pred_check_branch
    %30 = sbr.rel (%p28) target = $region33
  $region32: #{transformer_forward.12} parent=0 // pred_region
    %31 = vst [vmem:[#allocation2] sm:$0xff] 0.0
    %32 = vst [vmem:[#allocation2 + $0x8] sm:$0xff] 0.0
    %33 = vst [vmem:[#allocation2 + $0x10] sm:$0xff] 0.0
    %34 = vst [vmem:[#allocation2 + $0x18] sm:$0xff] 0.0
  $region33: #{transformer_forward.12} parent=0 // pred_fallthru
    _
  %v35 = vld [vmem:[%s0] sm:$0xff]
  %v36 = vld [vmem:[%s0 + $0x8] sm:$0xff]
  %v37 = vld [vmem:[%s0 + $0x10] sm:$0xff]
  %v38 = vld [vmem:[%s0 + $0x18] sm:$0xff]
  %v39 = vpack.c.bf16 %v36, %v35
  %v40 = vpack.c.bf16 %v38, %v37
  %v41 = vld [vmem:[%s1] sm:$0xff]
  %v42 = vld [vmem:[%s1 + $0x8] sm:$0xff]
  %v43 = vld [vmem:[%s1 + $0x10] sm:$0xff]
  %v44 = vld [vmem:[%s1 + $0x18] sm:$0xff]
  %v45 = vld [vmem:[%s1 + $0x20] sm:$0xff]
  %v46 = vld [vmem:[%s1 + $0x28] sm:$0xff]
  %v47 = vld [vmem:[%s1 + $0x30] sm:$0xff]
  %v48 = vld [vmem:[%s1 + $0x38] sm:$0xff]
  %v49 = vld [vmem:[%s1 + $0x40] sm:$0xff]
  %v50 = vld [vmem:[%s1 + $0x48] sm:$0xff]
  %v51 = vld [vmem:[%s1 + $0x50] sm:$0xff]
  %v52 = vld [vmem:[%s1 + $0x58] sm:$0xff]
  %v53 = vld [vmem:[%s1 + $0x60] sm:$0xff]
  %v54 = vld [vmem:[%s1 + $0x68] sm:$0xff]
  %v55 = vld [vmem:[%s1 + $0x70] sm:$0xff]
  %v56 = vld [vmem:[%s1 + $0x78] sm:$0xff]
  %v57 = vld [vmem:[%s1 + $0x80] sm:$0xff]
  %v58 = vld [vmem:[%s1 + $0x88] sm:$0xff]
  %v59 = vld [vmem:[%s1 + $0x90] sm:$0xff]
  %v60 = vld [vmem:[%s1 + $0x98] sm:$0xff]
  %v61 = vld [vmem:[%s1 + $0xa0] sm:$0xff]
  %v62 = vld [vmem:[%s1 + $0xa8] sm:$0xff]
  %v63 = vld [vmem:[%s1 + $0xb0] sm:$0xff]
  %v64 = vld [vmem:[%s1 + $0xb8] sm:$0xff]
  %v65 = vld [vmem:[%s1 + $0xc0] sm:$0xff]
  %v66 = vld [vmem:[%s1 + $0xc8] sm:$0xff]
  %v67 = vld [vmem:[%s1 + $0xd0] sm:$0xff]
  %v68 = vld [vmem:[%s1 + $0xd8] sm:$0xff]
  %v69 = vld [vmem:[%s1 + $0xe0] sm:$0xff]
  %v70 = vld [vmem:[%s1 + $0xe8] sm:$0xff]
  %v71 = vld [vmem:[%s1 + $0xf0] sm:$0xff]
  %v72 = vld [vmem:[%s1 + $0xf8] sm:$0xff]
  %v73 = vld [vmem:[%s2] sm:$0xf]
  %v75 = vlaneseq
  %v76 = vshrl.u32 %v75, 7
  %v77 = vsub.s32 0, %v76
  %v78 = vrot.slane %v73, %v77
  %v79 = vlaneseq
  %v80 = vshrl.u32 %v79, 7
  %v81 = vsub.s32 1, %v80
  %v82 = vrot.slane %v73, %v81
  %v83 = vlaneseq
  %v84 = vshrl.u32 %v83, 7
  %v85 = vsub.s32 2, %v84
  %v86 = vrot.slane %v73, %v85
  %v87 = vlaneseq
  %v88 = vshrl.u32 %v87, 7
  %v89 = vsub.s32 3, %v88
  %v90 = vrot.slane %v73, %v89
  %v127 = vunpack.c.l.b16 %v41
  %v128 = vunpack.c.h.b16 %v41
  %v129 = vunpack.c.l.b16 %v42
  %v130 = vunpack.c.h.b16 %v42
  %v131 = vunpack.c.l.b16 %v43
  %v132 = vunpack.c.h.b16 %v43
  %v133 = vunpack.c.l.b16 %v44
  %v134 = vunpack.c.h.b16 %v44
  %v135 = vunpack.c.l.b16 %v45
  %v136 = vunpack.c.h.b16 %v45
  %v137 = vunpack.c.l.b16 %v46
  %v138 = vunpack.c.h.b16 %v46
  %v139 = vunpack.c.l.b16 %v47
  %v140 = vunpack.c.h.b16 %v47
  %v141 = vunpack.c.l.b16 %v48
  %v142 = vunpack.c.h.b16 %v48
  %v143 = vunpack.c.l.b16 %v49
  %v144 = vunpack.c.h.b16 %v49
  %v145 = vunpack.c.l.b16 %v50
  %v146 = vunpack.c.h.b16 %v50
  %v147 = vunpack.c.l.b16 %v51
  %v148 = vunpack.c.h.b16 %v51
  %v149 = vunpack.c.l.b16 %v52
  %v150 = vunpack.c.h.b16 %v52
  %v151 = vunpack.c.l.b16 %v53
  %v152 = vunpack.c.h.b16 %v53
  %v153 = vunpack.c.l.b16 %v54
  %v154 = vunpack.c.h.b16 %v54
  %v155 = vunpack.c.l.b16 %v55
  %v156 = vunpack.c.h.b16 %v55
  %v157 = vunpack.c.l.b16 %v56
  %v158 = vunpack.c.h.b16 %v56
  %v159 = vunpack.c.l.b16 %v57
  %v160 = vunpack.c.h.b16 %v57
  %v161 = vunpack.c.l.b16 %v58
  %v162 = vunpack.c.h.b16 %v58
  %v163 = vunpack.c.l.b16 %v59
  %v164 = vunpack.c.h.b16 %v59
  %v165 = vunpack.c.l.b16 %v60
  %v166 = vunpack.c.h.b16 %v60
  %v167 = vunpack.c.l.b16 %v61
  %v168 = vunpack.c.h.b16 %v61
  %v169 = vunpack.c.l.b16 %v62
  %v170 = vunpack.c.h.b16 %v62
  %v171 = vunpack.c.l.b16 %v63
  %v172 = vunpack.c.h.b16 %v63
  %v173 = vunpack.c.l.b16 %v64
  %v174 = vunpack.c.h.b16 %v64
  %v175 = vunpack.c.l.b16 %v65
  %v176 = vunpack.c.h.b16 %v65
  %v177 = vunpack.c.l.b16 %v66
  %v178 = vunpack.c.h.b16 %v66
  %v179 = vunpack.c.l.b16 %v67
  %v180 = vunpack.c.h.b16 %v67
  %v181 = vunpack.c.l.b16 %v68
  %v182 = vunpack.c.h.b16 %v68
  %v183 = vunpack.c.l.b16 %v69
  %v184 = vunpack.c.h.b16 %v69
  %v185 = vunpack.c.l.b16 %v70
  %v186 = vunpack.c.h.b16 %v70
  %v187 = vunpack.c.l.b16 %v71
  %v188 = vunpack.c.h.b16 %v71
  %v189 = vunpack.c.l.b16 %v72
  %v190 = vunpack.c.h.b16 %v72
  %v191 = vpack.c.b16 %v131, %v127
  %v192 = vpack.c.b16 %v132, %v128
  %v193 = vpack.c.b16 %v133, %v129
  %v194 = vpack.c.b16 %v134, %v130
  %v195 = vpack.c.b16 %v139, %v135
  %v196 = vpack.c.b16 %v140, %v136
  %v197 = vpack.c.b16 %v141, %v137
  %v198 = vpack.c.b16 %v142, %v138
  %v199 = vpack.c.b16 %v147, %v143
  %v200 = vpack.c.b16 %v148, %v144
  %v201 = vpack.c.b16 %v149, %v145
  %v202 = vpack.c.b16 %v150, %v146
  %v203 = vpack.c.b16 %v155, %v151
  %v204 = vpack.c.b16 %v156, %v152
  %v205 = vpack.c.b16 %v157, %v153
  %v206 = vpack.c.b16 %v158, %v154
  %v207 = vpack.c.b16 %v163, %v159
  %v208 = vpack.c.b16 %v164, %v160
  %v209 = vpack.c.b16 %v165, %v161
  %v210 = vpack.c.b16 %v166, %v162
  %v211 = vpack.c.b16 %v171, %v167
  %v212 = vpack.c.b16 %v172, %v168
  %v213 = vpack.c.b16 %v173, %v169
  %v214 = vpack.c.b16 %v174, %v170
  %v215 = vpack.c.b16 %v179, %v175
  %v216 = vpack.c.b16 %v180, %v176
  %v217 = vpack.c.b16 %v181, %v177
  %v218 = vpack.c.b16 %v182, %v178
  %v219 = vpack.c.b16 %v187, %v183
  %v220 = vpack.c.b16 %v188, %v184
  %v221 = vpack.c.b16 %v189, %v185
  %v222 = vpack.c.b16 %v190, %v186
  %255 = vmatprep.subr.bf16.mxu0 %v192
  %256 = vmatpush1.bf16.msra.mxu0 %v191
  %257 = vmatprep.subr.bf16.mxu0 %v196
  %258 = vmatpush1.bf16.msra.mxu0 %v195
  %259 = vmatprep.subr.bf16.mxu0 %v200
  %260 = vmatpush1.bf16.msra.mxu0 %v199
  %261 = vmatprep.subr.bf16.mxu0 %v204
  %262 = vmatpush1.bf16.msra.mxu0 %v203
  %263 = vmatprep.subr.bf16.mxu0 %v208
  %264 = vmatpush1.bf16.msra.mxu0 %v207
  %265 = vmatprep.subr.bf16.mxu0 %v212
  %266 = vmatpush1.bf16.msra.mxu0 %v211
  %267 = vmatprep.subr.bf16.mxu0 %v216
  %268 = vmatpush1.bf16.msra.mxu0 %v215
  %269 = vmatprep.subr.bf16.mxu0 %v220
  %270 = vmatpush1.bf16.msra.mxu0 %v219
  %271 = vmatprep.subr.bf16.mxu0 0
  %272 = vmatpush1.bf16.msra.mxu0 0
  %273 = vmatprep.subr.bf16.mxu0 0
  %274 = vmatpush1.bf16.msra.mxu0 0
  %275 = vmatprep.subr.bf16.mxu0 0
  %276 = vmatpush1.bf16.msra.mxu0 0
  %277 = vmatprep.subr.bf16.mxu0 0
  %278 = vmatpush1.bf16.msra.mxu0 0
  %279 = vmatprep.subr.bf16.mxu0 0
  %280 = vmatpush1.bf16.msra.mxu0 0
  %281 = vmatprep.subr.bf16.mxu0 0
  %282 = vmatpush1.bf16.msra.mxu0 0
  %283 = vmatprep.subr.bf16.mxu0 0
  %284 = vmatpush1.bf16.msra.mxu0 0
  %285 = vmatprep.subr.bf16.mxu0 0
  %286 = vmatpush1.bf16.msra.mxu0 0
  %287 = vmatprep.mubr.bf16.mxu0 0
  %288 = vmatmul.mubr.bf16.gmra.mrb[0].mxu0 %v39
  %v289 = vpop.f32.mrb[0].mxu0
  %v290 = vadd.f32 %v78, %v289
  %v291 = vpop.f32.mrb[0].mxu0
  %v292 = vadd.f32 %v82, %v291
  %v293 = vpop.f32.mrb[0].mxu0
  %v294 = vadd.f32 %v78, %v293
  %v295 = vpop.f32.mrb[0].mxu0
  %v296 = vadd.f32 %v82, %v295
  %297 = vmatprep.mubr.bf16.mxu0 0
  %298 = vmatmul.mubr.bf16.gmra.mrb[0].mxu0 %v40
  %v299 = vpop.f32.mrb[0].mxu0
  %v300 = vadd.f32 %v78, %v299
  %v301 = vpop.f32.mrb[0].mxu0
  %v302 = vadd.f32 %v82, %v301
  %v303 = vpop.f32.mrb[0].mxu0
  %v304 = vadd.f32 %v78, %v303
  %v305 = vpop.f32.mrb[0].mxu0
  %v306 = vadd.f32 %v82, %v305
  %307 = vdwg.mxu0
  %308 = vmatprep.subr.bf16.mxu0 %v194
  %309 = vmatpush1.bf16.msra.mxu0 %v193
  %310 = vmatprep.subr.bf16.mxu0 %v198
  %311 = vmatpush1.bf16.msra.mxu0 %v197
  %312 = vmatprep.subr.bf16.mxu0 %v202
  %313 = vmatpush1.bf16.msra.mxu0 %v201
  %314 = vmatprep.subr.bf16.mxu0 %v206
  %315 = vmatpush1.bf16.msra.mxu0 %v205
  %316 = vmatprep.subr.bf16.mxu0 %v210
  %317 = vmatpush1.bf16.msra.mxu0 %v209
  %318 = vmatprep.subr.bf16.mxu0 %v214
  %319 = vmatpush1.bf16.msra.mxu0 %v213
  %320 = vmatprep.subr.bf16.mxu0 %v218
  %321 = vmatpush1.bf16.msra.mxu0 %v217
  %322 = vmatprep.subr.bf16.mxu0 %v222
  %323 = vmatpush1.bf16.msra.mxu0 %v221
  %324 = vmatprep.subr.bf16.mxu0 0
  %325 = vmatpush1.bf16.msra.mxu0 0
  %326 = vmatprep.subr.bf16.mxu0 0
  %327 = vmatpush1.bf16.msra.mxu0 0
  %328 = vmatprep.subr.bf16.mxu0 0
  %329 = vmatpush1.bf16.msra.mxu0 0
  %330 = vmatprep.subr.bf16.mxu0 0
  %331 = vmatpush1.bf16.msra.mxu0 0
  %332 = vmatprep.subr.bf16.mxu0 0
  %333 = vmatpush1.bf16.msra.mxu0 0
  %334 = vmatprep.subr.bf16.mxu0 0
  %335 = vmatpush1.bf16.msra.mxu0 0
  %336 = vmatprep.subr.bf16.mxu0 0
  %337 = vmatpush1.bf16.msra.mxu0 0
  %338 = vmatprep.subr.bf16.mxu0 0
  %339 = vmatpush1.bf16.msra.mxu0 0
  %340 = vmatprep.mubr.bf16.mxu0 0
  %341 = vmatmul.mubr.bf16.gmra.mrb[0].mxu0 %v39
  %v342 = vpop.f32.mrb[0].mxu0
  %v343 = vadd.f32 %v86, %v342
  %v344 = vpop.f32.mrb[0].mxu0
  %v345 = vadd.f32 %v90, %v344
  %v346 = vpop.f32.mrb[0].mxu0
  %v347 = vadd.f32 %v86, %v346
  %v348 = vpop.f32.mrb[0].mxu0
  %v349 = vadd.f32 %v90, %v348
  %350 = vmatprep.mubr.bf16.mxu0 0
  %351 = vmatmul.mubr.bf16.gmra.mrb[0].mxu0 %v40
  %v352 = vpop.f32.mrb[0].mxu0
  %v353 = vadd.f32 %v86, %v352
  %v354 = vpop.f32.mrb[0].mxu0
  %v355 = vadd.f32 %v90, %v354
  %v356 = vpop.f32.mrb[0].mxu0
  %v357 = vadd.f32 %v86, %v356
  %v358 = vpop.f32.mrb[0].mxu0
  %v359 = vadd.f32 %v90, %v358
  %360 = vdwg.mxu0
  %v361 = vmax.f32 %v290, 0.0
  %v362 = vmax.f32 %v292, 0.0
  %v363 = vmax.f32 %v343, 0.0
  %v364 = vmax.f32 %v345, 0.0
  %v365 = vmax.f32 %v294, 0.0
  %v366 = vmax.f32 %v296, 0.0
  %v367 = vmax.f32 %v347, 0.0
  %v368 = vmax.f32 %v349, 0.0
  %v369 = vmax.f32 %v300, 0.0
  %v370 = vmax.f32 %v302, 0.0
  %v371 = vmax.f32 %v353, 0.0
  %v372 = vmax.f32 %v355, 0.0
  %v373 = vmax.f32 %v304, 0.0
  %v374 = vmax.f32 %v306, 0.0
  %v375 = vmax.f32 %v357, 0.0
  %v376 = vmax.f32 %v359, 0.0
  %v377 = vld [vmem:[#allocation2] sm:$0xff]
  %v378 = vld [vmem:[#allocation2 + $0x8] sm:$0xff]
  %v379 = vld [vmem:[#allocation2 + $0x10] sm:$0xff]
  %v380 = vld [vmem:[#allocation2 + $0x18] sm:$0xff]
  %v381 = vpack.c.bf16 %v365, %v361
  %v382 = vpack.c.bf16 %v366, %v362
  %v383 = vpack.c.bf16 %v367, %v363
  %v384 = vpack.c.bf16 %v368, %v364
  %v385 = vpack.c.bf16 %v373, %v369
  %v386 = vpack.c.bf16 %v374, %v370
  %v387 = vpack.c.bf16 %v375, %v371
  %v388 = vpack.c.bf16 %v376, %v372
  %v389 = vld [vmem:[%s3] sm:$0xf]
  %v390 = vld [vmem:[%s3 + $0x4] sm:$0xf]
  %v391 = vld [vmem:[%s3 + $0x8] sm:$0xf]
  %v392 = vld [vmem:[%s3 + $0xc] sm:$0xf]
  %v393 = vld [vmem:[%s3 + $0x10] sm:$0xf]
  %v394 = vld [vmem:[%s3 + $0x14] sm:$0xf]
  %v395 = vld [vmem:[%s3 + $0x18] sm:$0xf]
  %v396 = vld [vmem:[%s3 + $0x1c] sm:$0xf]
  %v397 = vld [vmem:[%s3 + $0x20] sm:$0xf]
  %v398 = vld [vmem:[%s3 + $0x24] sm:$0xf]
  %v399 = vld [vmem:[%s3 + $0x28] sm:$0xf]
  %v400 = vld [vmem:[%s3 + $0x2c] sm:$0xf]
  %v401 = vld [vmem:[%s3 + $0x30] sm:$0xf]
  %v402 = vld [vmem:[%s3 + $0x34] sm:$0xf]
  %v403 = vld [vmem:[%s3 + $0x38] sm:$0xf]
  %v404 = vld [vmem:[%s3 + $0x3c] sm:$0xf]
  %v405 = vld [vmem:[%s3 + $0x40] sm:$0xf]
  %v406 = vld [vmem:[%s3 + $0x44] sm:$0xf]
  %v407 = vld [vmem:[%s3 + $0x48] sm:$0xf]
  %v408 = vld [vmem:[%s3 + $0x4c] sm:$0xf]
  %v409 = vld [vmem:[%s3 + $0x50] sm:$0xf]
  %v410 = vld [vmem:[%s3 + $0x54] sm:$0xf]
  %v411 = vld [vmem:[%s3 + $0x58] sm:$0xf]
  %v412 = vld [vmem:[%s3 + $0x5c] sm:$0xf]
  %v413 = vld [vmem:[%s3 + $0x60] sm:$0xf]
  %v414 = vld [vmem:[%s3 + $0x64] sm:$0xf]
  %v415 = vld [vmem:[%s3 + $0x68] sm:$0xf]
  %v416 = vld [vmem:[%s3 + $0x6c] sm:$0xf]
  %v417 = vld [vmem:[%s3 + $0x70] sm:$0xf]
  %v418 = vld [vmem:[%s3 + $0x74] sm:$0xf]
  %v419 = vld [vmem:[%s3 + $0x78] sm:$0xf]
  %v420 = vld [vmem:[%s3 + $0x7c] sm:$0xf]
  %v421 = vld [vmem:[%s3 + $0x80] sm:$0xf]
  %v422 = vld [vmem:[%s3 + $0x84] sm:$0xf]
  %v423 = vld [vmem:[%s3 + $0x88] sm:$0xf]
  %v424 = vld [vmem:[%s3 + $0x8c] sm:$0xf]
  %v425 = vld [vmem:[%s3 + $0x90] sm:$0xf]
  %v426 = vld [vmem:[%s3 + $0x94] sm:$0xf]
  %v427 = vld [vmem:[%s3 + $0x98] sm:$0xf]
  %v428 = vld [vmem:[%s3 + $0x9c] sm:$0xf]
  %v429 = vld [vmem:[%s3 + $0xa0] sm:$0xf]
  %v430 = vld [vmem:[%s3 + $0xa4] sm:$0xf]
  %v431 = vld [vmem:[%s3 + $0xa8] sm:$0xf]
  %v432 = vld [vmem:[%s3 + $0xac] sm:$0xf]
  %v433 = vld [vmem:[%s3 + $0xb0] sm:$0xf]
  %v434 = vld [vmem:[%s3 + $0xb4] sm:$0xf]
  %v435 = vld [vmem:[%s3 + $0xb8] sm:$0xf]
  %v436 = vld [vmem:[%s3 + $0xbc] sm:$0xf]
  %v437 = vld [vmem:[%s3 + $0xc0] sm:$0xf]
  %v438 = vld [vmem:[%s3 + $0xc4] sm:$0xf]
  %v439 = vld [vmem:[%s3 + $0xc8] sm:$0xf]
  %v440 = vld [vmem:[%s3 + $0xcc] sm:$0xf]
  %v441 = vld [vmem:[%s3 + $0xd0] sm:$0xf]
  %v442 = vld [vmem:[%s3 + $0xd4] sm:$0xf]
  %v443 = vld [vmem:[%s3 + $0xd8] sm:$0xf]
  %v444 = vld [vmem:[%s3 + $0xdc] sm:$0xf]
  %v445 = vld [vmem:[%s3 + $0xe0] sm:$0xf]
  %v446 = vld [vmem:[%s3 + $0xe4] sm:$0xf]
  %v447 = vld [vmem:[%s3 + $0xe8] sm:$0xf]
  %v448 = vld [vmem:[%s3 + $0xec] sm:$0xf]
  %v449 = vld [vmem:[%s3 + $0xf0] sm:$0xf]
  %v450 = vld [vmem:[%s3 + $0xf4] sm:$0xf]
  %v451 = vld [vmem:[%s3 + $0xf8] sm:$0xf]
  %v452 = vld [vmem:[%s3 + $0xfc] sm:$0xf]
  %v517 = vunpack.c.l.b16 %v389
  %v518 = vunpack.c.l.b16 %v390
  %v519 = vunpack.c.l.b16 %v391
  %v520 = vunpack.c.l.b16 %v392
  %v521 = vunpack.c.l.b16 %v393
  %v522 = vunpack.c.l.b16 %v394
  %v523 = vunpack.c.l.b16 %v395
  %v524 = vunpack.c.l.b16 %v396
  %v525 = vunpack.c.l.b16 %v397
  %v526 = vunpack.c.l.b16 %v398
  %v527 = vunpack.c.l.b16 %v399
  %v528 = vunpack.c.l.b16 %v400
  %v529 = vunpack.c.l.b16 %v401
  %v530 = vunpack.c.l.b16 %v402
  %v531 = vunpack.c.l.b16 %v403
  %v532 = vunpack.c.l.b16 %v404
  %v533 = vunpack.c.l.b16 %v405
  %v534 = vunpack.c.l.b16 %v406
  %v535 = vunpack.c.l.b16 %v407
  %v536 = vunpack.c.l.b16 %v408
  %v537 = vunpack.c.l.b16 %v409
  %v538 = vunpack.c.l.b16 %v410
  %v539 = vunpack.c.l.b16 %v411
  %v540 = vunpack.c.l.b16 %v412
  %v541 = vunpack.c.l.b16 %v413
  %v542 = vunpack.c.l.b16 %v414
  %v543 = vunpack.c.l.b16 %v415
  %v544 = vunpack.c.l.b16 %v416
  %v545 = vunpack.c.l.b16 %v417
  %v546 = vunpack.c.l.b16 %v418
  %v547 = vunpack.c.l.b16 %v419
  %v548 = vunpack.c.l.b16 %v420
  %v549 = vunpack.c.l.b16 %v421
  %v550 = vunpack.c.l.b16 %v422
  %v551 = vunpack.c.l.b16 %v423
  %v552 = vunpack.c.l.b16 %v424
  %v553 = vunpack.c.l.b16 %v425
  %v554 = vunpack.c.l.b16 %v426
  %v555 = vunpack.c.l.b16 %v427
  %v556 = vunpack.c.l.b16 %v428
  %v557 = vunpack.c.l.b16 %v429
  %v558 = vunpack.c.l.b16 %v430
  %v559 = vunpack.c.l.b16 %v431
  %v560 = vunpack.c.l.b16 %v432
  %v561 = vunpack.c.l.b16 %v433
  %v562 = vunpack.c.l.b16 %v434
  %v563 = vunpack.c.l.b16 %v435
  %v564 = vunpack.c.l.b16 %v436
  %v565 = vunpack.c.l.b16 %v437
  %v566 = vunpack.c.l.b16 %v438
  %v567 = vunpack.c.l.b16 %v439
  %v568 = vunpack.c.l.b16 %v440
  %v569 = vunpack.c.l.b16 %v441
  %v570 = vunpack.c.l.b16 %v442
  %v571 = vunpack.c.l.b16 %v443
  %v572 = vunpack.c.l.b16 %v444
  %v573 = vunpack.c.l.b16 %v445
  %v574 = vunpack.c.l.b16 %v446
  %v575 = vunpack.c.l.b16 %v447
  %v576 = vunpack.c.l.b16 %v448
  %v577 = vunpack.c.l.b16 %v449
  %v578 = vunpack.c.l.b16 %v450
  %v579 = vunpack.c.l.b16 %v451
  %v580 = vunpack.c.l.b16 %v452
  %v581 = vpack.c.b16 %v518, %v517
  %v582 = vpack.c.b16 %v520, %v519
  %v583 = vpack.c.b16 %v522, %v521
  %v584 = vpack.c.b16 %v524, %v523
  %v585 = vpack.c.b16 %v526, %v525
  %v586 = vpack.c.b16 %v528, %v527
  %v587 = vpack.c.b16 %v530, %v529
  %v588 = vpack.c.b16 %v532, %v531
  %v589 = vpack.c.b16 %v534, %v533
  %v590 = vpack.c.b16 %v536, %v535
  %v591 = vpack.c.b16 %v538, %v537
  %v592 = vpack.c.b16 %v540, %v539
  %v593 = vpack.c.b16 %v542, %v541
  %v594 = vpack.c.b16 %v544, %v543
  %v595 = vpack.c.b16 %v546, %v545
  %v596 = vpack.c.b16 %v548, %v547
  %v597 = vpack.c.b16 %v550, %v549
  %v598 = vpack.c.b16 %v552, %v551
  %v599 = vpack.c.b16 %v554, %v553
  %v600 = vpack.c.b16 %v556, %v555
  %v601 = vpack.c.b16 %v558, %v557
  %v602 = vpack.c.b16 %v560, %v559
  %v603 = vpack.c.b16 %v562, %v561
  %v604 = vpack.c.b16 %v564, %v563
  %v605 = vpack.c.b16 %v566, %v565
  %v606 = vpack.c.b16 %v568, %v567
  %v607 = vpack.c.b16 %v570, %v569
  %v608 = vpack.c.b16 %v572, %v571
  %v609 = vpack.c.b16 %v574, %v573
  %v610 = vpack.c.b16 %v576, %v575
  %v611 = vpack.c.b16 %v578, %v577
  %v612 = vpack.c.b16 %v580, %v579
  %645 = vmatprep.subr.bf16.mxu0 0
  %646 = vmatpush1.bf16.msra.mxu0 %v581
  %647 = vmatprep.subr.bf16.mxu0 0
  %648 = vmatpush1.bf16.msra.mxu0 %v582
  %649 = vmatprep.subr.bf16.mxu0 0
  %650 = vmatpush1.bf16.msra.mxu0 %v583
  %651 = vmatprep.subr.bf16.mxu0 0
  %652 = vmatpush1.bf16.msra.mxu0 %v584
  %653 = vmatprep.subr.bf16.mxu0 0
  %654 = vmatpush1.bf16.msra.mxu0 %v585
  %655 = vmatprep.subr.bf16.mxu0 0
  %656 = vmatpush1.bf16.msra.mxu0 %v586
  %657 = vmatprep.subr.bf16.mxu0 0
  %658 = vmatpush1.bf16.msra.mxu0 %v587
  %659 = vmatprep.subr.bf16.mxu0 0
  %660 = vmatpush1.bf16.msra.mxu0 %v588
  %661 = vmatprep.subr.bf16.mxu0 0
  %662 = vmatpush1.bf16.msra.mxu0 %v589
  %663 = vmatprep.subr.bf16.mxu0 0
  %664 = vmatpush1.bf16.msra.mxu0 %v590
  %665 = vmatprep.subr.bf16.mxu0 0
  %666 = vmatpush1.bf16.msra.mxu0 %v591
  %667 = vmatprep.subr.bf16.mxu0 0
  %668 = vmatpush1.bf16.msra.mxu0 %v592
  %669 = vmatprep.subr.bf16.mxu0 0
  %670 = vmatpush1.bf16.msra.mxu0 %v593
  %671 = vmatprep.subr.bf16.mxu0 0
  %672 = vmatpush1.bf16.msra.mxu0 %v594
  %673 = vmatprep.subr.bf16.mxu0 0
  %674 = vmatpush1.bf16.msra.mxu0 %v595
  %675 = vmatprep.subr.bf16.mxu0 0
  %676 = vmatpush1.bf16.msra.mxu0 %v596
  %677 = vmatprep.mubr.bf16.mxu0 %v382
  %678 = vmatmul.mubr.bf16.gmra.mrb[0].mxu0 %v381
  %v679 = vpop.f32.mrb[0].mxu0
  %v680 = vadd.f32 0.0, %v679
  %v681 = vpop.f32.mrb[0].mxu0
  %v682 = vpop.f32.mrb[0].mxu0
  %v683 = vadd.f32 0.0, %v682
  %v684 = vpop.f32.mrb[0].mxu0
  %685 = vmatprep.mubr.bf16.mxu0 %v386
  %686 = vmatmul.mubr.bf16.gmra.mrb[0].mxu0 %v385
  %v687 = vpop.f32.mrb[0].mxu0
  %v688 = vadd.f32 0.0, %v687
  %v689 = vpop.f32.mrb[0].mxu0
  %v690 = vpop.f32.mrb[0].mxu0
  %v691 = vadd.f32 0.0, %v690
  %v692 = vpop.f32.mrb[0].mxu0
  %693 = vdwg.mxu0
  %694 = vmatprep.subr.bf16.mxu0 0
  %695 = vmatpush1.bf16.msra.mxu0 %v597
  %696 = vmatprep.subr.bf16.mxu0 0
  %697 = vmatpush1.bf16.msra.mxu0 %v598
  %698 = vmatprep.subr.bf16.mxu0 0
  %699 = vmatpush1.bf16.msra.mxu0 %v599
  %700 = vmatprep.subr.bf16.mxu0 0
  %701 = vmatpush1.bf16.msra.mxu0 %v600
  %702 = vmatprep.subr.bf16.mxu0 0
  %703 = vmatpush1.bf16.msra.mxu0 %v601
  %704 = vmatprep.subr.bf16.mxu0 0
  %705 = vmatpush1.bf16.msra.mxu0 %v602
  %706 = vmatprep.subr.bf16.mxu0 0
  %707 = vmatpush1.bf16.msra.mxu0 %v603
  %708 = vmatprep.subr.bf16.mxu0 0
  %709 = vmatpush1.bf16.msra.mxu0 %v604
  %710 = vmatprep.subr.bf16.mxu0 0
  %711 = vmatpush1.bf16.msra.mxu0 %v605
  %712 = vmatprep.subr.bf16.mxu0 0
  %713 = vmatpush1.bf16.msra.mxu0 %v606
  %714 = vmatprep.subr.bf16.mxu0 0
  %715 = vmatpush1.bf16.msra.mxu0 %v607
  %716 = vmatprep.subr.bf16.mxu0 0
  %717 = vmatpush1.bf16.msra.mxu0 %v608
  %718 = vmatprep.subr.bf16.mxu0 0
  %719 = vmatpush1.bf16.msra.mxu0 %v609
  %720 = vmatprep.subr.bf16.mxu0 0
  %721 = vmatpush1.bf16.msra.mxu0 %v610
  %722 = vmatprep.subr.bf16.mxu0 0
  %723 = vmatpush1.bf16.msra.mxu0 %v611
  %724 = vmatprep.subr.bf16.mxu0 0
  %725 = vmatpush1.bf16.msra.mxu0 %v612
  %726 = vmatprep.mubr.bf16.mxu0 %v384
  %727 = vmatmul.mubr.bf16.gmra.mrb[0].mxu0 %v383
  %v728 = vpop.f32.mrb[0].mxu0
  %v729 = vadd.f32 %v680, %v728
  %v730 = vpop.f32.mrb[0].mxu0
  %v731 = vpop.f32.mrb[0].mxu0
  %v732 = vadd.f32 %v683, %v731
  %v733 = vpop.f32.mrb[0].mxu0
  %734 = vmatprep.mubr.bf16.mxu0 %v388
  %735 = vmatmul.mubr.bf16.gmra.mrb[0].mxu0 %v387
  %v736 = vpop.f32.mrb[0].mxu0
  %v737 = vadd.f32 %v688, %v736
  %v738 = vpop.f32.mrb[0].mxu0
  %v739 = vpop.f32.mrb[0].mxu0
  %v740 = vadd.f32 %v691, %v739
  %v741 = vpop.f32.mrb[0].mxu0
  %742 = vdwg.mxu0
  %v743 = vadd.f32 %v377, %v729
  %v744 = vadd.f32 %v378, %v732
  %v745 = vadd.f32 %v379, %v737
  %v746 = vadd.f32 %v380, %v740
  %747 = vst [vmem:[#allocation2] sm:$0xff] %v743
  %748 = vst [vmem:[#allocation2 + $0x8] sm:$0xff] %v744
  %749 = vst [vmem:[#allocation2 + $0x10] sm:$0xff] %v745
  %750 = vst [vmem:[#allocation2 + $0x18] sm:$0xff] %v746
  // Predicated region
  $region34: #{transformer_forward.12} parent=0 // pred_check
    %p751 = pneg %p27
  $region35: #{transformer_forward.12} parent=0 // pred_check_branch
    %753 = sbr.rel (%p751) target = $region37
  $region36: #{transformer_forward.12} parent=0 // pred_region
    %v754 = vld [vmem:[#allocation2] sm:$0xff]
    %v755 = vld [vmem:[#allocation2 + $0x8] sm:$0xff]
    %v756 = vld [vmem:[#allocation2 + $0x10] sm:$0xff]
    %v757 = vld [vmem:[#allocation2 + $0x18] sm:$0xff]
    %v758 = vadd.f32 %v35, %v754
    %v759 = vadd.f32 %v36, %v755
    %v760 = vadd.f32 %v37, %v756
    %v761 = vadd.f32 %v38, %v757
    %v762 = vld [vmem:[%s4] sm:$0x1]
    %v764 = vlaneseq
    %v765 = vshrl.u32 %v764, 7
    %v766 = vsub.s32 0, %v765
    %v767 = vrot.slane %v762, %v766
    %v769 = vadd.f32 %v758, %v767
    %v770 = vadd.f32 %v759, %v767
    %v771 = vadd.f32 %v760, %v767
    %v772 = vadd.f32 %v761, %v767
    %773 = vadd.xlane.f32.xlu0 %v769
    %v774 = vpop.xlane.xlu0 %773
    %775 = vadd.xlane.f32.xlu0 %v770
    %v776 = vpop.xlane.xlu0 %775
    %777 = vadd.xlane.f32.xlu0 %v771
    %v778 = vpop.xlane.xlu0 %777
    %779 = vadd.xlane.f32.xlu0 %v772
    %v780 = vpop.xlane.xlu0 %779
    %v781 = vrcp.pop 128.0
    %v782 = vmul.f32 %v774, %v781
    %v783 = vmul.f32 %v776, %v781
    %v784 = vmul.f32 %v778, %v781
    %v785 = vmul.f32 %v780, %v781
    %v786 = vsub.f32 %v769, %v782
    %v787 = vsub.f32 %v770, %v783
    %v788 = vsub.f32 %v771, %v784
    %v789 = vsub.f32 %v772, %v785
    %v790 = vmul.f32 %v786, %v786
    %v791 = vmul.f32 %v787, %v787
    %v792 = vmul.f32 %v788, %v788
    %v793 = vmul.f32 %v789, %v789
    %794 = vadd.xlane.f32.xlu0 %v790
    %v795 = vpop.xlane.xlu0 %794
    %796 = vadd.xlane.f32.xlu0 %v791
    %v797 = vpop.xlane.xlu0 %796
    %798 = vadd.xlane.f32.xlu0 %v792
    %v799 = vpop.xlane.xlu0 %798
    %800 = vadd.xlane.f32.xlu0 %v793
    %v801 = vpop.xlane.xlu0 %800
    %v802 = vmul.f32 %v795, %v781
    %v803 = vmul.f32 %v797, %v781
    %v804 = vmul.f32 %v799, %v781
    %v805 = vmul.f32 %v801, %v781
    %v806 = vadd.f32 %v802, 1e-05
    %v807 = vadd.f32 %v803, 1e-05
    %v808 = vadd.f32 %v804, 1e-05
    %v809 = vadd.f32 %v805, 1e-05
    %v810 = vrsqrt.pop %v806
    %v811 = vrsqrt.pop %v807
    %v812 = vrsqrt.pop %v808
    %v813 = vrsqrt.pop %v809
    %v814 = vmul.f32 %v786, %v810
    %v815 = vmul.f32 %v787, %v811
    %v816 = vmul.f32 %v788, %v812
    %v817 = vmul.f32 %v789, %v813
    %v818 = vld [vmem:[%s5] sm:$0x1]
    %v820 = vlaneseq
    %v821 = vshrl.u32 %v820, 7
    %v822 = vsub.s32 0, %v821
    %v823 = vrot.slane %v818, %v822
    %v825 = vmul.f32 %v814, %v823
    %v826 = vmul.f32 %v815, %v823
    %v827 = vmul.f32 %v816, %v823
    %v828 = vmul.f32 %v817, %v823
    %v829 = vld [vmem:[%s6] sm:$0x1]
    %v831 = vlaneseq
    %v832 = vshrl.u32 %v831, 7
    %v833 = vsub.s32 0, %v832
    %v834 = vrot.slane %v829, %v833
    %v836 = vadd.f32 %v825, %v834
    %v837 = vadd.f32 %v826, %v834
    %v838 = vadd.f32 %v827, %v834
    %v839 = vadd.f32 %v828, %v834
    %840 = vst [vmem:[%s7] sm:$0xff] %v836
    %841 = vst [vmem:[%s7 + $0x8] sm:$0xff] %v837
    %842 = vst [vmem:[%s7 + $0x10] sm:$0xff] %v838
    %843 = vst [vmem:[%s7 + $0x18] sm:$0xff] %v839
  $region37: #{transformer_forward.12} parent=0 // pred_fallthru
    _
  // Predicated region
  $region38: #{transformer_forward.12} parent=0 // pred_check
    _
  $region39: #{transformer_forward.12} parent=0 // pred_check_branch
    %845 = sbr.rel (0) target = $region41
  $region40: #{transformer_forward.12} parent=0 // pred_region
    _
  $region41: #{transformer_forward.12} parent=0 // pred_fallthru
    _
  // Predicated region
  $region42: #{transformer_forward.12} parent=0 // pred_check
    _
  $region43: #{transformer_forward.12} parent=0 // pred_check_branch
    %847 = sbr.rel (0) target = $region45
  $region44: #{transformer_forward.12} parent=0 // pred_region
    _
  $region45: #{transformer_forward.12} parent=0 // pred_fallthru
    _

// kernel: transformer_forward.15
$region0: #{transformer_forward.15}
  #allocation0 [shape = 'u32[]', space=smem, size = 0x4, offset = 0x4, fixed_abs, tag = 'smem constant byte address 0x4 - core index']
  #allocation1 [shape = 'u32[144,128]{1,0:T(1,128)}', space=vmem, size = 0x12000, scoped, tag = 'internal scratch']
  #allocation2 [shape = 'bf16[16,256]{1,0:T(16,128)(2,1)}', space=vmem, size = 0x2000, scoped, tag = 'scratch operand']
  #allocation3 [shape = 'bf16[16,128]{1,0:T(16,128)(2,1)}', space=vmem, size = 0x1000, scoped, tag = 'scratch operand']
  %s0 = inlined_call_operand.vmem [shape: f32[2,16,128], index: 0, kind: input, shape index: {}, may-alias: {0,1}]
  %s1 = inlined_call_operand.vmem [shape: f32[2,16,128], index: 1, kind: input, shape index: {}, may-alias: {0,1}]
  %s2 = inlined_call_operand.vmem [shape: f32[2,16,1], index: 2, kind: input, shape index: {}]
  %s3 = inlined_call_operand.vmem [shape: bf16[128,128], index: 3, kind: input, shape index: {}]
  %s4 = inlined_call_operand.vmem [shape: f32[1,128], index: 4, kind: input, shape index: {}]
  %s5 = inlined_call_operand.vmem [shape: bf16[128,256], index: 5, kind: input, shape index: {}]
  %s6 = inlined_call_operand.vmem [shape: f32[1,256], index: 6, kind: input, shape index: {}]
  %s7 = inlined_call_operand.vmem [shape: bf16[128,128], index: 7, kind: input, shape index: {}]
  %s8 = inlined_call_operand.vmem [shape: f32[1,128], index: 8, kind: input, shape index: {}]
  %s9 = inlined_call_operand.vmem [shape: f32[1,128], index: 9, kind: input, shape index: {}]
  %s10 = inlined_call_operand.vmem [shape: f32[1,128], index: 10, kind: input, shape index: {}]
  %s11 = inlined_call_operand.vmem [shape: f32[2,16,128], index: 11, kind: output, shape index: {}]
  %s12 = sld [smem:[#allocation0]]
  $region81: #{transformer_forward.15} parent=0
    _
  %s14 = ssub.s32 1, %s12
  %s15 = scalar_select 0, %s14, %s12
  loop: start=0, step=1, limit=4
  $region2: #{transformer_forward.15} parent=0 // loop_pre_header
    _
  $region3: #{transformer_forward.15} parent=0 // loop_header
    %s17 = sphi 0, %s21
    %p18 = scmp.ge.s32.totalorder %s17, 4
    %s24 = sphi 0, %s36
    %s25 = sphi 0, %s32
    %s26 = sphi 0, %s24
    %s27 = sphi 0, %s25
    %s28 = sphi 0, %s26
    %s29 = sphi 0, %s27
    %s41 = sphi 0, %s43
    %s44 = sphi 0, %s41
    %s45 = sphi 0, %s44
    %s61 = sphi 0, %s45
    %s67 = sphi 0, %s69
    %s70 = sphi 0, %s67
    %s71 = sphi 0, %s70
    %s87 = sphi 0, %s71
    %s95 = sphi 0, %s97
    %s98 = sphi 0, %s95
    %s99 = sphi 0, %s98
    %s115 = sphi 0, %s99
    %s119 = sphi 0, %s119
    %s121 = sphi 0, %s119
    %s122 = sphi 0, %s121
    %s136 = sphi 0, %s122
    %s140 = sphi 0, %s140
    %s142 = sphi 0, %s140
    %s143 = sphi 0, %s142
    %s157 = sphi 0, %s143
    %s161 = sphi 0, %s161
    %s163 = sphi 0, %s161
    %s164 = sphi 0, %s163
    %s178 = sphi 0, %s164
    %s182 = sphi 0, %s182
    %s184 = sphi 0, %s182
    %s185 = sphi 0, %s184
    %s199 = sphi 0, %s185
    %s203 = sphi 0, %s203
    %s205 = sphi 0, %s203
    %s206 = sphi 0, %s205
    %s220 = sphi 0, %s206
    %s224 = sphi 0, %s224
    %s226 = sphi 0, %s224
    %s227 = sphi 0, %s226
    %s241 = sphi 0, %s227
    %s245 = sphi 0, %s245
    %s247 = sphi 0, %s245
    %s248 = sphi 0, %s247
    %s262 = sphi 0, %s248
    %s266 = sphi 0, %s266
    %s268 = sphi 0, %s266
    %s269 = sphi 0, %s268
    %s283 = sphi 0, %s269
    %s291 = sphi 0, %s293
    %s294 = sphi 0, %s291
    %s295 = sphi 0, %s294
    %s311 = sphi 0, %s295
  $region4: #{transformer_forward.15} parent=0 // loop_header_branch
    %20 = sbr.rel (%p18) target = $region8
  $region5: #{transformer_forward.15} parent=0 // loop_body
    %s22 = ssub.s32 %s17, 1
    %s23 = ssub.s32 %s17, 2
    %s30 = sadd.s32 1, %s25
    %p31 = scmp.ge.s32.totalorder %s30, 1
    %s32 = scalar_select %p31, 0, %s30
    %s33 = sadd.s32 1, %s24
    %s34 = scalar_select %p31, %s33, %s24
    %p35 = scmp.ge.s32.totalorder %s34, 2
    %s36 = scalar_select %p35, 0, %s34
    %s37 = ssub.s32 %s24, %s36
    %s38 = ssub.s32 %s25, %s32
    %s39 = sor.u32 %s37, %s38
    %p40 = scmp.eq.s32.totalorder %s39, 0
    %s42 = sadd.s32 %s41, 1
    %s43 = scalar_select %p40, %s41, %s42
    %p46 = pneg %p40
    %p47 = scmp.eq.s32.totalorder %s17, 1
    %p48 = por %p46, %p47
    %p49 = scmp.ne.s32.totalorder %s41, %s44
    %p50 = scmp.eq.s32.totalorder %s17, 0
    %p51 = por %p49, %p50
    %p52 = scmp.ne.s32.totalorder %s41, %s44
    %p53 = scmp.eq.s32.totalorder %s22, 1
    %p54 = por %p52, %p53
    %p55 = scmp.ne.s32.totalorder %s44, %s45
    %p56 = scmp.eq.s32.totalorder %s22, 0
    %p57 = por %p55, %p56
    %p58 = scmp.ne.s32.totalorder %s44, %s45
    %p59 = scmp.eq.s32.totalorder %s23, 1
    %p60 = por %p58, %p59
    %p62 = scmp.ne.s32.totalorder %s45, %s61
    %p63 = scmp.eq.s32.totalorder %s23, 0
    %p64 = por %p62, %p63
    %s65 = ssub.s32 %s24, %s36
    %p66 = scmp.eq.s32.totalorder %s65, 0
    %s68 = sadd.s32 %s67, 1
    %s69 = scalar_select %p66, %s67, %s68
    %p72 = pneg %p66
    %p73 = scmp.eq.s32.totalorder %s17, 1
    %p74 = por %p72, %p73
    %p75 = scmp.ne.s32.totalorder %s67, %s70
    %p76 = scmp.eq.s32.totalorder %s17, 0
    %p77 = por %p75, %p76
    %p78 = scmp.ne.s32.totalorder %s67, %s70
    %p79 = scmp.eq.s32.totalorder %s22, 1
    %p80 = por %p78, %p79
    %p81 = scmp.ne.s32.totalorder %s70, %s71
    %p82 = scmp.eq.s32.totalorder %s22, 0
    %p83 = por %p81, %p82
    %p84 = scmp.ne.s32.totalorder %s70, %s71
    %p85 = scmp.eq.s32.totalorder %s23, 1
    %p86 = por %p84, %p85
    %p88 = scmp.ne.s32.totalorder %s71, %s87
    %p89 = scmp.eq.s32.totalorder %s23, 0
    %p90 = por %p88, %p89
    %s91 = ssub.s32 %s24, %s36
    %s92 = ssub.s32 %s25, %s32
    %s93 = sor.u32 %s91, %s92
    %p94 = scmp.eq.s32.totalorder %s93, 0
    %s96 = sadd.s32 %s95, 1
    %s97 = scalar_select %p94, %s95, %s96
    %p100 = pneg %p94
    %p101 = scmp.eq.s32.totalorder %s17, 1
    %p102 = por %p100, %p101
    %p103 = scmp.ne.s32.totalorder %s95, %s98
    %p104 = scmp.eq.s32.totalorder %s17, 0
    %p105 = por %p103, %p104
    %p106 = scmp.ne.s32.totalorder %s95, %s98
    %p107 = scmp.eq.s32.totalorder %s22, 1
    %p108 = por %p106, %p107
    %p109 = scmp.ne.s32.totalorder %s98, %s99
    %p110 = scmp.eq.s32.totalorder %s22, 0
    %p111 = por %p109, %p110
    %p112 = scmp.ne.s32.totalorder %s98, %s99
    %p113 = scmp.eq.s32.totalorder %s23, 1
    %p114 = por %p112, %p113
    %p116 = scmp.ne.s32.totalorder %s99, %s115
    %p117 = scmp.eq.s32.totalorder %s23, 0
    %p118 = por %p116, %p117
    %s120 = sadd.s32 %s119, 1
    %p123 = scmp.eq.s32.totalorder %s17, 1
    %p124 = scmp.ne.s32.totalorder %s119, %s121
    %p125 = scmp.eq.s32.totalorder %s17, 0
    %p126 = por %p124, %p125
    %p127 = scmp.ne.s32.totalorder %s119, %s121
    %p128 = scmp.eq.s32.totalorder %s22, 1
    %p129 = por %p127, %p128
    %p130 = scmp.ne.s32.totalorder %s121, %s122
    %p131 = scmp.eq.s32.totalorder %s22, 0
    %p132 = por %p130, %p131
    %p133 = scmp.ne.s32.totalorder %s121, %s122
    %p134 = scmp.eq.s32.totalorder %s23, 1
    %p135 = por %p133, %p134
    %p137 = scmp.ne.s32.totalorder %s122, %s136
    %p138 = scmp.eq.s32.totalorder %s23, 0
    %p139 = por %p137, %p138
    %s141 = sadd.s32 %s140, 1
    %p144 = scmp.eq.s32.totalorder %s17, 1
    %p145 = scmp.ne.s32.totalorder %s140, %s142
    %p146 = scmp.eq.s32.totalorder %s17, 0
    %p147 = por %p145, %p146
    %p148 = scmp.ne.s32.totalorder %s140, %s142
    %p149 = scmp.eq.s32.totalorder %s22, 1
    %p150 = por %p148, %p149
    %p151 = scmp.ne.s32.totalorder %s142, %s143
    %p152 = scmp.eq.s32.totalorder %s22, 0
    %p153 = por %p151, %p152
    %p154 = scmp.ne.s32.totalorder %s142, %s143
    %p155 = scmp.eq.s32.totalorder %s23, 1
    %p156 = por %p154, %p155
    %p158 = scmp.ne.s32.totalorder %s143, %s157
    %p159 = scmp.eq.s32.totalorder %s23, 0
    %p160 = por %p158, %p159
    %s162 = sadd.s32 %s161, 1
    %p165 = scmp.eq.s32.totalorder %s17, 1
    %p166 = scmp.ne.s32.totalorder %s161, %s163
    %p167 = scmp.eq.s32.totalorder %s17, 0
    %p168 = por %p166, %p167
    %p169 = scmp.ne.s32.totalorder %s161, %s163
    %p170 = scmp.eq.s32.totalorder %s22, 1
    %p171 = por %p169, %p170
    %p172 = scmp.ne.s32.totalorder %s163, %s164
    %p173 = scmp.eq.s32.totalorder %s22, 0
    %p174 = por %p172, %p173
    %p175 = scmp.ne.s32.totalorder %s163, %s164
    %p176 = scmp.eq.s32.totalorder %s23, 1
    %p177 = por %p175, %p176
    %p179 = scmp.ne.s32.totalorder %s164, %s178
    %p180 = scmp.eq.s32.totalorder %s23, 0
    %p181 = por %p179, %p180
    %s183 = sadd.s32 %s182, 1
    %p186 = scmp.eq.s32.totalorder %s17, 1
    %p187 = scmp.ne.s32.totalorder %s182, %s184
    %p188 = scmp.eq.s32.totalorder %s17, 0
    %p189 = por %p187, %p188
    %p190 = scmp.ne.s32.totalorder %s182, %s184
    %p191 = scmp.eq.s32.totalorder %s22, 1
    %p192 = por %p190, %p191
    %p193 = scmp.ne.s32.totalorder %s184, %s185
    %p194 = scmp.eq.s32.totalorder %s22, 0
    %p195 = por %p193, %p194
    %p196 = scmp.ne.s32.totalorder %s184, %s185
    %p197 = scmp.eq.s32.totalorder %s23, 1
    %p198 = por %p196, %p197
    %p200 = scmp.ne.s32.totalorder %s185, %s199
    %p201 = scmp.eq.s32.totalorder %s23, 0
    %p202 = por %p200, %p201
    %s204 = sadd.s32 %s203, 1
    %p207 = scmp.eq.s32.totalorder %s17, 1
    %p208 = scmp.ne.s32.totalorder %s203, %s205
    %p209 = scmp.eq.s32.totalorder %s17, 0
    %p210 = por %p208, %p209
    %p211 = scmp.ne.s32.totalorder %s203, %s205
    %p212 = scmp.eq.s32.totalorder %s22, 1
    %p213 = por %p211, %p212
    %p214 = scmp.ne.s32.totalorder %s205, %s206
    %p215 = scmp.eq.s32.totalorder %s22, 0
    %p216 = por %p214, %p215
    %p217 = scmp.ne.s32.totalorder %s205, %s206
    %p218 = scmp.eq.s32.totalorder %s23, 1
    %p219 = por %p217, %p218
    %p221 = scmp.ne.s32.totalorder %s206, %s220
    %p222 = scmp.eq.s32.totalorder %s23, 0
    %p223 = por %p221, %p222
    %s225 = sadd.s32 %s224, 1
    %p228 = scmp.eq.s32.totalorder %s17, 1
    %p229 = scmp.ne.s32.totalorder %s224, %s226
    %p230 = scmp.eq.s32.totalorder %s17, 0
    %p231 = por %p229, %p230
    %p232 = scmp.ne.s32.totalorder %s224, %s226
    %p233 = scmp.eq.s32.totalorder %s22, 1
    %p234 = por %p232, %p233
    %p235 = scmp.ne.s32.totalorder %s226, %s227
    %p236 = scmp.eq.s32.totalorder %s22, 0
    %p237 = por %p235, %p236
    %p238 = scmp.ne.s32.totalorder %s226, %s227
    %p239 = scmp.eq.s32.totalorder %s23, 1
    %p240 = por %p238, %p239
    %p242 = scmp.ne.s32.totalorder %s227, %s241
    %p243 = scmp.eq.s32.totalorder %s23, 0
    %p244 = por %p242, %p243
    %s246 = sadd.s32 %s245, 1
    %p249 = scmp.eq.s32.totalorder %s17, 1
    %p250 = scmp.ne.s32.totalorder %s245, %s247
    %p251 = scmp.eq.s32.totalorder %s17, 0
    %p252 = por %p250, %p251
    %p253 = scmp.ne.s32.totalorder %s245, %s247
    %p254 = scmp.eq.s32.totalorder %s22, 1
    %p255 = por %p253, %p254
    %p256 = scmp.ne.s32.totalorder %s247, %s248
    %p257 = scmp.eq.s32.totalorder %s22, 0
    %p258 = por %p256, %p257
    %p259 = scmp.ne.s32.totalorder %s247, %s248
    %p260 = scmp.eq.s32.totalorder %s23, 1
    %p261 = por %p259, %p260
    %p263 = scmp.ne.s32.totalorder %s248, %s262
    %p264 = scmp.eq.s32.totalorder %s23, 0
    %p265 = por %p263, %p264
    %s267 = sadd.s32 %s266, 1
    %p270 = scmp.eq.s32.totalorder %s17, 1
    %p271 = scmp.ne.s32.totalorder %s266, %s268
    %p272 = scmp.eq.s32.totalorder %s17, 0
    %p273 = por %p271, %p272
    %p274 = scmp.ne.s32.totalorder %s266, %s268
    %p275 = scmp.eq.s32.totalorder %s22, 1
    %p276 = por %p274, %p275
    %p277 = scmp.ne.s32.totalorder %s268, %s269
    %p278 = scmp.eq.s32.totalorder %s22, 0
    %p279 = por %p277, %p278
    %p280 = scmp.ne.s32.totalorder %s268, %s269
    %p281 = scmp.eq.s32.totalorder %s23, 1
    %p282 = por %p280, %p281
    %p284 = scmp.ne.s32.totalorder %s269, %s283
    %p285 = scmp.eq.s32.totalorder %s23, 0
    %p286 = por %p284, %p285
    %s287 = ssub.s32 %s24, %s36
    %s288 = ssub.s32 %s25, %s32
    %s289 = sor.u32 %s287, %s288
    %p290 = scmp.eq.s32.totalorder %s289, 0
    %s292 = sadd.s32 %s291, 1
    %s293 = scalar_select %p290, %s291, %s292
    %p296 = pneg %p290
    %p297 = scmp.eq.s32.totalorder %s17, 1
    %p298 = por %p296, %p297
    %p299 = scmp.ne.s32.totalorder %s291, %s294
    %p300 = scmp.eq.s32.totalorder %s17, 0
    %p301 = por %p299, %p300
    %p302 = scmp.ne.s32.totalorder %s291, %s294
    %p303 = scmp.eq.s32.totalorder %s22, 1
    %p304 = por %p302, %p303
    %p305 = scmp.ne.s32.totalorder %s294, %s295
    %p306 = scmp.eq.s32.totalorder %s22, 0
    %p307 = por %p305, %p306
    %p308 = scmp.ne.s32.totalorder %s294, %s295
    %p309 = scmp.eq.s32.totalorder %s23, 1
    %p310 = por %p308, %p309
    %p312 = scmp.ne.s32.totalorder %s295, %s311
    %p313 = scmp.eq.s32.totalorder %s23, 0
    %p314 = por %p312, %p313
    %p315 = scmp.le.s32.totalorder 1, %s17
    %p316 = scmp.lt.s32.totalorder %s17, 3
    %p317 = pnand %p315, %p316
    %p318 = pneg %p317
    // Predicated region
    $region9: #{transformer_forward.15} parent=5 // pred_check
      _
    $region10: #{transformer_forward.15} parent=5 // pred_check_branch
      %320 = sbr.rel (%p317) target = $region12
    $region11: #{transformer_forward.15} parent=5 // pred_region
      %s321 = ssub.s32 %s17, 1
      // Predicated region
      $region13: #{transformer_forward.15} parent=11 // pred_check
        %p322 = pneg %p132
      $region14: #{transformer_forward.15} parent=11 // pred_check_branch
        %324 = sbr.rel (%p322) target = $region16
      $region15: #{transformer_forward.15} parent=11 // pred_region
        _
      $region16: #{transformer_forward.15} parent=11 // pred_fallthru
        _
      // Predicated region
      $region17: #{transformer_forward.15} parent=11 // pred_check
        %p325 = pneg %p153
      $region18: #{transformer_forward.15} parent=11 // pred_check_branch
        %327 = sbr.rel (%p325) target = $region20
      $region19: #{transformer_forward.15} parent=11 // pred_region
        _
      $region20: #{transformer_forward.15} parent=11 // pred_fallthru
        _
      // Predicated region
      $region21: #{transformer_forward.15} parent=11 // pred_check
        %p328 = pneg %p174
      $region22: #{transformer_forward.15} parent=11 // pred_check_branch
        %330 = sbr.rel (%p328) target = $region24
      $region23: #{transformer_forward.15} parent=11 // pred_region
        _
      $region24: #{transformer_forward.15} parent=11 // pred_fallthru
        _
      // Predicated region
      $region25: #{transformer_forward.15} parent=11 // pred_check
        %p331 = pneg %p195
      $region26: #{transformer_forward.15} parent=11 // pred_check_branch
        %333 = sbr.rel (%p331) target = $region28
      $region27: #{transformer_forward.15} parent=11 // pred_region
        _
      $region28: #{transformer_forward.15} parent=11 // pred_fallthru
        _
      // Predicated region
      $region29: #{transformer_forward.15} parent=11 // pred_check
        %p334 = pneg %p216
      $region30: #{transformer_forward.15} parent=11 // pred_check_branch
        %336 = sbr.rel (%p334) target = $region32
      $region31: #{transformer_forward.15} parent=11 // pred_region
        _
      $region32: #{transformer_forward.15} parent=11 // pred_fallthru
        _
      // Predicated region
      $region33: #{transformer_forward.15} parent=11 // pred_check
        %p337 = pneg %p237
      $region34: #{transformer_forward.15} parent=11 // pred_check_branch
        %339 = sbr.rel (%p337) target = $region36
      $region35: #{transformer_forward.15} parent=11 // pred_region
        _
      $region36: #{transformer_forward.15} parent=11 // pred_fallthru
        _
      // Predicated region
      $region37: #{transformer_forward.15} parent=11 // pred_check
        %p340 = pneg %p258
      $region38: #{transformer_forward.15} parent=11 // pred_check_branch
        %342 = sbr.rel (%p340) target = $region40
      $region39: #{transformer_forward.15} parent=11 // pred_region
        _
      $region40: #{transformer_forward.15} parent=11 // pred_fallthru
        _
      // Predicated region
      $region41: #{transformer_forward.15} parent=11 // pred_check
        %p343 = pneg %p279
      $region42: #{transformer_forward.15} parent=11 // pred_check_branch
        %345 = sbr.rel (%p343) target = $region44
      $region43: #{transformer_forward.15} parent=11 // pred_region
        _
      $region44: #{transformer_forward.15} parent=11 // pred_fallthru
        _
    $region12: #{transformer_forward.15} parent=5 // pred_fallthru
      _
    %p346 = scmp.lt.s32.totalorder %s17, 2
    // Predicated region
    $region45: #{transformer_forward.15} parent=5 // pred_check
      %p347 = pneg %p346
    $region46: #{transformer_forward.15} parent=5 // pred_check_branch
      %349 = sbr.rel (%p347) target = $region48
    $region47: #{transformer_forward.15} parent=5 // pred_region
      // Predicated region
      $region49: #{transformer_forward.15} parent=47 // pred_check
        %p350 = pneg %p51
      $region50: #{transformer_forward.15} parent=47 // pred_check_branch
        %352 = sbr.rel (%p350) target = $region52
      $region51: #{transformer_forward.15} parent=47 // pred_region
        %s353 = smul.u32 2, %s25
        %p354 = scmp.lt.s32.totalorder %s24, 1
        %s355 = scalar_select %p354, %s24, 1
        %p356 = scmp.lt.s32.totalorder %s353, 1
        %s357 = scalar_select %p356, %s353, 1
        %s358 = smul.addr %s355, 2
        %s359 = sadd.s32 %s357, %s358
        %s360 = smul.addr %s359, 8
        %s361 = scalar_lea.vmem %s0, %s360
        %s362 = smul.u32 2, %s25
      $region52: #{transformer_forward.15} parent=47 // pred_fallthru
        _
      // Predicated region
      $region53: #{transformer_forward.15} parent=47 // pred_check
        %p363 = pneg %p77
      $region54: #{transformer_forward.15} parent=47 // pred_check_branch
        %365 = sbr.rel (%p363) target = $region56
      $region55: #{transformer_forward.15} parent=47 // pred_region
        %p366 = scmp.lt.s32.totalorder %s24, 1
        %s367 = scalar_select %p366, %s24, 1
        %s368 = smul.addr %s367, 2
        %s369 = smul.addr %s368, 8
        %s370 = scalar_lea.vmem %s1, %s369
      $region56: #{transformer_forward.15} parent=47 // pred_fallthru
        _
      // Predicated region
      $region57: #{transformer_forward.15} parent=47 // pred_check
        %p371 = pneg %p105
      $region58: #{transformer_forward.15} parent=47 // pred_check_branch
        %373 = sbr.rel (%p371) target = $region60
      $region59: #{transformer_forward.15} parent=47 // pred_region
        %s374 = smul.u32 2, %s25
        %p375 = scmp.lt.s32.totalorder %s24, 1
        %s376 = scalar_select %p375, %s24, 1
        %p377 = scmp.lt.s32.totalorder %s374, 1
        %s378 = scalar_select %p377, %s374, 1
        %s379 = smul.addr %s376, 2
        %s380 = sadd.s32 %s378, %s379
        %s381 = smul.addr %s380, 8
        %s382 = scalar_lea.vmem %s2, %s381
        %s383 = smul.u32 2, %s25
      $region60: #{transformer_forward.15} parent=47 // pred_fallthru
        _
    $region48: #{transformer_forward.15} parent=5 // pred_fallthru
      _
    %p384 = scmp.le.s32.totalorder 1, %s17
    %p385 = scmp.lt.s32.totalorder %s17, 3
    %p386 = pnand %p384, %p385
    %p387 = pneg %p386
    // Predicated region
    $region61: #{transformer_forward.15} parent=5 // pred_check
      _
    $region62: #{transformer_forward.15} parent=5 // pred_check_branch
      %389 = sbr.rel (%p386) target = $region64
    $region63: #{transformer_forward.15} parent=5 // pred_region
      %s390 = ssub.s32 %s17, 1
      %s391 = smul.u32 2, %s27
      %p392 = scmp.lt.s32.totalorder %s26, 1
      %s393 = scalar_select %p392, %s26, 1
      %p394 = scmp.lt.s32.totalorder %s391, 1
      %s395 = scalar_select %p394, %s391, 1
      %s396 = smul.addr %s393, 2
      %s397 = sadd.s32 %s395, %s396
      %s398 = smul.addr %s397, 8
      %s399 = scalar_lea.vmem %s0, %s398
      %p400 = pneg %p57
      %p401 = pneg %p54
      %p402 = scmp.lt.s32.totalorder %s26, 1
      %s403 = scalar_select %p402, %s26, 1
      %s404 = smul.addr %s403, 2
      %s405 = smul.addr %s404, 8
      %s406 = scalar_lea.vmem %s1, %s405
      %p407 = pneg %p83
      %p408 = pneg %p80
      %s409 = smul.u32 2, %s27
      %p410 = scmp.lt.s32.totalorder %s26, 1
      %s411 = scalar_select %p410, %s26, 1
      %p412 = scmp.lt.s32.totalorder %s409, 1
      %s413 = scalar_select %p412, %s409, 1
      %s414 = smul.addr %s411, 2
      %s415 = sadd.s32 %s413, %s414
      %s416 = smul.addr %s415, 8
      %s417 = scalar_lea.vmem %s2, %s416
      %p418 = pneg %p111
      %p419 = pneg %p108
      %p420 = pneg %p132
      %p421 = pneg %p129
      %p422 = pneg %p153
      %p423 = pneg %p150
      %p424 = pneg %p174
      %p425 = pneg %p171
      %p426 = pneg %p195
      %p427 = pneg %p192
      %p428 = pneg %p216
      %p429 = pneg %p213
      %p430 = pneg %p237
      %p431 = pneg %p234
      %p432 = pneg %p258
      %p433 = pneg %p255
      %p434 = pneg %p279
      %p435 = pneg %p276
      %p436 = pneg %p307
      %p437 = pneg %p304
      %s438 = smul.u32 2, %s27
      %p439 = scmp.lt.s32.totalorder %s26, 1
      %s440 = scalar_select %p439, %s26, 1
      %p441 = scmp.lt.s32.totalorder %s438, 1
      %s442 = scalar_select %p441, %s438, 1
      %s443 = smul.addr %s440, 2
      %s444 = sadd.s32 %s442, %s443
      %s445 = smul.addr %s444, 8
      %s446 = scalar_lea.vmem %s11, %s445
      %s447 = smul.u32 2, %s27
      %p448 = scmp.lt.s32.totalorder %s26, 1
      %s449 = scalar_select %p448, %s26, 1
      %p450 = scmp.lt.s32.totalorder %s447, 1
      %s451 = scalar_select %p450, %s447, 1
      %s452 = smul.addr %s449, 2
      %s453 = sadd.s32 %s451, %s452
      %s454 = smul.addr %s453, 8
      %s455 = scalar_lea.vmem %s0, %s454
      %s456 = smul.u32 2, %s27
      %p457 = scmp.lt.s32.totalorder %s26, 1
      %s458 = scalar_select %p457, %s26, 1
      %s459 = smul.addr %s458, 2
      %s460 = smul.addr %s459, 8
      %s461 = scalar_lea.vmem %s1, %s460
      %s462 = smul.u32 2, %s27
      %p463 = scmp.lt.s32.totalorder %s26, 1
      %s464 = scalar_select %p463, %s26, 1
      %p465 = scmp.lt.s32.totalorder %s462, 1
      %s466 = scalar_select %p465, %s462, 1
      %s467 = smul.addr %s464, 2
      %s468 = sadd.s32 %s466, %s467
      %s469 = smul.addr %s468, 8
      %s470 = scalar_lea.vmem %s2, %s469
      %s471 = smul.u32 2, %s27
      %s472 = smul.u32 2, %s27
      %p473 = scmp.lt.s32.totalorder %s26, 1
      %s474 = scalar_select %p473, %s26, 1
      %p475 = scmp.lt.s32.totalorder %s472, 1
      %s476 = scalar_select %p475, %s472, 1
      %s477 = smul.addr %s474, 2
      %s478 = sadd.s32 %s476, %s477
      %s479 = smul.addr %s478, 8
      %s480 = scalar_lea.vmem %s11, %s479
      %s481 = smul.u32 2, %s27
      %v483 = vld [vmem:[%s455] sm:$0xff]
      %v484 = vld [vmem:[%s455 + $0x8] sm:$0xff]
      %p485 = scmp.eq.s32.totalorder %s27, 0
      // Predicated region
      $region65: #{transformer_forward.15} parent=63 // pred_check
        %p486 = pneg %p485
      $region66: #{transformer_forward.15} parent=63 // pred_check_branch
        %488 = sbr.rel (%p486) target = $region68
      $region67: #{transformer_forward.15} parent=63 // pred_region
        %v489 = vld [vmem:[%s461] sm:$0xff]
        %v490 = vld [vmem:[%s461 + $0x8] sm:$0xff]
        %v491 = vpack.c.bf16 %v490, %v489
        %v492 = vld [vmem:[%s5] sm:$0xff]
        %v493 = vld [vmem:[%s5 + $0x8] sm:$0xff]
        %v494 = vld [vmem:[%s5 + $0x10] sm:$0xff]
        %v495 = vld [vmem:[%s5 + $0x18] sm:$0xff]
        %v496 = vld [vmem:[%s5 + $0x20] sm:$0xff]
        %v497 = vld [vmem:[%s5 + $0x28] sm:$0xff]
        %v498 = vld [vmem:[%s5 + $0x30] sm:$0xff]
        %v499 = vld [vmem:[%s5 + $0x38] sm:$0xff]
        %v500 = vld [vmem:[%s5 + $0x40] sm:$0xff]
        %v501 = vld [vmem:[%s5 + $0x48] sm:$0xff]
        %v502 = vld [vmem:[%s5 + $0x50] sm:$0xff]
        %v503 = vld [vmem:[%s5 + $0x58] sm:$0xff]
        %v504 = vld [vmem:[%s5 + $0x60] sm:$0xff]
        %v505 = vld [vmem:[%s5 + $0x68] sm:$0xff]
        %v506 = vld [vmem:[%s5 + $0x70] sm:$0xff]
        %v507 = vld [vmem:[%s5 + $0x78] sm:$0xff]
        %v508 = vld [vmem:[%s6] sm:$0x3]
        %v510 = vlaneseq
        %v511 = vshrl.u32 %v510, 7
        %v512 = vsub.s32 0, %v511
        %v513 = vrot.slane %v508, %v512
        %v514 = vlaneseq
        %v515 = vshrl.u32 %v514, 7
        %v516 = vsub.s32 1, %v515
        %v517 = vrot.slane %v508, %v516
        %v536 = vunpack.c.l.b16 %v492
        %v537 = vunpack.c.h.b16 %v492
        %v538 = vunpack.c.l.b16 %v493
        %v539 = vunpack.c.h.b16 %v493
        %v540 = vunpack.c.l.b16 %v494
        %v541 = vunpack.c.h.b16 %v494
        %v542 = vunpack.c.l.b16 %v495
        %v543 = vunpack.c.h.b16 %v495
        %v544 = vunpack.c.l.b16 %v496
        %v545 = vunpack.c.h.b16 %v496
        %v546 = vunpack.c.l.b16 %v497
        %v547 = vunpack.c.h.b16 %v497
        %v548 = vunpack.c.l.b16 %v498
        %v549 = vunpack.c.h.b16 %v498
        %v550 = vunpack.c.l.b16 %v499
        %v551 = vunpack.c.h.b16 %v499
        %v552 = vunpack.c.l.b16 %v500
        %v553 = vunpack.c.h.b16 %v500
        %v554 = vunpack.c.l.b16 %v501
        %v555 = vunpack.c.h.b16 %v501
        %v556 = vunpack.c.l.b16 %v502
        %v557 = vunpack.c.h.b16 %v502
        %v558 = vunpack.c.l.b16 %v503
        %v559 = vunpack.c.h.b16 %v503
        %v560 = vunpack.c.l.b16 %v504
        %v561 = vunpack.c.h.b16 %v504
        %v562 = vunpack.c.l.b16 %v505
        %v563 = vunpack.c.h.b16 %v505
        %v564 = vunpack.c.l.b16 %v506
        %v565 = vunpack.c.h.b16 %v506
        %v566 = vunpack.c.l.b16 %v507
        %v567 = vunpack.c.h.b16 %v507
        %v568 = vpack.c.b16 %v538, %v536
        %v569 = vpack.c.b16 %v539, %v537
        %v570 = vpack.c.b16 %v542, %v540
        %v571 = vpack.c.b16 %v543, %v541
        %v572 = vpack.c.b16 %v546, %v544
        %v573 = vpack.c.b16 %v547, %v545
        %v574 = vpack.c.b16 %v550, %v548
        %v575 = vpack.c.b16 %v551, %v549
        %v576 = vpack.c.b16 %v554, %v552
        %v577 = vpack.c.b16 %v555, %v553
        %v578 = vpack.c.b16 %v558, %v556
        %v579 = vpack.c.b16 %v559, %v557
        %v580 = vpack.c.b16 %v562, %v560
        %v581 = vpack.c.b16 %v563, %v561
        %v582 = vpack.c.b16 %v566, %v564
        %v583 = vpack.c.b16 %v567, %v565
        %600 = vmatprep.subr.bf16.mxu0 %v569
        %601 = vmatpush1.bf16.msra.mxu0 %v568
        %602 = vmatprep.subr.bf16.mxu0 %v571
        %603 = vmatpush1.bf16.msra.mxu0 %v570
        %604 = vmatprep.subr.bf16.mxu0 %v573
        %605 = vmatpush1.bf16.msra.mxu0 %v572
        %606 = vmatprep.subr.bf16.mxu0 %v575
        %607 = vmatpush1.bf16.msra.mxu0 %v574
        %608 = vmatprep.subr.bf16.mxu0 %v577
        %609 = vmatpush1.bf16.msra.mxu0 %v576
        %610 = vmatprep.subr.bf16.mxu0 %v579
        %611 = vmatpush1.bf16.msra.mxu0 %v578
        %612 = vmatprep.subr.bf16.mxu0 %v581
        %613 = vmatpush1.bf16.msra.mxu0 %v580
        %614 = vmatprep.subr.bf16.mxu0 %v583
        %615 = vmatpush1.bf16.msra.mxu0 %v582
        %616 = vmatprep.subr.bf16.mxu0 0
        %617 = vmatpush1.bf16.msra.mxu0 0
        %618 = vmatprep.subr.bf16.mxu0 0
        %619 = vmatpush1.bf16.msra.mxu0 0
        %620 = vmatprep.subr.bf16.mxu0 0
        %621 = vmatpush1.bf16.msra.mxu0 0
        %622 = vmatprep.subr.bf16.mxu0 0
        %623 = vmatpush1.bf16.msra.mxu0 0
        %624 = vmatprep.subr.bf16.mxu0 0
        %625 = vmatpush1.bf16.msra.mxu0 0
        %626 = vmatprep.subr.bf16.mxu0 0
        %627 = vmatpush1.bf16.msra.mxu0 0
        %628 = vmatprep.subr.bf16.mxu0 0
        %629 = vmatpush1.bf16.msra.mxu0 0
        %630 = vmatprep.subr.bf16.mxu0 0
        %631 = vmatpush1.bf16.msra.mxu0 0
        %632 = vmatprep.mubr.bf16.mxu0 0
        %633 = vmatmul.mubr.bf16.gmra.mrb[0].mxu0 %v491
        %v634 = vpop.f32.mrb[0].mxu0
        %v635 = vadd.f32 %v513, %v634
        %v636 = vpop.f32.mrb[0].mxu0
        %v637 = vadd.f32 %v517, %v636
        %v638 = vpop.f32.mrb[0].mxu0
        %v639 = vadd.f32 %v513, %v638
        %v640 = vpop.f32.mrb[0].mxu0
        %v641 = vadd.f32 %v517, %v640
        %642 = vdwg.mxu0
        %v643 = vpack.c.bf16 %v639, %v635
        %v644 = vpack.c.bf16 %v641, %v637
        %645 = vst [vmem:[#allocation2] sm:$0xff] %v643
        %646 = vst [vmem:[#allocation2 + $0x8] sm:$0xff] %v644
      $region68: #{transformer_forward.15} parent=63 // pred_fallthru
        _
      %v647 = vpack.c.bf16 %v484, %v483
      %v648 = vld [vmem:[%s3] sm:$0xf]
      %v649 = vld [vmem:[%s3 + $0x4] sm:$0xf]
      %v650 = vld [vmem:[%s3 + $0x8] sm:$0xf]
      %v651 = vld [vmem:[%s3 + $0xc] sm:$0xf]
      %v652 = vld [vmem:[%s3 + $0x10] sm:$0xf]
      %v653 = vld [vmem:[%s3 + $0x14] sm:$0xf]
      %v654 = vld [vmem:[%s3 + $0x18] sm:$0xf]
      %v655 = vld [vmem:[%s3 + $0x1c] sm:$0xf]
      %v656 = vld [vmem:[%s3 + $0x20] sm:$0xf]
      %v657 = vld [vmem:[%s3 + $0x24] sm:$0xf]
      %v658 = vld [vmem:[%s3 + $0x28] sm:$0xf]
      %v659 = vld [vmem:[%s3 + $0x2c] sm:$0xf]
      %v660 = vld [vmem:[%s3 + $0x30] sm:$0xf]
      %v661 = vld [vmem:[%s3 + $0x34] sm:$0xf]
      %v662 = vld [vmem:[%s3 + $0x38] sm:$0xf]
      %v663 = vld [vmem:[%s3 + $0x3c] sm:$0xf]
      %v664 = vld [vmem:[%s4] sm:$0x1]
      %v666 = vlaneseq
      %v667 = vshrl.u32 %v666, 7
      %v668 = vsub.s32 0, %v667
      %v669 = vrot.slane %v664, %v668
      %v687 = vunpack.c.l.b16 %v648
      %v688 = vunpack.c.l.b16 %v649
      %v689 = vunpack.c.l.b16 %v650
      %v690 = vunpack.c.l.b16 %v651
      %v691 = vunpack.c.l.b16 %v652
      %v692 = vunpack.c.l.b16 %v653
      %v693 = vunpack.c.l.b16 %v654
      %v694 = vunpack.c.l.b16 %v655
      %v695 = vunpack.c.l.b16 %v656
      %v696 = vunpack.c.l.b16 %v657
      %v697 = vunpack.c.l.b16 %v658
      %v698 = vunpack.c.l.b16 %v659
      %v699 = vunpack.c.l.b16 %v660
      %v700 = vunpack.c.l.b16 %v661
      %v701 = vunpack.c.l.b16 %v662
      %v702 = vunpack.c.l.b16 %v663
      %v703 = vpack.c.b16 %v688, %v687
      %v704 = vpack.c.b16 %v690, %v689
      %v705 = vpack.c.b16 %v692, %v691
      %v706 = vpack.c.b16 %v694, %v693
      %v707 = vpack.c.b16 %v696, %v695
      %v708 = vpack.c.b16 %v698, %v697
      %v709 = vpack.c.b16 %v700, %v699
      %v710 = vpack.c.b16 %v702, %v701
      %719 = vmatprep.subr.bf16.mxu0 0
      %720 = vmatpush1.bf16.msra.mxu0 %v703
      %721 = vmatprep.subr.bf16.mxu0 0
      %722 = vmatpush1.bf16.msra.mxu0 %v704
      %723 = vmatprep.subr.bf16.mxu0 0
      %724 = vmatpush1.bf16.msra.mxu0 %v705
      %725 = vmatprep.subr.bf16.mxu0 0
      %726 = vmatpush1.bf16.msra.mxu0 %v706
      %727 = vmatprep.subr.bf16.mxu0 0
      %728 = vmatpush1.bf16.msra.mxu0 %v707
      %729 = vmatprep.subr.bf16.mxu0 0
      %730 = vmatpush1.bf16.msra.mxu0 %v708
      %731 = vmatprep.subr.bf16.mxu0 0
      %732 = vmatpush1.bf16.msra.mxu0 %v709
      %733 = vmatprep.subr.bf16.mxu0 0
      %734 = vmatpush1.bf16.msra.mxu0 %v710
      %735 = vmatprep.subr.bf16.mxu0 0
      %736 = vmatpush1.bf16.msra.mxu0 0
      %737 = vmatprep.subr.bf16.mxu0 0
      %738 = vmatpush1.bf16.msra.mxu0 0
      %739 = vmatprep.subr.bf16.mxu0 0
      %740 = vmatpush1.bf16.msra.mxu0 0
      %741 = vmatprep.subr.bf16.mxu0 0
      %742 = vmatpush1.bf16.msra.mxu0 0
      %743 = vmatprep.subr.bf16.mxu0 0
      %744 = vmatpush1.bf16.msra.mxu0 0
      %745 = vmatprep.subr.bf16.mxu0 0
      %746 = vmatpush1.bf16.msra.mxu0 0
      %747 = vmatprep.subr.bf16.mxu0 0
      %748 = vmatpush1.bf16.msra.mxu0 0
      %749 = vmatprep.subr.bf16.mxu0 0
      %750 = vmatpush1.bf16.msra.mxu0 0
      %751 = vmatprep.mubr.bf16.mxu0 0
      %752 = vmatmul.mubr.bf16.gmra.mrb[0].mxu0 %v647
      %v753 = vpop.f32.mrb[0].mxu0
      %v754 = vadd.f32 %v669, %v753
      %v755 = vpop.f32.mrb[0].mxu0
      %v756 = vpop.f32.mrb[0].mxu0
      %v757 = vadd.f32 %v669, %v756
      %v758 = vpop.f32.mrb[0].mxu0
      %759 = vdwg.mxu0
      %v760 = vmul.f32 %v754, 0.17677669
      %v761 = vmul.f32 %v757, 0.17677669
      %v762 = vld [vmem:[%s470] sm:$0xff]
      %v763 = vld [vmem:[%s470 + $0x8] sm:$0xff]
      %vm764 = vcmp.ne.f32.partialorder %v762, 0.0
      %vm765 = vcmp.ne.f32.partialorder %v763, 0.0
      %v766 = vlaneseq
      %v767 = vshrl.u32 %v766, 7
      %v768 = vadd.s32 %v767, 8
      %s769 = smul.u32 %s27, 16
      %v770 = vstv %s769
      %v771 = vadd.s32 %v767, %v770
      %v772 = vadd.s32 %v768, %v770
      %v773 = vlaneseq
      %v774 = vand.u32 %v773, 127
      %vm775 = vcmp.le.s32.totalorder %v774, %v771
      %vm776 = vcmp.le.s32.totalorder %v774, %v772
      %v777 = vsel %vm764, 1, 0
      %v778 = vsel %vm765, 1, 0
      %779 = vset.pattern.permute.xlu0 0
      %780 = vperm.xlu0 %779, %v777
      %v781 = vpop.permute.xlu0 %780
      %782 = vset.pattern.permute.xlu0 0
      %783 = vperm.xlu0 %782, %v778
      %v784 = vpop.permute.xlu0 %783
      %vm785 = vcmp.eq.s32.totalorder %v781, 1
      %vm786 = vcmp.eq.s32.totalorder %v784, 1
      %vm787 = vmand %vm785, %vm775
      %vm788 = vmand %vm786, %vm776
      %v789 = vpack.c.bf16 %v761, %v760
      %v790 = vld [vmem:[#allocation2] sm:$0xff]
      %v791 = vld [vmem:[#allocation2 + $0x8] sm:$0xff]
      %vm792 = vcmask 261120
      %v794 = vsel %vm792, %v789, 0
      %v797 = vsel %vm792, %v790, 0
      %799 = vmatprep.subr.bf16.mxu0 0
      %800 = vmatpush1.bf16.xpose.msra.mxu0 %v797
      %801 = vmatprep.subr.bf16.mxu0 0
      %802 = vmatpush1.bf16.xpose.msra.mxu0 0
      %803 = vmatprep.subr.bf16.mxu0 0
      %804 = vmatpush1.bf16.xpose.msra.mxu0 0
      %805 = vmatprep.subr.bf16.mxu0 0
      %806 = vmatpush1.bf16.xpose.msra.mxu0 0
      %807 = vmatprep.subr.bf16.mxu0 0
      %808 = vmatpush1.bf16.xpose.msra.mxu0 0
      %809 = vmatprep.subr.bf16.mxu0 0
      %810 = vmatpush1.bf16.xpose.msra.mxu0 0
      %811 = vmatprep.subr.bf16.mxu0 0
      %812 = vmatpush1.bf16.xpose.msra.mxu0 0
      %813 = vmatprep.subr.bf16.mxu0 0
      %814 = vmatpush1.bf16.xpose.msra.mxu0 0
      %815 = vmatprep.subr.bf16.mxu0 0
      %816 = vmatpush1.bf16.xpose.msra.mxu0 0
      %817 = vmatprep.subr.bf16.mxu0 0
      %818 = vmatpush1.bf16.xpose.msra.mxu0 0
      %819 = vmatprep.subr.bf16.mxu0 0
      %820 = vmatpush1.bf16.xpose.msra.mxu0 0
      %821 = vmatprep.subr.bf16.mxu0 0
      %822 = vmatpush1.bf16.xpose.msra.mxu0 0
      %823 = vmatprep.subr.bf16.mxu0 0
      %824 = vmatpush1.bf16.xpose.msra.mxu0 0
      %825 = vmatprep.subr.bf16.mxu0 0
      %826 = vmatpush1.bf16.xpose.msra.mxu0 0
      %827 = vmatprep.subr.bf16.mxu0 0
      %828 = vmatpush1.bf16.xpose.msra.mxu0 0
      %829 = vmatprep.subr.bf16.mxu0 0
      %830 = vmatpush1.bf16.xpose.msra.mxu0 0
      %831 = vmatprep.mubr.bf16.mxu0 0
      %832 = vmatmul.mubr.bf16.gmra.mrb[0].mxu0 %v794
      %v833 = vpop.f32.mrb[0].mxu0
      %v834 = vadd.f32 0.0, %v833
      %v835 = vpop.f32.mrb[0].mxu0
      %v836 = vpop.f32.mrb[0].mxu0
      %v837 = vadd.f32 0.0, %v836
      %v838 = vpop.f32.mrb[0].mxu0
      %839 = vdwg.mxu0
      %v840 = vsel %vm787, %v834, -1e+09
      %v841 = vsel %vm788, %v837, -1e+09
      %vm842 = vcmask 130048
      %v843 = vsel %vm842, %v840, -inf
      %844 = vmax.xlane.f32.xlu0 %v843
      %v845 = vpop.xlane.xlu0 %844
      %v846 = vsel %vm842, %v841, -inf
      %847 = vmax.xlane.f32.xlu0 %v846
      %v848 = vpop.xlane.xlu0 %847
      %v849 = vsub.f32 %v840, %v845
      %v850 = vsub.f32 %v841, %v848
      %v851 = vmul.f32 %v849, 1.442695
      %v852 = vpow.pop %v851
      %v853 = vmul.f32 %v850, 1.442695
      %v854 = vpow.pop %v853
      %v855 = vsel %vm842, %v852, 0.0
      %856 = vadd.xlane.f32.xlu0 %v855
      %v857 = vpop.xlane.xlu0 %856
      %v858 = vsel %vm842, %v854, 0.0
      %859 = vadd.xlane.f32.xlu0 %v858
      %v860 = vpop.xlane.xlu0 %859
      %v861 = vpack.c.bf16 %v854, %v852
      %v863 = vsel %vm842, %v861, 0
      %865 = vmatprep.subr.bf16.mxu0 0
      %866 = vmatpush1.bf16.msra.mxu0 %v791
      %867 = vmatprep.subr.bf16.mxu0 0
      %868 = vmatpush1.bf16.msra.mxu0 0
      %869 = vmatprep.subr.bf16.mxu0 0
      %870 = vmatpush1.bf16.msra.mxu0 0
      %871 = vmatprep.subr.bf16.mxu0 0
      %872 = vmatpush1.bf16.msra.mxu0 0
      %873 = vmatprep.subr.bf16.mxu0 0
      %874 = vmatpush1.bf16.msra.mxu0 0
      %875 = vmatprep.subr.bf16.mxu0 0
      %876 = vmatpush1.bf16.msra.mxu0 0
      %877 = vmatprep.subr.bf16.mxu0 0
      %878 = vmatpush1.bf16.msra.mxu0 0
      %879 = vmatprep.subr.bf16.mxu0 0
      %880 = vmatpush1.bf16.msra.mxu0 0
      %881 = vmatprep.subr.bf16.mxu0 0
      %882 = vmatpush1.bf16.msra.mxu0 0
      %883 = vmatprep.subr.bf16.mxu0 0
      %884 = vmatpush1.bf16.msra.mxu0 0
      %885 = vmatprep.subr.bf16.mxu0 0
      %886 = vmatpush1.bf16.msra.mxu0 0
      %887 = vmatprep.subr.bf16.mxu0 0
      %888 = vmatpush1.bf16.msra.mxu0 0
      %889 = vmatprep.subr.bf16.mxu0 0
      %890 = vmatpush1.bf16.msra.mxu0 0
      %891 = vmatprep.subr.bf16.mxu0 0
      %892 = vmatpush1.bf16.msra.mxu0 0
      %893 = vmatprep.subr.bf16.mxu0 0
      %894 = vmatpush1.bf16.msra.mxu0 0
      %895 = vmatprep.subr.bf16.mxu0 0
      %896 = vmatpush1.bf16.msra.mxu0 0
      %897 = vmatprep.mubr.bf16.mxu0 0
      %898 = vmatmul.mubr.bf16.gmra.mrb[0].mxu0 %v863
      %v899 = vpop.f32.mrb[0].mxu0
      %v900 = vadd.f32 0.0, %v899
      %v901 = vpop.f32.mrb[0].mxu0
      %v902 = vpop.f32.mrb[0].mxu0
      %v903 = vadd.f32 0.0, %v902
      %v904 = vpop.f32.mrb[0].mxu0
      %905 = vdwg.mxu0
      %v906 = vrcp.pop %v857
      %v907 = vrcp.pop %v860
      %v908 = vmul.f32 %v900, %v906
      %v909 = vmul.f32 %v903, %v907
      %v910 = vpack.c.bf16 %v909, %v908
      %911 = vst.msk [vmem:[#allocation3] sm:$0xff] %vm792, %v910
      %v912 = vld [vmem:[#allocation2] sm:$0xff]
      %v913 = vld [vmem:[#allocation2 + $0x8] sm:$0xff]
      %915 = vrot.lane.b32.xlu0 %v789, 96
      %v916 = vpop.permute.xlu0 %915
      %918 = vrot.lane.b32.xlu0 %v912, 96
      %v919 = vpop.permute.xlu0 %918
      %v921 = vsel %vm792, %v916, 0
      %v924 = vsel %vm792, %v919, 0
      %926 = vmatprep.subr.bf16.mxu0 0
      %927 = vmatpush1.bf16.xpose.msra.mxu0 %v924
      %928 = vmatprep.subr.bf16.mxu0 0
      %929 = vmatpush1.bf16.xpose.msra.mxu0 0
      %930 = vmatprep.subr.bf16.mxu0 0
      %931 = vmatpush1.bf16.xpose.msra.mxu0 0
      %932 = vmatprep.subr.bf16.mxu0 0
      %933 = vmatpush1.bf16.xpose.msra.mxu0 0
      %934 = vmatprep.subr.bf16.mxu0 0
      %935 = vmatpush1.bf16.xpose.msra.mxu0 0
      %936 = vmatprep.subr.bf16.mxu0 0
      %937 = vmatpush1.bf16.xpose.msra.mxu0 0
      %938 = vmatprep.subr.bf16.mxu0 0
      %939 = vmatpush1.bf16.xpose.msra.mxu0 0
      %940 = vmatprep.subr.bf16.mxu0 0
      %941 = vmatpush1.bf16.xpose.msra.mxu0 0
      %942 = vmatprep.subr.bf16.mxu0 0
      %943 = vmatpush1.bf16.xpose.msra.mxu0 0
      %944 = vmatprep.subr.bf16.mxu0 0
      %945 = vmatpush1.bf16.xpose.msra.mxu0 0
      %946 = vmatprep.subr.bf16.mxu0 0
      %947 = vmatpush1.bf16.xpose.msra.mxu0 0
      %948 = vmatprep.subr.bf16.mxu0 0
      %949 = vmatpush1.bf16.xpose.msra.mxu0 0
      %950 = vmatprep.subr.bf16.mxu0 0
      %951 = vmatpush1.bf16.xpose.msra.mxu0 0
      %952 = vmatprep.subr.bf16.mxu0 0
      %953 = vmatpush1.bf16.xpose.msra.mxu0 0
      %954 = vmatprep.subr.bf16.mxu0 0
      %955 = vmatpush1.bf16.xpose.msra.mxu0 0
      %956 = vmatprep.subr.bf16.mxu0 0
      %957 = vmatpush1.bf16.xpose.msra.mxu0 0
      %958 = vmatprep.mubr.bf16.mxu0 0
      %959 = vmatmul.mubr.bf16.gmra.mrb[0].mxu0 %v921
      %v960 = vpop.f32.mrb[0].mxu0
      %v961 = vadd.f32 0.0, %v960
      %v962 = vpop.f32.mrb[0].mxu0
      %v963 = vpop.f32.mrb[0].mxu0
      %v964 = vadd.f32 0.0, %v963
      %v965 = vpop.f32.mrb[0].mxu0
      %966 = vdwg.mxu0
      %v967 = vsel %vm787, %v961, -1e+09
      %v968 = vsel %vm788, %v964, -1e+09
      %v969 = vsel %vm842, %v967, -inf
      %970 = vmax.xlane.f32.xlu0 %v969
      %v971 = vpop.xlane.xlu0 %970
      %v972 = vsel %vm842, %v968, -inf
      %973 = vmax.xlane.f32.xlu0 %v972
      %v974 = vpop.xlane.xlu0 %973
      %v975 = vsub.f32 %v967, %v971
      %v976 = vsub.f32 %v968, %v974
      %v977 = vmul.f32 %v975, 1.442695
      %v978 = vpow.pop %v977
      %v979 = vmul.f32 %v976, 1.442695
      %v980 = vpow.pop %v979
      %v981 = vsel %vm842, %v978, 0.0
      %982 = vadd.xlane.f32.xlu0 %v981
      %v983 = vpop.xlane.xlu0 %982
      %v984 = vsel %vm842, %v980, 0.0
      %985 = vadd.xlane.f32.xlu0 %v984
      %v986 = vpop.xlane.xlu0 %985
      %v987 = vpack.c.bf16 %v980, %v978
      %989 = vrot.lane.b32.xlu0 %v913, 96
      %v990 = vpop.permute.xlu0 %989
      %v993 = vsel %vm842, %v987, 0
      %995 = vmatprep.subr.bf16.mxu0 0
      %996 = vmatpush1.bf16.msra.mxu0 %v990
      %997 = vmatprep.subr.bf16.mxu0 0
      %998 = vmatpush1.bf16.msra.mxu0 0
      %999 = vmatprep.subr.bf16.mxu0 0
      %1000 = vmatpush1.bf16.msra.mxu0 0
      %1001 = vmatprep.subr.bf16.mxu0 0
      %1002 = vmatpush1.bf16.msra.mxu0 0
      %1003 = vmatprep.subr.bf16.mxu0 0
      %1004 = vmatpush1.bf16.msra.mxu0 0
      %1005 = vmatprep.subr.bf16.mxu0 0
      %1006 = vmatpush1.bf16.msra.mxu0 0
      %1007 = vmatprep.subr.bf16.mxu0 0
      %1008 = vmatpush1.bf16.msra.mxu0 0
      %1009 = vmatprep.subr.bf16.mxu0 0
      %1010 = vmatpush1.bf16.msra.mxu0 0
      %1011 = vmatprep.subr.bf16.mxu0 0
      %1012 = vmatpush1.bf16.msra.mxu0 0
      %1013 = vmatprep.subr.bf16.mxu0 0
      %1014 = vmatpush1.bf16.msra.mxu0 0
      %1015 = vmatprep.subr.bf16.mxu0 0
      %1016 = vmatpush1.bf16.msra.mxu0 0
      %1017 = vmatprep.subr.bf16.mxu0 0
      %1018 = vmatpush1.bf16.msra.mxu0 0
      %1019 = vmatprep.subr.bf16.mxu0 0
      %1020 = vmatpush1.bf16.msra.mxu0 0
      %1021 = vmatprep.subr.bf16.mxu0 0
      %1022 = vmatpush1.bf16.msra.mxu0 0
      %1023 = vmatprep.subr.bf16.mxu0 0
      %1024 = vmatpush1.bf16.msra.mxu0 0
      %1025 = vmatprep.subr.bf16.mxu0 0
      %1026 = vmatpush1.bf16.msra.mxu0 0
      %1027 = vmatprep.mubr.bf16.mxu0 0
      %1028 = vmatmul.mubr.bf16.gmra.mrb[0].mxu0 %v993
      %v1029 = vpop.f32.mrb[0].mxu0
      %v1030 = vadd.f32 0.0, %v1029
      %v1031 = vpop.f32.mrb[0].mxu0
      %v1032 = vpop.f32.mrb[0].mxu0
      %v1033 = vadd.f32 0.0, %v1032
      %v1034 = vpop.f32.mrb[0].mxu0
      %1035 = vdwg.mxu0
      %v1036 = vrcp.pop %v983
      %v1037 = vrcp.pop %v986
      %v1038 = vmul.f32 %v1030, %v1036
      %v1039 = vmul.f32 %v1033, %v1037
      %v1040 = vpack.c.bf16 %v1039, %v1038
      %1042 = vrot.lane.b32.xlu0 %v1040, 32
      %v1043 = vpop.permute.xlu0 %1042
      %vm1045 = vcmask 523520
      %1046 = vst.msk [vmem:[#allocation3] sm:$0xff] %vm1045, %v1043
      %v1047 = vld [vmem:[#allocation2] sm:$0xff]
      %v1048 = vld [vmem:[#allocation2 + $0x8] sm:$0xff]
      %1049 = vrot.lane.b32.xlu0 %v789, 64
      %v1050 = vpop.permute.xlu0 %1049
      %1052 = vrot.lane.b32.xlu0 %v1047, 64
      %v1053 = vpop.permute.xlu0 %1052
      %v1055 = vsel %vm792, %v1050, 0
      %v1058 = vsel %vm792, %v1053, 0
      %1060 = vmatprep.subr.bf16.mxu0 0
      %1061 = vmatpush1.bf16.xpose.msra.mxu0 %v1058
      %1062 = vmatprep.subr.bf16.mxu0 0
      %1063 = vmatpush1.bf16.xpose.msra.mxu0 0
      %1064 = vmatprep.subr.bf16.mxu0 0
      %1065 = vmatpush1.bf16.xpose.msra.mxu0 0
      %1066 = vmatprep.subr.bf16.mxu0 0
      %1067 = vmatpush1.bf16.xpose.msra.mxu0 0
      %1068 = vmatprep.subr.bf16.mxu0 0
      %1069 = vmatpush1.bf16.xpose.msra.mxu0 0
      %1070 = vmatprep.subr.bf16.mxu0 0
      %1071 = vmatpush1.bf16.xpose.msra.mxu0 0
      %1072 = vmatprep.subr.bf16.mxu0 0
      %1073 = vmatpush1.bf16.xpose.msra.mxu0 0
      %1074 = vmatprep.subr.bf16.mxu0 0
      %1075 = vmatpush1.bf16.xpose.msra.mxu0 0
      %1076 = vmatprep.subr.bf16.mxu0 0
      %1077 = vmatpush1.bf16.xpose.msra.mxu0 0
      %1078 = vmatprep.subr.bf16.mxu0 0
      %1079 = vmatpush1.bf16.xpose.msra.mxu0 0
      %1080 = vmatprep.subr.bf16.mxu0 0
      %1081 = vmatpush1.bf16.xpose.msra.mxu0 0
      %1082 = vmatprep.subr.bf16.mxu0 0
      %1083 = vmatpush1.bf16.xpose.msra.mxu0 0
      %1084 = vmatprep.subr.bf16.mxu0 0
      %1085 = vmatpush1.bf16.xpose.msra.mxu0 0
      %1086 = vmatprep.subr.bf16.mxu0 0
      %1087 = vmatpush1.bf16.xpose.msra.mxu0 0
      %1088 = vmatprep.subr.bf16.mxu0 0
      %1089 = vmatpush1.bf16.xpose.msra.mxu0 0
      %1090 = vmatprep.subr.bf16.mxu0 0
      %1091 = vmatpush1.bf16.xpose.msra.mxu0 0
      %1092 = vmatprep.mubr.bf16.mxu0 0
      %1093 = vmatmul.mubr.bf16.gmra.mrb[0].mxu0 %v1055
      %v1094 = vpop.f32.mrb[0].mxu0
      %v1095 = vadd.f32 0.0, %v1094
      %v1096 = vpop.f32.mrb[0].mxu0
      %v1097 = vpop.f32.mrb[0].mxu0
      %v1098 = vadd.f32 0.0, %v1097
      %v1099 = vpop.f32.mrb[0].mxu0
      %1100 = vdwg.mxu0
      %v1101 = vsel %vm787, %v1095, -1e+09
      %v1102 = vsel %vm788, %v1098, -1e+09
      %v1103 = vsel %vm842, %v1101, -inf
      %1104 = vmax.xlane.f32.xlu0 %v1103
      %v1105 = vpop.xlane.xlu0 %1104
      %v1106 = vsel %vm842, %v1102, -inf
      %1107 = vmax.xlane.f32.xlu0 %v1106
      %v1108 = vpop.xlane.xlu0 %1107
      %v1109 = vsub.f32 %v1101, %v1105
      %v1110 = vsub.f32 %v1102, %v1108
      %v1111 = vmul.f32 %v1109, 1.442695
      %v1112 = vpow.pop %v1111
      %v1113 = vmul.f32 %v1110, 1.442695
      %v1114 = vpow.pop %v1113
      %v1115 = vsel %vm842, %v1112, 0.0
      %1116 = vadd.xlane.f32.xlu0 %v1115
      %v1117 = vpop.xlane.xlu0 %1116
      %v1118 = vsel %vm842, %v1114, 0.0
      %1119 = vadd.xlane.f32.xlu0 %v1118
      %v1120 = vpop.xlane.xlu0 %1119
      %v1121 = vpack.c.bf16 %v1114, %v1112
      %1123 = vrot.lane.b32.xlu0 %v1048, 64
      %v1124 = vpop.permute.xlu0 %1123
      %v1127 = vsel %vm842, %v1121, 0
      %1129 = vmatprep.subr.bf16.mxu0 0
      %1130 = vmatpush1.bf16.msra.mxu0 %v1124
      %1131 = vmatprep.subr.bf16.mxu0 0
      %1132 = vmatpush1.bf16.msra.mxu0 0
      %1133 = vmatprep.subr.bf16.mxu0 0
      %1134 = vmatpush1.bf16.msra.mxu0 0
      %1135 = vmatprep.subr.bf16.mxu0 0
      %1136 = vmatpush1.bf16.msra.mxu0 0
      %1137 = vmatprep.subr.bf16.mxu0 0
      %1138 = vmatpush1.bf16.msra.mxu0 0
      %1139 = vmatprep.subr.bf16.mxu0 0
      %1140 = vmatpush1.bf16.msra.mxu0 0
      %1141 = vmatprep.subr.bf16.mxu0 0
      %1142 = vmatpush1.bf16.msra.mxu0 0
      %1143 = vmatprep.subr.bf16.mxu0 0
      %1144 = vmatpush1.bf16.msra.mxu0 0
      %1145 = vmatprep.subr.bf16.mxu0 0
      %1146 = vmatpush1.bf16.msra.mxu0 0
      %1147 = vmatprep.subr.bf16.mxu0 0
      %1148 = vmatpush1.bf16.msra.mxu0 0
      %1149 = vmatprep.subr.bf16.mxu0 0
      %1150 = vmatpush1.bf16.msra.mxu0 0
      %1151 = vmatprep.subr.bf16.mxu0 0
      %1152 = vmatpush1.bf16.msra.mxu0 0
      %1153 = vmatprep.subr.bf16.mxu0 0
      %1154 = vmatpush1.bf16.msra.mxu0 0
      %1155 = vmatprep.subr.bf16.mxu0 0
      %1156 = vmatpush1.bf16.msra.mxu0 0
      %1157 = vmatprep.subr.bf16.mxu0 0
      %1158 = vmatpush1.bf16.msra.mxu0 0
      %1159 = vmatprep.subr.bf16.mxu0 0
      %1160 = vmatpush1.bf16.msra.mxu0 0
      %1161 = vmatprep.mubr.bf16.mxu0 0
      %1162 = vmatmul.mubr.bf16.gmra.mrb[0].mxu0 %v1127
      %v1163 = vpop.f32.mrb[0].mxu0
      %v1164 = vadd.f32 0.0, %v1163
      %v1165 = vpop.f32.mrb[0].mxu0
      %v1166 = vpop.f32.mrb[0].mxu0
      %v1167 = vadd.f32 0.0, %v1166
      %v1168 = vpop.f32.mrb[0].mxu0
      %1169 = vdwg.mxu0
      %v1170 = vrcp.pop %v1117
      %v1171 = vrcp.pop %v1120
      %v1172 = vmul.f32 %v1164, %v1170
      %v1173 = vmul.f32 %v1167, %v1171
      %v1174 = vpack.c.bf16 %v1173, %v1172
      %1176 = vrot.lane.b32.xlu0 %v1174, 64
      %v1177 = vpop.permute.xlu0 %1176
      %vm1179 = vcmask 785920
      %1180 = vst.msk [vmem:[#allocation3] sm:$0xff] %vm1179, %v1177
      %v1181 = vld [vmem:[#allocation2] sm:$0xff]
      %v1182 = vld [vmem:[#allocation2 + $0x8] sm:$0xff]
      %1183 = vrot.lane.b32.xlu0 %v789, 32
      %v1184 = vpop.permute.xlu0 %1183
      %1186 = vrot.lane.b32.xlu0 %v1181, 32
      %v1187 = vpop.permute.xlu0 %1186
      %v1189 = vsel %vm792, %v1184, 0
      %v1192 = vsel %vm792, %v1187, 0
      %1194 = vmatprep.subr.bf16.mxu0 0
      %1195 = vmatpush1.bf16.xpose.msra.mxu0 %v1192
      %1196 = vmatprep.subr.bf16.mxu0 0
      %1197 = vmatpush1.bf16.xpose.msra.mxu0 0
      %1198 = vmatprep.subr.bf16.mxu0 0
      %1199 = vmatpush1.bf16.xpose.msra.mxu0 0
      %1200 = vmatprep.subr.bf16.mxu0 0
      %1201 = vmatpush1.bf16.xpose.msra.mxu0 0
      %1202 = vmatprep.subr.bf16.mxu0 0
      %1203 = vmatpush1.bf16.xpose.msra.mxu0 0
      %1204 = vmatprep.subr.bf16.mxu0 0
      %1205 = vmatpush1.bf16.xpose.msra.mxu0 0
      %1206 = vmatprep.subr.bf16.mxu0 0
      %1207 = vmatpush1.bf16.xpose.msra.mxu0 0
      %1208 = vmatprep.subr.bf16.mxu0 0
      %1209 = vmatpush1.bf16.xpose.msra.mxu0 0
      %1210 = vmatprep.subr.bf16.mxu0 0
      %1211 = vmatpush1.bf16.xpose.msra.mxu0 0
      %1212 = vmatprep.subr.bf16.mxu0 0
      %1213 = vmatpush1.bf16.xpose.msra.mxu0 0
      %1214 = vmatprep.subr.bf16.mxu0 0
      %1215 = vmatpush1.bf16.xpose.msra.mxu0 0
      %1216 = vmatprep.subr.bf16.mxu0 0
      %1217 = vmatpush1.bf16.xpose.msra.mxu0 0
      %1218 = vmatprep.subr.bf16.mxu0 0
      %1219 = vmatpush1.bf16.xpose.msra.mxu0 0
      %1220 = vmatprep.subr.bf16.mxu0 0
      %1221 = vmatpush1.bf16.xpose.msra.mxu0 0
      %1222 = vmatprep.subr.bf16.mxu0 0
      %1223 = vmatpush1.bf16.xpose.msra.mxu0 0
      %1224 = vmatprep.subr.bf16.mxu0 0
      %1225 = vmatpush1.bf16.xpose.msra.mxu0 0
      %1226 = vmatprep.mubr.bf16.mxu0 0
      %1227 = vmatmul.mubr.bf16.gmra.mrb[0].mxu0 %v1189
      %v1228 = vpop.f32.mrb[0].mxu0
      %v1229 = vadd.f32 0.0, %v1228
      %v1230 = vpop.f32.mrb[0].mxu0
      %v1231 = vpop.f32.mrb[0].mxu0
      %v1232 = vadd.f32 0.0, %v1231
      %v1233 = vpop.f32.mrb[0].mxu0
      %1234 = vdwg.mxu0
      %v1235 = vsel %vm787, %v1229, -1e+09
      %v1236 = vsel %vm788, %v1232, -1e+09
      %v1237 = vsel %vm842, %v1235, -inf
      %1238 = vmax.xlane.f32.xlu0 %v1237
      %v1239 = vpop.xlane.xlu0 %1238
      %v1240 = vsel %vm842, %v1236, -inf
      %1241 = vmax.xlane.f32.xlu0 %v1240
      %v1242 = vpop.xlane.xlu0 %1241
      %v1243 = vsub.f32 %v1235, %v1239
      %v1244 = vsub.f32 %v1236, %v1242
      %v1245 = vmul.f32 %v1243, 1.442695
      %v1246 = vpow.pop %v1245
      %v1247 = vmul.f32 %v1244, 1.442695
      %v1248 = vpow.pop %v1247
      %v1249 = vsel %vm842, %v1246, 0.0
      %1250 = vadd.xlane.f32.xlu0 %v1249
      %v1251 = vpop.xlane.xlu0 %1250
      %v1252 = vsel %vm842, %v1248, 0.0
      %1253 = vadd.xlane.f32.xlu0 %v1252
      %v1254 = vpop.xlane.xlu0 %1253
      %v1255 = vpack.c.bf16 %v1248, %v1246
      %1257 = vrot.lane.b32.xlu0 %v1182, 32
      %v1258 = vpop.permute.xlu0 %1257
      %v1261 = vsel %vm842, %v1255, 0
      %1263 = vmatprep.subr.bf16.mxu0 0
      %1264 = vmatpush1.bf16.msra.mxu0 %v1258
      %1265 = vmatprep.subr.bf16.mxu0 0
      %1266 = vmatpush1.bf16.msra.mxu0 0
      %1267 = vmatprep.subr.bf16.mxu0 0
      %1268 = vmatpush1.bf16.msra.mxu0 0
      %1269 = vmatprep.subr.bf16.mxu0 0
      %1270 = vmatpush1.bf16.msra.mxu0 0
      %1271 = vmatprep.subr.bf16.mxu0 0
      %1272 = vmatpush1.bf16.msra.mxu0 0
      %1273 = vmatprep.subr.bf16.mxu0 0
      %1274 = vmatpush1.bf16.msra.mxu0 0
      %1275 = vmatprep.subr.bf16.mxu0 0
      %1276 = vmatpush1.bf16.msra.mxu0 0
      %1277 = vmatprep.subr.bf16.mxu0 0
      %1278 = vmatpush1.bf16.msra.mxu0 0
      %1279 = vmatprep.subr.bf16.mxu0 0
      %1280 = vmatpush1.bf16.msra.mxu0 0
      %1281 = vmatprep.subr.bf16.mxu0 0
      %1282 = vmatpush1.bf16.msra.mxu0 0
      %1283 = vmatprep.subr.bf16.mxu0 0
      %1284 = vmatpush1.bf16.msra.mxu0 0
      %1285 = vmatprep.subr.bf16.mxu0 0
      %1286 = vmatpush1.bf16.msra.mxu0 0
      %1287 = vmatprep.subr.bf16.mxu0 0
      %1288 = vmatpush1.bf16.msra.mxu0 0
      %1289 = vmatprep.subr.bf16.mxu0 0
      %1290 = vmatpush1.bf16.msra.mxu0 0
      %1291 = vmatprep.subr.bf16.mxu0 0
      %1292 = vmatpush1.bf16.msra.mxu0 0
      %1293 = vmatprep.subr.bf16.mxu0 0
      %1294 = vmatpush1.bf16.msra.mxu0 0
      %1295 = vmatprep.mubr.bf16.mxu0 0
      %1296 = vmatmul.mubr.bf16.gmra.mrb[0].mxu0 %v1261
      %v1297 = vpop.f32.mrb[0].mxu0
      %v1298 = vadd.f32 0.0, %v1297
      %v1299 = vpop.f32.mrb[0].mxu0
      %v1300 = vpop.f32.mrb[0].mxu0
      %v1301 = vadd.f32 0.0, %v1300
      %v1302 = vpop.f32.mrb[0].mxu0
      %1303 = vdwg.mxu0
      %v1304 = vrcp.pop %v1251
      %v1305 = vrcp.pop %v1254
      %v1306 = vmul.f32 %v1298, %v1304
      %v1307 = vmul.f32 %v1301, %v1305
      %v1308 = vpack.c.bf16 %v1307, %v1306
      %1310 = vrot.lane.b32.xlu0 %v1308, 96
      %v1311 = vpop.permute.xlu0 %1310
      %vm1313 = vcmask 1048320
      %1314 = vst.msk [vmem:[#allocation3] sm:$0xff] %vm1313, %v1311
      %v1315 = vld [vmem:[#allocation3] sm:$0xff]
      %v1316 = vld [vmem:[%s7] sm:$0xf]
      %v1317 = vld [vmem:[%s7 + $0x4] sm:$0xf]
      %v1318 = vld [vmem:[%s7 + $0x8] sm:$0xf]
      %v1319 = vld [vmem:[%s7 + $0xc] sm:$0xf]
      %v1320 = vld [vmem:[%s7 + $0x10] sm:$0xf]
      %v1321 = vld [vmem:[%s7 + $0x14] sm:$0xf]
      %v1322 = vld [vmem:[%s7 + $0x18] sm:$0xf]
      %v1323 = vld [vmem:[%s7 + $0x1c] sm:$0xf]
      %v1324 = vld [vmem:[%s7 + $0x20] sm:$0xf]
      %v1325 = vld [vmem:[%s7 + $0x24] sm:$0xf]
      %v1326 = vld [vmem:[%s7 + $0x28] sm:$0xf]
      %v1327 = vld [vmem:[%s7 + $0x2c] sm:$0xf]
      %v1328 = vld [vmem:[%s7 + $0x30] sm:$0xf]
      %v1329 = vld [vmem:[%s7 + $0x34] sm:$0xf]
      %v1330 = vld [vmem:[%s7 + $0x38] sm:$0xf]
      %v1331 = vld [vmem:[%s7 + $0x3c] sm:$0xf]
      %v1348 = vunpack.c.l.b16 %v1316
      %v1349 = vunpack.c.l.b16 %v1317
      %v1350 = vunpack.c.l.b16 %v1318
      %v1351 = vunpack.c.l.b16 %v1319
      %v1352 = vunpack.c.l.b16 %v1320
      %v1353 = vunpack.c.l.b16 %v1321
      %v1354 = vunpack.c.l.b16 %v1322
      %v1355 = vunpack.c.l.b16 %v1323
      %v1356 = vunpack.c.l.b16 %v1324
      %v1357 = vunpack.c.l.b16 %v1325
      %v1358 = vunpack.c.l.b16 %v1326
      %v1359 = vunpack.c.l.b16 %v1327
      %v1360 = vunpack.c.l.b16 %v1328
      %v1361 = vunpack.c.l.b16 %v1329
      %v1362 = vunpack.c.l.b16 %v1330
      %v1363 = vunpack.c.l.b16 %v1331
      %v1364 = vpack.c.b16 %v1349, %v1348
      %v1365 = vpack.c.b16 %v1351, %v1350
      %v1366 = vpack.c.b16 %v1353, %v1352
      %v1367 = vpack.c.b16 %v1355, %v1354
      %v1368 = vpack.c.b16 %v1357, %v1356
      %v1369 = vpack.c.b16 %v1359, %v1358
      %v1370 = vpack.c.b16 %v1361, %v1360
      %v1371 = vpack.c.b16 %v1363, %v1362
      %1380 = vmatprep.subr.bf16.mxu0 0
      %1381 = vmatpush1.bf16.msra.mxu0 %v1364
      %1382 = vmatprep.subr.bf16.mxu0 0
      %1383 = vmatpush1.bf16.msra.mxu0 %v1365
      %1384 = vmatprep.subr.bf16.mxu0 0
      %1385 = vmatpush1.bf16.msra.mxu0 %v1366
      %1386 = vmatprep.subr.bf16.mxu0 0
      %1387 = vmatpush1.bf16.msra.mxu0 %v1367
      %1388 = vmatprep.subr.bf16.mxu0 0
      %1389 = vmatpush1.bf16.msra.mxu0 %v1368
      %1390 = vmatprep.subr.bf16.mxu0 0
      %1391 = vmatpush1.bf16.msra.mxu0 %v1369
      %1392 = vmatprep.subr.bf16.mxu0 0
      %1393 = vmatpush1.bf16.msra.mxu0 %v1370
      %1394 = vmatprep.subr.bf16.mxu0 0
      %1395 = vmatpush1.bf16.msra.mxu0 %v1371
      %1396 = vmatprep.subr.bf16.mxu0 0
      %1397 = vmatpush1.bf16.msra.mxu0 0
      %1398 = vmatprep.subr.bf16.mxu0 0
      %1399 = vmatpush1.bf16.msra.mxu0 0
      %1400 = vmatprep.subr.bf16.mxu0 0
      %1401 = vmatpush1.bf16.msra.mxu0 0
      %1402 = vmatprep.subr.bf16.mxu0 0
      %1403 = vmatpush1.bf16.msra.mxu0 0
      %1404 = vmatprep.subr.bf16.mxu0 0
      %1405 = vmatpush1.bf16.msra.mxu0 0
      %1406 = vmatprep.subr.bf16.mxu0 0
      %1407 = vmatpush1.bf16.msra.mxu0 0
      %1408 = vmatprep.subr.bf16.mxu0 0
      %1409 = vmatpush1.bf16.msra.mxu0 0
      %1410 = vmatprep.subr.bf16.mxu0 0
      %1411 = vmatpush1.bf16.msra.mxu0 0
      %1412 = vmatprep.mubr.bf16.mxu0 0
      %1413 = vmatmul.mubr.bf16.gmra.mrb[0].mxu0 %v1315
      %v1414 = vpop.f32.mrb[0].mxu0
      %v1415 = vadd.f32 0.0, %v1414
      %v1416 = vpop.f32.mrb[0].mxu0
      %v1417 = vpop.f32.mrb[0].mxu0
      %v1418 = vadd.f32 0.0, %v1417
      %v1419 = vpop.f32.mrb[0].mxu0
      %1420 = vdwg.mxu0
      %v1421 = vadd.f32 %v483, %v1415
      %v1422 = vadd.f32 %v484, %v1418
      %v1423 = vld [vmem:[%s8] sm:$0x1]
      %v1425 = vlaneseq
      %v1426 = vshrl.u32 %v1425, 7
      %v1427 = vsub.s32 0, %v1426
      %v1428 = vrot.slane %v1423, %v1427
      %v1430 = vadd.f32 %v1421, %v1428
      %v1431 = vadd.f32 %v1422, %v1428
      %1432 = vadd.xlane.f32.xlu0 %v1430
      %v1433 = vpop.xlane.xlu0 %1432
      %1434 = vadd.xlane.f32.xlu0 %v1431
      %v1435 = vpop.xlane.xlu0 %1434
      %v1436 = vrcp.pop 128.0
      %v1437 = vmul.f32 %v1433, %v1436
      %v1438 = vmul.f32 %v1435, %v1436
      %v1439 = vsub.f32 %v1430, %v1437
      %v1440 = vsub.f32 %v1431, %v1438
      %v1441 = vmul.f32 %v1439, %v1439
      %v1442 = vmul.f32 %v1440, %v1440
      %1443 = vadd.xlane.f32.xlu0 %v1441
      %v1444 = vpop.xlane.xlu0 %1443
      %1445 = vadd.xlane.f32.xlu0 %v1442
      %v1446 = vpop.xlane.xlu0 %1445
      %v1447 = vmul.f32 %v1444, %v1436
      %v1448 = vmul.f32 %v1446, %v1436
      %v1449 = vadd.f32 %v1447, 1e-05
      %v1450 = vadd.f32 %v1448, 1e-05
      %v1451 = vrsqrt.pop %v1449
      %v1452 = vrsqrt.pop %v1450
      %v1453 = vmul.f32 %v1439, %v1451
      %v1454 = vmul.f32 %v1440, %v1452
      %v1455 = vld [vmem:[%s9] sm:$0x1]
      %v1457 = vlaneseq
      %v1458 = vshrl.u32 %v1457, 7
      %v1459 = vsub.s32 0, %v1458
      %v1460 = vrot.slane %v1455, %v1459
      %v1462 = vmul.f32 %v1453, %v1460
      %v1463 = vmul.f32 %v1454, %v1460
      %v1464 = vld [vmem:[%s10] sm:$0x1]
      %v1466 = vlaneseq
      %v1467 = vshrl.u32 %v1466, 7
      %v1468 = vsub.s32 0, %v1467
      %v1469 = vrot.slane %v1464, %v1468
      %v1471 = vadd.f32 %v1462, %v1469
      %v1472 = vadd.f32 %v1463, %v1469
      %1473 = vst [vmem:[%s480] sm:$0xff] %v1471
      %1474 = vst [vmem:[%s480 + $0x8] sm:$0xff] %v1472
      %s1475 = smul.u32 2, %s27
      %p1476 = scmp.lt.s32.totalorder %s26, 1
      %s1477 = scalar_select %p1476, %s26, 1
      %p1478 = scmp.lt.s32.totalorder %s1475, 1
      %s1479 = scalar_select %p1478, %s1475, 1
      %s1480 = smul.addr %s1477, 2
      %s1481 = sadd.s32 %s1479, %s1480
      %s1482 = smul.addr %s1481, 8
      %s1483 = scalar_lea.vmem %s11, %s1482
      // Predicated region
      $region69: #{transformer_forward.15} parent=63 // pred_check
        %p1484 = pneg %p304
      $region70: #{transformer_forward.15} parent=63 // pred_check_branch
        %1486 = sbr.rel (%p1484) target = $region72
      $region71: #{transformer_forward.15} parent=63 // pred_region
        %s1487 = smul.u32 2, %s27
      $region72: #{transformer_forward.15} parent=63 // pred_fallthru
        _
    $region64: #{transformer_forward.15} parent=5 // pred_fallthru
      _
    %p1488 = scmp.le.s32.totalorder 2, %s17
    // Predicated region
    $region73: #{transformer_forward.15} parent=5 // pred_check
      %p1489 = pneg %p1488
    $region74: #{transformer_forward.15} parent=5 // pred_check_branch
      %1491 = sbr.rel (%p1489) target = $region76
    $region75: #{transformer_forward.15} parent=5 // pred_region
      %s1492 = ssub.s32 %s17, 2
      // Predicated region
      $region77: #{transformer_forward.15} parent=75 // pred_check
        %p1493 = pneg %p310
      $region78: #{transformer_forward.15} parent=75 // pred_check_branch
        %1495 = sbr.rel (%p1493) target = $region80
      $region79: #{transformer_forward.15} parent=75 // pred_region
        %s1496 = smul.u32 2, %s29
        %p1497 = scmp.lt.s32.totalorder %s28, 1
        %s1498 = scalar_select %p1497, %s28, 1
        %p1499 = scmp.lt.s32.totalorder %s1496, 1
        %s1500 = scalar_select %p1499, %s1496, 1
        %s1501 = smul.addr %s1498, 2
        %s1502 = sadd.s32 %s1500, %s1501
        %s1503 = smul.addr %s1502, 8
        %s1504 = scalar_lea.vmem %s11, %s1503
      $region80: #{transformer_forward.15} parent=75 // pred_fallthru
        _
    $region76: #{transformer_forward.15} parent=5 // pred_fallthru
      _
  $region6: #{transformer_forward.15} parent=0 // loop_footer
    %s21 = sadd.s32 1, %s17
  $region7: #{transformer_forward.15} parent=0 // loop_footer_branch
    %16 = sbr.rel target = $region3
  $region8: #{transformer_forward.15} parent=0 // loop_exit
    _

</llo_original>
